<compile_context>
chip_gen: v5e
topology: v5e:2x2
jax: 0.10.0
libtpu: 0.0.40
codegen_flags: <defaults>
</compile_context>

<pallas_src>
import math

import jax
import jax.numpy as jnp
from jax import lax
from jax.experimental import pallas as pl
from jax.experimental.pallas import tpu as pltpu

EPS = 1e-5
MXU_DTYPE = jnp.bfloat16          # MXU operand dtype; accumulation stays fp32.
ACT_DTYPE = jnp.bfloat16          # inter-kernel activation dtype.
VMEM_LIMIT = 64 * 1024 * 1024     # above v5e's 16 MiB default scoped-VMEM limit.


# ------------------------------- small helpers ------------------------------ #

def _layernorm_rows(x, gamma, beta):
    """LayerNorm over the last dim (fp32 math). gamma/beta are (1, E) fp32."""
    mean = jnp.mean(x, axis=-1, keepdims=True)
    var = jnp.mean(jnp.square(x - mean), axis=-1, keepdims=True)
    return (x - mean) * lax.rsqrt(var + EPS) * gamma + beta


def _full_spec(shape):
    """Whole-array VMEM-resident operand (constant block index -> fetched once)."""
    return pl.BlockSpec(shape, lambda *_: (0,) * len(shape))


def _cdiv(a, b):
    return -(-a // b)


def _round_up(n, m):
    return _cdiv(n, m) * m


def _row_tiling(n, max_tile=512):
    """Row tile + padded row count: tiles are ~max_tile rows, multiple of 8, minimal padding."""
    n_tiles = _cdiv(n, max_tile)
    tn = _round_up(_cdiv(n, n_tiles), 8)
    return tn, n_tiles * tn


def _pad_rows(x2, n_pad):
    n = x2.shape[0]
    if n == n_pad:
        return x2
    return jnp.pad(x2, ((0, n_pad - n), (0, 0)))


def _q_tile(lq):
    """Lq tile for cross-attention: full if small, else largest mult-of-8 divisor <= 128."""
    if lq <= 128:
        return lq
    for t in (128, 64, 32, 16, 8):
        if lq % t == 0:
            return t
    return lq


# ------------------------------- Pallas kernels ------------------------------ #

def _make_attn_kernel(*, num_heads, scale, is_self, v_is_k, has_qpos, has_kpos,
                      has_identity, has_pre, has_post):
    """Fused MHA kernel variant. Static flags select which input refs exist.

    Blocks: q/qpos/identity: (1, tq, E); k/kpos/v: (1, Lk, E); weights (E, E) bf16;
    biases / LN params (1, E/F) fp32.
    Computes: out = LN_post?( residual + bo + sum_h (softmax(Q_h K_h^T) V_h) Wo_h )
    where Q/K/V are projections of (LN_pre?(x) + pos).
    """
    def kernel(*refs):
        it = iter(refs)
        q_ref = next(it)
        k_ref = q_ref if is_self else next(it)
        v_ref = k_ref if (is_self or v_is_k) else next(it)
        qpos_ref = next(it) if has_qpos else None
        kpos_ref = next(it) if has_kpos else None
        ident_ref = next(it) if has_identity else None
        wq_ref, wk_ref, wv_ref, wo_ref = next(it), next(it), next(it), next(it)
        bq_ref, bk_ref, bv_ref, bo_ref = next(it), next(it), next(it), next(it)
        gpre_ref = next(it) if has_pre else None
        bpre_ref = next(it) if has_pre else None
        gpost_ref = next(it) if has_post else None
        bpost_ref = next(it) if has_post else None
        o_ref = next(it)

        x_q = q_ref[0].astype(jnp.float32)                         # (tq, E) raw query tile
        resid = ident_ref[0].astype(jnp.float32) if has_identity else x_q
        xq_n = _layernorm_rows(x_q, gpre_ref[...], bpre_ref[...]) if has_pre else x_q

        q_in = (xq_n + qpos_ref[0].astype(jnp.float32)) if has_qpos else xq_n
        if is_self:
            k_in = q_in                                            # key == query, key_pos == query_pos
            v_in = xq_n                                            # value == query (no pos add)
        else:
            x_k = k_ref[0].astype(jnp.float32)
            k_in = (x_k + kpos_ref[0].astype(jnp.float32)) if has_kpos else x_k
            v_in = x_k if v_is_k else v_ref[0].astype(jnp.float32)

        # QKV projections: bf16 MXU operands (weights already bf16), fp32 accumulation.
        # q is scaled (after bias) as in PyTorch nn.MultiheadAttention.
        q_proj = (jnp.dot(q_in.astype(MXU_DTYPE), wq_ref[...],
                          preferred_element_type=jnp.float32) + bq_ref[...]) * scale
        k_proj = jnp.dot(k_in.astype(MXU_DTYPE), wk_ref[...],
                         preferred_element_type=jnp.float32) + bk_ref[...]
        v_proj = jnp.dot(v_in.astype(MXU_DTYPE), wv_ref[...],
                         preferred_element_type=jnp.float32) + bv_ref[...]
        qb = q_proj.astype(MXU_DTYPE)
        kb = k_proj.astype(MXU_DTYPE)
        vb = v_proj.astype(MXU_DTYPE)

        embed = qb.shape[-1]
        dh = embed // num_heads

        # Per-head attention with the heads kept as contiguous lane slices; the head output
        # is accumulated straight into the out-projection via a row slice of the resident Wo
        # (no jnp.concatenate lane relayout).
        out = resid + bo_ref[...]
        for h in range(num_heads):
            sl = slice(h * dh, (h + 1) * dh)
            s = lax.dot_general(qb[:, sl], kb[:, sl], (((1,), (1,)), ((), ())),
                                preferred_element_type=jnp.float32)        # (tq, Lk)
            s = s - jnp.max(s, axis=-1, keepdims=True)
            p = jnp.exp(s)
            p = p * pl.reciprocal(jnp.sum(p, axis=-1, keepdims=True), approx=True)
            oh = jnp.dot(p.astype(MXU_DTYPE), vb[:, sl],
                         preferred_element_type=jnp.float32)               # (tq, dh)
            out = out + jnp.dot(oh.astype(MXU_DTYPE), wo_ref[sl, :],
                                preferred_element_type=jnp.float32)        # (tq, E)

        if has_post:
            out = _layernorm_rows(out, gpost_ref[...], bpost_ref[...])
        o_ref[0] = out.astype(o_ref.dtype)

    return kernel


def _make_ffn_kernel(*, has_identity, has_pre, has_post):
    """Fused FFN on a row tile: LN_post?( residual + relu(LN_pre?(x) @ W1 + b1) @ W2 + b2 )."""
    def kernel(*refs):
        it = iter(refs)
        x_ref = next(it)
        ident_ref = next(it) if has_identity else None
        w1_ref, b1_ref, w2_ref, b2_ref = next(it), next(it), next(it), next(it)
        gpre_ref = next(it) if has_pre else None
        bpre_ref = next(it) if has_pre else None
        gpost_ref = next(it) if has_post else None
        bpost_ref = next(it) if has_post else None
        o_ref = next(it)

        x = x_ref[...].astype(jnp.float32)
        resid = ident_ref[...].astype(jnp.float32) if has_identity else x
        h_in = _layernorm_rows(x, gpre_ref[...], bpre_ref[...]) if has_pre else x

        h = jnp.dot(h_in.astype(MXU_DTYPE), w1_ref[...],
                    preferred_element_type=jnp.float32) + b1_ref[...]
        h = jnp.maximum(h, 0.0)                                            # ReLU
        out = jnp.dot(h.astype(MXU_DTYPE), w2_ref[...],
                      preferred_element_type=jnp.float32) + b2_ref[...] + resid
        if has_post:
            out = _layernorm_rows(out, gpost_ref[...], bpost_ref[...])
        o_ref[...] = out.astype(o_ref.dtype)

    return kernel


def _layernorm_kernel(x_ref, g_ref, b_ref, o_ref):
    """Standalone LayerNorm on a row tile (fallback when fusion is not possible)."""
    o_ref[...] = _layernorm_rows(x_ref[...].astype(jnp.float32),
                                 g_ref[...], b_ref[...]).astype(o_ref.dtype)


# ------------------------------- kernel wrappers ----------------------------- #

def attention_block(query, key, value, identity, query_pos, key_pos,
                    params, prologue_np, epilogue_np, num_heads):
    """detrex MultiheadAttention semantics, fully fused in one pallas_call.

    Sequence tensors are batch-major bf16 (B, L, E). `key is None` => self-attention
    (k = v = query, key_pos = query_pos, de-duplicated input streams).
    prologue_np / epilogue_np: LayerNorm params fused before / after the block.
    Returns (B, Lq, E) in ACT_DTYPE.
    """
    is_self = key is None
    if is_self:
        key = query
        value = query
    elif value is None:
        value = key
    v_is_k = value is key

    B, Lq, E = query.shape
    Lk = key.shape[1]
    dh = E // num_heads
    scale = 1.0 / math.sqrt(dh)

    has_qpos = query_pos is not None
    has_kpos = (key_pos is not None) and (not is_self)
    has_identity = identity is not None
    has_pre = prologue_np is not None
    has_post = epilogue_np is not None

    # Self-attention needs the full Lq as keys, so no Lq tiling there; cross-attention
    # gets a second parallel grid axis over Lq tiles (helps v7x's 2 TensorCores).
    tq = Lq if is_self else _q_tile(Lq)
    nq = Lq // tq

    q_spec = pl.BlockSpec((1, tq, E), lambda b, qi: (b, qi, 0))
    kv_spec = pl.BlockSpec((1, Lk, E), lambda b, qi: (b, 0, 0))

    operands, specs = [query], [q_spec]
    if not is_self:
        operands.append(key); specs.append(kv_spec)
        if not v_is_k:
            operands.append(value); specs.append(kv_spec)
    if has_qpos:
        operands.append(query_pos); specs.append(q_spec)
    if has_kpos:
        operands.append(key_pos); specs.append(kv_spec)
    if has_identity:
        operands.append(identity); specs.append(q_spec)
    operands += [params["wq_t"], params["wk_t"], params["wv_t"], params["wo_t"],
                 params["bq"], params["bk"], params["bv"], params["bo"]]
    specs += [_full_spec((E, E))] * 4 + [_full_spec((1, E))] * 4
    if has_pre:
        operands += [prologue_np["gamma"], prologue_np["beta"]]
        specs += [_full_spec((1, E))] * 2
    if has_post:
        operands += [epilogue_np["gamma"], epilogue_np["beta"]]
        specs += [_full_spec((1, E))] * 2

    kernel = _make_attn_kernel(num_heads=num_heads, scale=scale, is_self=is_self,
                               v_is_k=v_is_k, has_qpos=has_qpos, has_kpos=has_kpos,
                               has_identity=has_identity, has_pre=has_pre,
                               has_post=has_post)

    proj_rows = 3 * Lq if is_self else (Lq + 2 * Lk)
    flops = 2 * B * E * E * (proj_rows + Lq) + 4 * B * Lq * Lk * E
    transc = B * num_heads * Lq * Lk
    bytes_acc = 2 * (B * (2 * Lq + (0 if is_self else 2 * Lk)) * E + 4 * E * E) + 4 * 8 * E

    return pl.pallas_call(
        kernel,
        grid=(B, nq),
        in_specs=specs,
        out_specs=q_spec,
        out_shape=jax.ShapeDtypeStruct((B, Lq, E), ACT_DTYPE),
        compiler_params=pltpu.CompilerParams(
            dimension_semantics=("parallel", "parallel"),
            vmem_limit_bytes=VMEM_LIMIT),
        cost_estimate=pl.CostEstimate(flops=int(flops), transcendentals=int(transc),
                                      bytes_accessed=int(bytes_acc)),
    )(*operands)


def ffn_block(x, identity, params, prologue_np, epilogue_np):
    """FFN with residual (+ fused LayerNorm prologue/epilogue). x: (B, L, E) bf16."""
    B, L, E = x.shape
    F = params["w1_t"].shape[1]
    N = B * L
    has_identity = identity is not None
    has_pre = prologue_np is not None
    has_post = epilogue_np is not None

    tn, n_pad = _row_tiling(N)
    x2 = _pad_rows(x.reshape(N, E), n_pad)

    row = pl.BlockSpec((tn, E), lambda i: (i, 0))
    operands, specs = [x2], [row]
    if has_identity:
        operands.append(_pad_rows(identity.reshape(N, E), n_pad)); specs.append(row)
    operands += [params["w1_t"], params["b1"], params["w2_t"], params["b2"]]
    specs += [_full_spec((E, F)), _full_spec((1, F)),
              _full_spec((F, E)), _full_spec((1, E))]
    if has_pre:
        operands += [prologue_np["gamma"], prologue_np["beta"]]
        specs += [_full_spec((1, E))] * 2
    if has_post:
        operands += [epilogue_np["gamma"], epilogue_np["beta"]]
        specs += [_full_spec((1, E))] * 2

    kernel = _make_ffn_kernel(has_identity=has_identity, has_pre=has_pre, has_post=has_post)

    flops = 4 * N * E * F
    bytes_acc = 2 * (2 * n_pad * E + 2 * E * F) + 4 * (F + 3 * E)

    out = pl.pallas_call(
        kernel,
        grid=(n_pad // tn,),
        in_specs=specs,
        out_specs=row,
        out_shape=jax.ShapeDtypeStruct((n_pad, E), ACT_DTYPE),
        compiler_params=pltpu.CompilerParams(
            dimension_semantics=("parallel",),
            vmem_limit_bytes=VMEM_LIMIT),
        cost_estimate=pl.CostEstimate(flops=int(flops), transcendentals=0,
                                      bytes_accessed=int(bytes_acc)),
    )(*operands)
    return out[:N].reshape(B, L, E)


def layer_norm(x, norm_params):
    """Standalone LayerNorm (fallback for orders where fusion is impossible)."""
    B, L, E = x.shape
    N = B * L
    tn, n_pad = _row_tiling(N)
    x2 = _pad_rows(x.reshape(N, E), n_pad)
    row = pl.BlockSpec((tn, E), lambda i: (i, 0))
    out = pl.pallas_call(
        _layernorm_kernel,
        grid=(n_pad // tn,),
        in_specs=[row, _full_spec((1, E)), _full_spec((1, E))],
        out_specs=row,
        out_shape=jax.ShapeDtypeStruct((n_pad, E), ACT_DTYPE),
        compiler_params=pltpu.CompilerParams(dimension_semantics=("parallel",)),
    )(x2, norm_params["gamma"], norm_params["beta"])
    return out[:N].reshape(B, L, E)


# ------------------------------- parameter init ------------------------------ #

def _make_attn_params(rng, embed_dim):
    k1, k2 = jax.random.split(rng)
    in_proj_weight = 0.02 * jax.random.normal(k1, (3 * embed_dim, embed_dim), jnp.float32)
    out_proj_weight = 0.02 * jax.random.normal(k2, (embed_dim, embed_dim), jnp.float32)
    wq, wk, wv = jnp.split(in_proj_weight, 3, axis=0)
    zeros = jnp.zeros((1, embed_dim), jnp.float32)
    # Weights stored pre-transposed (Din, Dout) and in bf16: no per-step transpose or cast.
    return {
        "wq_t": wq.T.astype(MXU_DTYPE), "wk_t": wk.T.astype(MXU_DTYPE),
        "wv_t": wv.T.astype(MXU_DTYPE), "wo_t": out_proj_weight.T.astype(MXU_DTYPE),
        "bq": zeros, "bk": zeros, "bv": zeros, "bo": zeros,   # fp32: added to fp32 accum.
    }


def _make_ffn_params(rng, embed_dim, ffn_dim):
    k1, k2 = jax.random.split(rng)
    w1 = 0.02 * jax.random.normal(k1, (ffn_dim, embed_dim), jnp.float32)
    w2 = 0.02 * jax.random.normal(k2, (embed_dim, ffn_dim), jnp.float32)
    return {
        "w1_t": w1.T.astype(MXU_DTYPE), "b1": jnp.zeros((1, ffn_dim), jnp.float32),
        "w2_t": w2.T.astype(MXU_DTYPE), "b2": jnp.zeros((1, embed_dim), jnp.float32),
    }


def _make_norm_params(rng, embed_dim):
    k1, k2 = jax.random.split(rng)
    gamma = 1.0 + 0.1 * jax.random.normal(k1, (embed_dim,), jnp.float32)
    beta = 0.1 * jax.random.normal(k2, (embed_dim,), jnp.float32)
    return {"gamma": gamma.reshape(1, embed_dim), "beta": beta.reshape(1, embed_dim)}


# ----------------------------- module-level wrapper --------------------------- #

class BaseTransformerLayerPallas:
    """JAX/Pallas re-implementation of detrex BaseTransformerLayer forward (eval mode)."""

    def __init__(self, embed_dim, num_heads, ffn_dim, operation_order, rng):
        assert set(operation_order).issubset({"self_attn", "norm", "cross_attn", "ffn"})
        self.operation_order = tuple(operation_order)
        self.pre_norm = operation_order[0] == "norm"
        self.embed_dim = embed_dim
        self.num_heads = num_heads
        self.num_attn = sum(op in ("self_attn", "cross_attn") for op in operation_order)
        num_ffn = operation_order.count("ffn")
        num_norm = operation_order.count("norm")

        keys = jax.random.split(rng, self.num_attn + num_ffn + num_norm)
        kidx = 0
        self.attn_params = []
        for _ in range(self.num_attn):
            self.attn_params.append(_make_attn_params(keys[kidx], embed_dim)); kidx += 1
        self.ffn_params = []
        for _ in range(num_ffn):
            self.ffn_params.append(_make_ffn_params(keys[kidx], embed_dim, ffn_dim)); kidx += 1
        self.norm_params = []
        for _ in range(num_norm):
            self.norm_params.append(_make_norm_params(keys[kidx], embed_dim)); kidx += 1

    def __call__(self, query, key=None, value=None, query_pos=None, key_pos=None):
        # Work internally in batch-major bf16 (B, L, E); the boundary transpose is fused with
        # the bf16 downcast and each distinct external tensor is converted exactly once.
        to_bm = lambda t: None if t is None else jnp.transpose(t, (1, 0, 2)).astype(ACT_DTYPE)
        q = to_bm(query)
        k = to_bm(key)
        if value is None or value is key:
            v = k                                   # de-dup: value == key -> single stream
        else:
            v = to_bm(value)
        qp = to_bm(query_pos)
        if key_pos is not None:
            kp = qp if key_pos is query_pos else to_bm(key_pos)
        elif query_pos is not None and key is not None and query_pos.shape == key.shape:
            kp = qp                                 # detrex MHA default: key_pos = query_pos
        else:
            kp = None

        ops = self.operation_order
        norm_i = attn_i = ffn_i = 0
        identity = q
        i = 0
        while i < len(ops):
            op = ops[i]
            prologue = None
            if op == "norm":
                nxt = ops[i + 1] if i + 1 < len(ops) else None
                if self.pre_norm and nxt in ("self_attn", "cross_attn", "ffn"):
                    # Pre-norm: fuse this LayerNorm as a prologue of the next kernel.
                    prologue = self.norm_params[norm_i]; norm_i += 1
                    i += 1
                    op = ops[i]
                else:
                    q = layer_norm(q, self.norm_params[norm_i]); norm_i += 1
                    i += 1
                    continue

            # Post-norm: fuse the following LayerNorm as an epilogue of this kernel.
            epilogue = None
            step = 1
            if (not self.pre_norm) and i + 1 < len(ops) and ops[i + 1] == "norm":
                epilogue = self.norm_params[norm_i]; norm_i += 1
                step = 2

            # Residual identity: only passed as a separate stream when it differs from the
            # kernel's own input (post-norm and prologue-fused pre-norm both reuse the input).
            ident_stream = identity if (self.pre_norm and identity is not q) else None

            if op == "self_attn":
                q = attention_block(q, None, None, ident_stream, qp, None,
                                    self.attn_params[attn_i], prologue, epilogue,
                                    self.num_heads)
                attn_i += 1
                identity = q
            elif op == "cross_attn":
                q = attention_block(q, k, v, ident_stream, qp, kp,
                                    self.attn_params[attn_i], prologue, epilogue,
                                    self.num_heads)
                attn_i += 1
                identity = q
            elif op == "ffn":
                q = ffn_block(q, ident_stream, self.ffn_params[ffn_i], prologue, epilogue)
                ffn_i += 1

            i += step

        # Back to (L, B, E), fp32 at the module boundary.
        return jnp.transpose(q, (1, 0, 2)).astype(jnp.float32)


# ----------------------------------- main ------------------------------------ #

if __name__ == "__main__":
    embed_dim = 32
    num_heads = 4
    ffn_dim = 64
    num_query = 8    # Lq
    num_key = 16     # Lk (cross-attention memory length)
    batch = 2

    root = jax.random.PRNGKey(0)
    k_q, k_mem, k_qpos, k_kpos, k_params = jax.random.split(root, 5)

    # layout: (seq_len, batch, embed_dim)
    query = jax.random.normal(k_q, (num_query, batch, embed_dim), jnp.float32)
    memory = jax.random.normal(k_mem, (num_key, batch, embed_dim), jnp.float32)
    query_pos = jax.random.normal(k_qpos, (num_query, batch, embed_dim), jnp.float32)
    key_pos = jax.random.normal(k_kpos, (num_key, batch, embed_dim), jnp.float32)

    layer = BaseTransformerLayerPallas(
        embed_dim=embed_dim,
        num_heads=num_heads,
        ffn_dim=ffn_dim,
        operation_order=("self_attn", "norm", "cross_attn", "norm", "ffn", "norm"),
        rng=k_params,
    )

    fwd = jax.jit(lambda q, mem, qp, kp: layer(q, key=mem, value=mem,
                                               query_pos=qp, key_pos=kp))
    out = jax.block_until_ready(fwd(query, memory, query_pos, key_pos))

    assert out.shape == (num_query, batch, embed_dim)
    assert out.dtype == jnp.float32
    assert bool(jnp.all(jnp.isfinite(out)))
    print("KERNEL_OK")
</pallas_src>

<mosaic_0001>
module attributes {stable_mosaic.version = 11 : i64} {
  func.func @kernel(%arg0: i32, %arg1: i32, %arg2: memref<1x8x32xbf16, #tpu.memory_space<vmem>>, %arg3: memref<1x8x32xbf16, #tpu.memory_space<vmem>>, %arg4: memref<32x32xbf16, #tpu.memory_space<vmem>>, %arg5: memref<32x32xbf16, #tpu.memory_space<vmem>>, %arg6: memref<32x32xbf16, #tpu.memory_space<vmem>>, %arg7: memref<32x32xbf16, #tpu.memory_space<vmem>>, %arg8: memref<1x32xf32, #tpu.memory_space<vmem>>, %arg9: memref<1x32xf32, #tpu.memory_space<vmem>>, %arg10: memref<1x32xf32, #tpu.memory_space<vmem>>, %arg11: memref<1x32xf32, #tpu.memory_space<vmem>>, %arg12: memref<1x32xf32, #tpu.memory_space<vmem>>, %arg13: memref<1x32xf32, #tpu.memory_space<vmem>>, %arg14: memref<1x8x32xbf16, #tpu.memory_space<vmem>>) attributes {dimension_semantics = [#tpu.dimension_semantics<parallel>, #tpu.dimension_semantics<parallel>], iteration_bounds = array<i64: 2, 1>, scalar_prefetch = 0 : i64, scratch_operands = 0 : i64, tpu.core_type = #tpu.core_type<tc>, window_params = [{transform_indices = @transform_0, window_bounds = array<i64: 1, 8, 32>}, {transform_indices = @transform_1, window_bounds = array<i64: 1, 8, 32>}, {pipeline_mode = #tpu.pipeline_mode<synchronous>, transform_indices = @transform_2, window_bounds = array<i64: 32, 32>}, {pipeline_mode = #tpu.pipeline_mode<synchronous>, transform_indices = @transform_3, window_bounds = array<i64: 32, 32>}, {pipeline_mode = #tpu.pipeline_mode<synchronous>, transform_indices = @transform_4, window_bounds = array<i64: 32, 32>}, {pipeline_mode = #tpu.pipeline_mode<synchronous>, transform_indices = @transform_5, window_bounds = array<i64: 32, 32>}, {pipeline_mode = #tpu.pipeline_mode<synchronous>, transform_indices = @transform_6, window_bounds = array<i64: 1, 32>}, {pipeline_mode = #tpu.pipeline_mode<synchronous>, transform_indices = @transform_7, window_bounds = array<i64: 1, 32>}, {pipeline_mode = #tpu.pipeline_mode<synchronous>, transform_indices = @transform_8, window_bounds = array<i64: 1, 32>}, {pipeline_mode = #tpu.pipeline_mode<synchronous>, transform_indices = @transform_9, window_bounds = array<i64: 1, 32>}, {pipeline_mode = #tpu.pipeline_mode<synchronous>, transform_indices = @transform_10, window_bounds = array<i64: 1, 32>}, {pipeline_mode = #tpu.pipeline_mode<synchronous>, transform_indices = @transform_11, window_bounds = array<i64: 1, 32>}, {transform_indices = @transform_12, window_bounds = array<i64: 1, 8, 32>}]} {
    %c0 = arith.constant 0 : index
    %c0_0 = arith.constant 0 : index
    %c0_1 = arith.constant 0 : index
    %0 = vector.load %arg2[%c0, %c0_0, %c0_1] : memref<1x8x32xbf16, #tpu.memory_space<vmem>>, vector<1x8x32xbf16>
    %1 = vector.shape_cast %0 : vector<1x8x32xbf16> to vector<8x32xbf16>
    %2 = arith.extf %1 : vector<8x32xbf16> to vector<8x32xf32>
    %c0_2 = arith.constant 0 : index
    %c0_3 = arith.constant 0 : index
    %c0_4 = arith.constant 0 : index
    %3 = vector.load %arg3[%c0_2, %c0_3, %c0_4] : memref<1x8x32xbf16, #tpu.memory_space<vmem>>, vector<1x8x32xbf16>
    %4 = vector.shape_cast %3 : vector<1x8x32xbf16> to vector<8x32xbf16>
    %5 = arith.extf %4 : vector<8x32xbf16> to vector<8x32xf32>
    %6 = arith.addf %2, %5 : vector<8x32xf32>
    %7 = arith.truncf %6 : vector<8x32xf32> to vector<8x32xbf16>
    %c0_5 = arith.constant 0 : index
    %c0_6 = arith.constant 0 : index
    %8 = vector.load %arg4[%c0_5, %c0_6] : memref<32x32xbf16, #tpu.memory_space<vmem>>, vector<32x32xbf16>
    %cst = arith.constant dense<0.000000e+00> : vector<8x32xf32>
    %9 = tpu.matmul %7, %8, %cst {dimension_numbers = #tpu.dot_dimension_numbers<[1], [0], [0], [1], [0, 0, 1, 1], [], []>} : vector<8x32xbf16>, vector<32x32xbf16>, vector<8x32xf32> -> vector<8x32xf32>
    %c0_7 = arith.constant 0 : index
    %c0_8 = arith.constant 0 : index
    %10 = vector.load %arg8[%c0_7, %c0_8] : memref<1x32xf32, #tpu.memory_space<vmem>>, vector<1x32xf32>
    %11 = vector.broadcast %10 : vector<1x32xf32> to vector<8x32xf32>
    %12 = arith.addf %9, %11 : vector<8x32xf32>
    %cst_9 = arith.constant 0.353553385 : f32
    %13 = vector.broadcast %cst_9 : f32 to vector<8x32xf32>
    %14 = arith.mulf %12, %13 : vector<8x32xf32>
    %15 = arith.truncf %6 : vector<8x32xf32> to vector<8x32xbf16>
    %c0_10 = arith.constant 0 : index
    %c0_11 = arith.constant 0 : index
    %16 = vector.load %arg5[%c0_10, %c0_11] : memref<32x32xbf16, #tpu.memory_space<vmem>>, vector<32x32xbf16>
    %cst_12 = arith.constant dense<0.000000e+00> : vector<8x32xf32>
    %17 = tpu.matmul %15, %16, %cst_12 {dimension_numbers = #tpu.dot_dimension_numbers<[1], [0], [0], [1], [0, 0, 1, 1], [], []>} : vector<8x32xbf16>, vector<32x32xbf16>, vector<8x32xf32> -> vector<8x32xf32>
    %c0_13 = arith.constant 0 : index
    %c0_14 = arith.constant 0 : index
    %18 = vector.load %arg9[%c0_13, %c0_14] : memref<1x32xf32, #tpu.memory_space<vmem>>, vector<1x32xf32>
    %19 = vector.broadcast %18 : vector<1x32xf32> to vector<8x32xf32>
    %20 = arith.addf %17, %19 : vector<8x32xf32>
    %21 = arith.truncf %2 : vector<8x32xf32> to vector<8x32xbf16>
    %c0_15 = arith.constant 0 : index
    %c0_16 = arith.constant 0 : index
    %22 = vector.load %arg6[%c0_15, %c0_16] : memref<32x32xbf16, #tpu.memory_space<vmem>>, vector<32x32xbf16>
    %cst_17 = arith.constant dense<0.000000e+00> : vector<8x32xf32>
    %23 = tpu.matmul %21, %22, %cst_17 {dimension_numbers = #tpu.dot_dimension_numbers<[1], [0], [0], [1], [0, 0, 1, 1], [], []>} : vector<8x32xbf16>, vector<32x32xbf16>, vector<8x32xf32> -> vector<8x32xf32>
    %c0_18 = arith.constant 0 : index
    %c0_19 = arith.constant 0 : index
    %24 = vector.load %arg10[%c0_18, %c0_19] : memref<1x32xf32, #tpu.memory_space<vmem>>, vector<1x32xf32>
    %25 = vector.broadcast %24 : vector<1x32xf32> to vector<8x32xf32>
    %26 = arith.addf %23, %25 : vector<8x32xf32>
    %27 = arith.truncf %14 : vector<8x32xf32> to vector<8x32xbf16>
    %28 = arith.truncf %20 : vector<8x32xf32> to vector<8x32xbf16>
    %29 = arith.truncf %26 : vector<8x32xf32> to vector<8x32xbf16>
    %c0_20 = arith.constant 0 : index
    %c0_21 = arith.constant 0 : index
    %30 = vector.load %arg11[%c0_20, %c0_21] : memref<1x32xf32, #tpu.memory_space<vmem>>, vector<1x32xf32>
    %31 = vector.broadcast %30 : vector<1x32xf32> to vector<8x32xf32>
    %32 = arith.addf %2, %31 : vector<8x32xf32>
    %33 = vector.extract_strided_slice %27 {offsets = [0, 0], sizes = [8, 8], strides = [1, 1]} : vector<8x32xbf16> to vector<8x8xbf16>
    %34 = vector.extract_strided_slice %28 {offsets = [0, 0], sizes = [8, 8], strides = [1, 1]} : vector<8x32xbf16> to vector<8x8xbf16>
    %cst_22 = arith.constant dense<0.000000e+00> : vector<8x8xf32>
    %35 = tpu.matmul %33, %34, %cst_22 {dimension_numbers = #tpu.dot_dimension_numbers<[1], [1], [0], [0], [0, 0, 1, 0], [], []>} : vector<8x8xbf16>, vector<8x8xbf16>, vector<8x8xf32> -> vector<8x8xf32>
    %cst_23 = arith.constant dense<0xFF800000> : vector<8xf32>
    %36 = vector.multi_reduction <maximumf>, %35, %cst_23 [1] : vector<8x8xf32> to vector<8xf32>
    %37 = vector.shape_cast %36 : vector<8xf32> to vector<8x1xf32>
    %38 = vector.broadcast %37 : vector<8x1xf32> to vector<8x8xf32>
    %39 = arith.subf %35, %38 : vector<8x8xf32>
    %40 = math.exp %39 : vector<8x8xf32>
    %cst_24 = arith.constant dense<0.000000e+00> : vector<8xf32>
    %41 = vector.multi_reduction <add>, %40, %cst_24 [1] : vector<8x8xf32> to vector<8xf32>
    %42 = vector.shape_cast %41 : vector<8xf32> to vector<8x1xf32>
    %43 = tpu.reciprocal %42 {approx = true} : vector<8x1xf32> -> vector<8x1xf32>
    %44 = vector.broadcast %43 : vector<8x1xf32> to vector<8x8xf32>
    %45 = arith.mulf %40, %44 : vector<8x8xf32>
    %46 = arith.truncf %45 : vector<8x8xf32> to vector<8x8xbf16>
    %47 = vector.extract_strided_slice %29 {offsets = [0, 0], sizes = [8, 8], strides = [1, 1]} : vector<8x32xbf16> to vector<8x8xbf16>
    %cst_25 = arith.constant dense<0.000000e+00> : vector<8x8xf32>
    %48 = tpu.matmul %46, %47, %cst_25 {dimension_numbers = #tpu.dot_dimension_numbers<[1], [0], [0], [1], [0, 0, 1, 1], [], []>} : vector<8x8xbf16>, vector<8x8xbf16>, vector<8x8xf32> -> vector<8x8xf32>
    %49 = arith.truncf %48 : vector<8x8xf32> to vector<8x8xbf16>
    %c0_26 = arith.constant 0 : index
    %c0_27 = arith.constant 0 : index
    %50 = vector.load %arg7[%c0_26, %c0_27] : memref<32x32xbf16, #tpu.memory_space<vmem>>, vector<8x32xbf16>
    %cst_28 = arith.constant dense<0.000000e+00> : vector<8x32xf32>
    %51 = tpu.matmul %49, %50, %cst_28 {dimension_numbers = #tpu.dot_dimension_numbers<[1], [0], [0], [1], [0, 0, 1, 1], [], []>} : vector<8x8xbf16>, vector<8x32xbf16>, vector<8x32xf32> -> vector<8x32xf32>
    %52 = arith.addf %32, %51 : vector<8x32xf32>
    %53 = vector.extract_strided_slice %27 {offsets = [0, 8], sizes = [8, 8], strides = [1, 1]} : vector<8x32xbf16> to vector<8x8xbf16>
    %54 = vector.extract_strided_slice %28 {offsets = [0, 8], sizes = [8, 8], strides = [1, 1]} : vector<8x32xbf16> to vector<8x8xbf16>
    %cst_29 = arith.constant dense<0.000000e+00> : vector<8x8xf32>
    %55 = tpu.matmul %53, %54, %cst_29 {dimension_numbers = #tpu.dot_dimension_numbers<[1], [1], [0], [0], [0, 0, 1, 0], [], []>} : vector<8x8xbf16>, vector<8x8xbf16>, vector<8x8xf32> -> vector<8x8xf32>
    %cst_30 = arith.constant dense<0xFF800000> : vector<8xf32>
    %56 = vector.multi_reduction <maximumf>, %55, %cst_30 [1] : vector<8x8xf32> to vector<8xf32>
    %57 = vector.shape_cast %56 : vector<8xf32> to vector<8x1xf32>
    %58 = vector.broadcast %57 : vector<8x1xf32> to vector<8x8xf32>
    %59 = arith.subf %55, %58 : vector<8x8xf32>
    %60 = math.exp %59 : vector<8x8xf32>
    %cst_31 = arith.constant dense<0.000000e+00> : vector<8xf32>
    %61 = vector.multi_reduction <add>, %60, %cst_31 [1] : vector<8x8xf32> to vector<8xf32>
    %62 = vector.shape_cast %61 : vector<8xf32> to vector<8x1xf32>
    %63 = tpu.reciprocal %62 {approx = true} : vector<8x1xf32> -> vector<8x1xf32>
    %64 = vector.broadcast %63 : vector<8x1xf32> to vector<8x8xf32>
    %65 = arith.mulf %60, %64 : vector<8x8xf32>
    %66 = arith.truncf %65 : vector<8x8xf32> to vector<8x8xbf16>
    %67 = vector.extract_strided_slice %29 {offsets = [0, 8], sizes = [8, 8], strides = [1, 1]} : vector<8x32xbf16> to vector<8x8xbf16>
    %cst_32 = arith.constant dense<0.000000e+00> : vector<8x8xf32>
    %68 = tpu.matmul %66, %67, %cst_32 {dimension_numbers = #tpu.dot_dimension_numbers<[1], [0], [0], [1], [0, 0, 1, 1], [], []>} : vector<8x8xbf16>, vector<8x8xbf16>, vector<8x8xf32> -> vector<8x8xf32>
    %69 = arith.truncf %68 : vector<8x8xf32> to vector<8x8xbf16>
    %c8 = arith.constant 8 : index
    %c0_33 = arith.constant 0 : index
    %70 = vector.load %arg7[%c8, %c0_33] : memref<32x32xbf16, #tpu.memory_space<vmem>>, vector<8x32xbf16>
    %cst_34 = arith.constant dense<0.000000e+00> : vector<8x32xf32>
    %71 = tpu.matmul %69, %70, %cst_34 {dimension_numbers = #tpu.dot_dimension_numbers<[1], [0], [0], [1], [0, 0, 1, 1], [], []>} : vector<8x8xbf16>, vector<8x32xbf16>, vector<8x32xf32> -> vector<8x32xf32>
    %72 = arith.addf %52, %71 : vector<8x32xf32>
    %73 = vector.extract_strided_slice %27 {offsets = [0, 16], sizes = [8, 8], strides = [1, 1]} : vector<8x32xbf16> to vector<8x8xbf16>
    %74 = vector.extract_strided_slice %28 {offsets = [0, 16], sizes = [8, 8], strides = [1, 1]} : vector<8x32xbf16> to vector<8x8xbf16>
    %cst_35 = arith.constant dense<0.000000e+00> : vector<8x8xf32>
    %75 = tpu.matmul %73, %74, %cst_35 {dimension_numbers = #tpu.dot_dimension_numbers<[1], [1], [0], [0], [0, 0, 1, 0], [], []>} : vector<8x8xbf16>, vector<8x8xbf16>, vector<8x8xf32> -> vector<8x8xf32>
    %cst_36 = arith.constant dense<0xFF800000> : vector<8xf32>
    %76 = vector.multi_reduction <maximumf>, %75, %cst_36 [1] : vector<8x8xf32> to vector<8xf32>
    %77 = vector.shape_cast %76 : vector<8xf32> to vector<8x1xf32>
    %78 = vector.broadcast %77 : vector<8x1xf32> to vector<8x8xf32>
    %79 = arith.subf %75, %78 : vector<8x8xf32>
    %80 = math.exp %79 : vector<8x8xf32>
    %cst_37 = arith.constant dense<0.000000e+00> : vector<8xf32>
    %81 = vector.multi_reduction <add>, %80, %cst_37 [1] : vector<8x8xf32> to vector<8xf32>
    %82 = vector.shape_cast %81 : vector<8xf32> to vector<8x1xf32>
    %83 = tpu.reciprocal %82 {approx = true} : vector<8x1xf32> -> vector<8x1xf32>
    %84 = vector.broadcast %83 : vector<8x1xf32> to vector<8x8xf32>
    %85 = arith.mulf %80, %84 : vector<8x8xf32>
    %86 = arith.truncf %85 : vector<8x8xf32> to vector<8x8xbf16>
    %87 = vector.extract_strided_slice %29 {offsets = [0, 16], sizes = [8, 8], strides = [1, 1]} : vector<8x32xbf16> to vector<8x8xbf16>
    %cst_38 = arith.constant dense<0.000000e+00> : vector<8x8xf32>
    %88 = tpu.matmul %86, %87, %cst_38 {dimension_numbers = #tpu.dot_dimension_numbers<[1], [0], [0], [1], [0, 0, 1, 1], [], []>} : vector<8x8xbf16>, vector<8x8xbf16>, vector<8x8xf32> -> vector<8x8xf32>
    %89 = arith.truncf %88 : vector<8x8xf32> to vector<8x8xbf16>
    %c16 = arith.constant 16 : index
    %c0_39 = arith.constant 0 : index
    %90 = vector.load %arg7[%c16, %c0_39] : memref<32x32xbf16, #tpu.memory_space<vmem>>, vector<8x32xbf16>
    %cst_40 = arith.constant dense<0.000000e+00> : vector<8x32xf32>
    %91 = tpu.matmul %89, %90, %cst_40 {dimension_numbers = #tpu.dot_dimension_numbers<[1], [0], [0], [1], [0, 0, 1, 1], [], []>} : vector<8x8xbf16>, vector<8x32xbf16>, vector<8x32xf32> -> vector<8x32xf32>
    %92 = arith.addf %72, %91 : vector<8x32xf32>
    %93 = vector.extract_strided_slice %27 {offsets = [0, 24], sizes = [8, 8], strides = [1, 1]} : vector<8x32xbf16> to vector<8x8xbf16>
    %94 = vector.extract_strided_slice %28 {offsets = [0, 24], sizes = [8, 8], strides = [1, 1]} : vector<8x32xbf16> to vector<8x8xbf16>
    %cst_41 = arith.constant dense<0.000000e+00> : vector<8x8xf32>
    %95 = tpu.matmul %93, %94, %cst_41 {dimension_numbers = #tpu.dot_dimension_numbers<[1], [1], [0], [0], [0, 0, 1, 0], [], []>} : vector<8x8xbf16>, vector<8x8xbf16>, vector<8x8xf32> -> vector<8x8xf32>
    %cst_42 = arith.constant dense<0xFF800000> : vector<8xf32>
    %96 = vector.multi_reduction <maximumf>, %95, %cst_42 [1] : vector<8x8xf32> to vector<8xf32>
    %97 = vector.shape_cast %96 : vector<8xf32> to vector<8x1xf32>
    %98 = vector.broadcast %97 : vector<8x1xf32> to vector<8x8xf32>
    %99 = arith.subf %95, %98 : vector<8x8xf32>
    %100 = math.exp %99 : vector<8x8xf32>
    %cst_43 = arith.constant dense<0.000000e+00> : vector<8xf32>
    %101 = vector.multi_reduction <add>, %100, %cst_43 [1] : vector<8x8xf32> to vector<8xf32>
    %102 = vector.shape_cast %101 : vector<8xf32> to vector<8x1xf32>
    %103 = tpu.reciprocal %102 {approx = true} : vector<8x1xf32> -> vector<8x1xf32>
    %104 = vector.broadcast %103 : vector<8x1xf32> to vector<8x8xf32>
    %105 = arith.mulf %100, %104 : vector<8x8xf32>
    %106 = arith.truncf %105 : vector<8x8xf32> to vector<8x8xbf16>
    %107 = vector.extract_strided_slice %29 {offsets = [0, 24], sizes = [8, 8], strides = [1, 1]} : vector<8x32xbf16> to vector<8x8xbf16>
    %cst_44 = arith.constant dense<0.000000e+00> : vector<8x8xf32>
    %108 = tpu.matmul %106, %107, %cst_44 {dimension_numbers = #tpu.dot_dimension_numbers<[1], [0], [0], [1], [0, 0, 1, 1], [], []>} : vector<8x8xbf16>, vector<8x8xbf16>, vector<8x8xf32> -> vector<8x8xf32>
    %109 = arith.truncf %108 : vector<8x8xf32> to vector<8x8xbf16>
    %c24 = arith.constant 24 : index
    %c0_45 = arith.constant 0 : index
    %110 = vector.load %arg7[%c24, %c0_45] : memref<32x32xbf16, #tpu.memory_space<vmem>>, vector<8x32xbf16>
    %cst_46 = arith.constant dense<0.000000e+00> : vector<8x32xf32>
    %111 = tpu.matmul %109, %110, %cst_46 {dimension_numbers = #tpu.dot_dimension_numbers<[1], [0], [0], [1], [0, 0, 1, 1], [], []>} : vector<8x8xbf16>, vector<8x32xbf16>, vector<8x32xf32> -> vector<8x32xf32>
    %112 = arith.addf %92, %111 : vector<8x32xf32>
    %c0_47 = arith.constant 0 : index
    %c0_48 = arith.constant 0 : index
    %113 = vector.load %arg12[%c0_47, %c0_48] : memref<1x32xf32, #tpu.memory_space<vmem>>, vector<1x32xf32>
    %c0_49 = arith.constant 0 : index
    %c0_50 = arith.constant 0 : index
    %114 = vector.load %arg13[%c0_49, %c0_50] : memref<1x32xf32, #tpu.memory_space<vmem>>, vector<1x32xf32>
    %cst_51 = arith.constant dense<0.000000e+00> : vector<8xf32>
    %115 = vector.multi_reduction <add>, %112, %cst_51 [1] : vector<8x32xf32> to vector<8xf32>
    %116 = vector.shape_cast %115 : vector<8xf32> to vector<8x1xf32>
    %cst_52 = arith.constant 3.200000e+01 : f32
    %117 = vector.broadcast %cst_52 : f32 to vector<8x1xf32>
    %118 = arith.divf %116, %117 : vector<8x1xf32>
    %119 = vector.broadcast %118 : vector<8x1xf32> to vector<8x32xf32>
    %120 = arith.subf %112, %119 : vector<8x32xf32>
    %121 = arith.mulf %120, %120 : vector<8x32xf32>
    %cst_53 = arith.constant dense<0.000000e+00> : vector<8xf32>
    %122 = vector.multi_reduction <add>, %121, %cst_53 [1] : vector<8x32xf32> to vector<8xf32>
    %123 = vector.shape_cast %122 : vector<8xf32> to vector<8x1xf32>
    %cst_54 = arith.constant 3.200000e+01 : f32
    %124 = vector.broadcast %cst_54 : f32 to vector<8x1xf32>
    %125 = arith.divf %123, %124 : vector<8x1xf32>
    %126 = vector.broadcast %118 : vector<8x1xf32> to vector<8x32xf32>
    %127 = arith.subf %112, %126 : vector<8x32xf32>
    %cst_55 = arith.constant 9.99999974E-6 : f32
    %128 = vector.broadcast %cst_55 : f32 to vector<8x1xf32>
    %129 = arith.addf %125, %128 : vector<8x1xf32>
    %130 = math.rsqrt %129 : vector<8x1xf32>
    %131 = vector.broadcast %130 : vector<8x1xf32> to vector<8x32xf32>
    %132 = arith.mulf %127, %131 : vector<8x32xf32>
    %133 = vector.broadcast %113 : vector<1x32xf32> to vector<8x32xf32>
    %134 = arith.mulf %132, %133 : vector<8x32xf32>
    %135 = vector.broadcast %114 : vector<1x32xf32> to vector<8x32xf32>
    %136 = arith.addf %134, %135 : vector<8x32xf32>
    %137 = arith.truncf %136 : vector<8x32xf32> to vector<8x32xbf16>
    %c0_56 = arith.constant 0 : index
    %c0_57 = arith.constant 0 : index
    %c0_58 = arith.constant 0 : index
    %138 = vector.load %arg14[%c0_56, %c0_57, %c0_58] : memref<1x8x32xbf16, #tpu.memory_space<vmem>>, vector<1x8x32xbf16>
    %139 = vector.shape_cast %138 : vector<1x8x32xbf16> to vector<8x32xbf16>
    %140 = vector.shape_cast %137 : vector<8x32xbf16> to vector<1x8x32xbf16>
    tpu.vector_store %arg14[%c0_56, %c0_57, %c0_58], %140 {strides = array<i32>} : memref<1x8x32xbf16, #tpu.memory_space<vmem>>, vector<1x8x32xbf16>,
    return
  }
  func.func @transform_0(%arg0: i32, %arg1: i32) -> (i32, i32, i32) {
    %c0_i32 = arith.constant 0 : i32
    %c0_i32_0 = arith.constant 0 : i32
    return %arg0, %arg1, %c0_i32 : i32, i32, i32
  }
  func.func @transform_1(%arg0: i32, %arg1: i32) -> (i32, i32, i32) {
    %c0_i32 = arith.constant 0 : i32
    %c0_i32_0 = arith.constant 0 : i32
    return %arg0, %arg1, %c0_i32 : i32, i32, i32
  }
  func.func @transform_2(%arg0: i32, %arg1: i32) -> (i32, i32) {
    %c0_i32 = arith.constant 0 : i32
    %c0_i32_0 = arith.constant 0 : i32
    %c0_i32_1 = arith.constant 0 : i32
    return %c0_i32, %c0_i32_0 : i32, i32
  }
  func.func @transform_3(%arg0: i32, %arg1: i32) -> (i32, i32) {
    %c0_i32 = arith.constant 0 : i32
    %c0_i32_0 = arith.constant 0 : i32
    %c0_i32_1 = arith.constant 0 : i32
    return %c0_i32, %c0_i32_0 : i32, i32
  }
  func.func @transform_4(%arg0: i32, %arg1: i32) -> (i32, i32) {
    %c0_i32 = arith.constant 0 : i32
    %c0_i32_0 = arith.constant 0 : i32
    %c0_i32_1 = arith.constant 0 : i32
    return %c0_i32, %c0_i32_0 : i32, i32
  }
  func.func @transform_5(%arg0: i32, %arg1: i32) -> (i32, i32) {
    %c0_i32 = arith.constant 0 : i32
    %c0_i32_0 = arith.constant 0 : i32
    %c0_i32_1 = arith.constant 0 : i32
    return %c0_i32, %c0_i32_0 : i32, i32
  }
  func.func @transform_6(%arg0: i32, %arg1: i32) -> (i32, i32) {
    %c0_i32 = arith.constant 0 : i32
    %c0_i32_0 = arith.constant 0 : i32
    %c0_i32_1 = arith.constant 0 : i32
    return %c0_i32, %c0_i32_0 : i32, i32
  }
  func.func @transform_7(%arg0: i32, %arg1: i32) -> (i32, i32) {
    %c0_i32 = arith.constant 0 : i32
    %c0_i32_0 = arith.constant 0 : i32
    %c0_i32_1 = arith.constant 0 : i32
    return %c0_i32, %c0_i32_0 : i32, i32
  }
  func.func @transform_8(%arg0: i32, %arg1: i32) -> (i32, i32) {
    %c0_i32 = arith.constant 0 : i32
    %c0_i32_0 = arith.constant 0 : i32
    %c0_i32_1 = arith.constant 0 : i32
    return %c0_i32, %c0_i32_0 : i32, i32
  }
  func.func @transform_9(%arg0: i32, %arg1: i32) -> (i32, i32) {
    %c0_i32 = arith.constant 0 : i32
    %c0_i32_0 = arith.constant 0 : i32
    %c0_i32_1 = arith.constant 0 : i32
    return %c0_i32, %c0_i32_0 : i32, i32
  }
  func.func @transform_10(%arg0: i32, %arg1: i32) -> (i32, i32) {
    %c0_i32 = arith.constant 0 : i32
    %c0_i32_0 = arith.constant 0 : i32
    %c0_i32_1 = arith.constant 0 : i32
    return %c0_i32, %c0_i32_0 : i32, i32
  }
  func.func @transform_11(%arg0: i32, %arg1: i32) -> (i32, i32) {
    %c0_i32 = arith.constant 0 : i32
    %c0_i32_0 = arith.constant 0 : i32
    %c0_i32_1 = arith.constant 0 : i32
    return %c0_i32, %c0_i32_0 : i32, i32
  }
  func.func @transform_12(%arg0: i32, %arg1: i32) -> (i32, i32, i32) {
    %c0_i32 = arith.constant 0 : i32
    %c0_i32_0 = arith.constant 0 : i32
    return %arg0, %arg1, %c0_i32 : i32, i32, i32
  }
}

module attributes {stable_mosaic.version = 11 : i64} {
  func.func @kernel(%arg0: i32, %arg1: memref<16x32xbf16, #tpu.memory_space<vmem>>, %arg2: memref<32x64xbf16, #tpu.memory_space<vmem>>, %arg3: memref<1x64xf32, #tpu.memory_space<vmem>>, %arg4: memref<64x32xbf16, #tpu.memory_space<vmem>>, %arg5: memref<1x32xf32, #tpu.memory_space<vmem>>, %arg6: memref<1x32xf32, #tpu.memory_space<vmem>>, %arg7: memref<1x32xf32, #tpu.memory_space<vmem>>, %arg8: memref<16x32xbf16, #tpu.memory_space<vmem>>) attributes {dimension_semantics = [#tpu.dimension_semantics<parallel>], iteration_bounds = array<i64: 1>, scalar_prefetch = 0 : i64, scratch_operands = 0 : i64, tpu.core_type = #tpu.core_type<tc>, window_params = [{transform_indices = @transform_0, window_bounds = array<i64: 16, 32>}, {pipeline_mode = #tpu.pipeline_mode<synchronous>, transform_indices = @transform_1, window_bounds = array<i64: 32, 64>}, {pipeline_mode = #tpu.pipeline_mode<synchronous>, transform_indices = @transform_2, window_bounds = array<i64: 1, 64>}, {pipeline_mode = #tpu.pipeline_mode<synchronous>, transform_indices = @transform_3, window_bounds = array<i64: 64, 32>}, {pipeline_mode = #tpu.pipeline_mode<synchronous>, transform_indices = @transform_4, window_bounds = array<i64: 1, 32>}, {pipeline_mode = #tpu.pipeline_mode<synchronous>, transform_indices = @transform_5, window_bounds = array<i64: 1, 32>}, {pipeline_mode = #tpu.pipeline_mode<synchronous>, transform_indices = @transform_6, window_bounds = array<i64: 1, 32>}, {transform_indices = @transform_7, window_bounds = array<i64: 16, 32>}]} {
    %c0 = arith.constant 0 : index
    %c0_0 = arith.constant 0 : index
    %0 = vector.load %arg1[%c0, %c0_0] : memref<16x32xbf16, #tpu.memory_space<vmem>>, vector<16x32xbf16>
    %1 = arith.extf %0 : vector<16x32xbf16> to vector<16x32xf32>
    %2 = arith.truncf %1 : vector<16x32xf32> to vector<16x32xbf16>
    %c0_1 = arith.constant 0 : index
    %c0_2 = arith.constant 0 : index
    %3 = vector.load %arg2[%c0_1, %c0_2] : memref<32x64xbf16, #tpu.memory_space<vmem>>, vector<32x64xbf16>
    %cst = arith.constant dense<0.000000e+00> : vector<16x64xf32>
    %4 = tpu.matmul %2, %3, %cst {dimension_numbers = #tpu.dot_dimension_numbers<[1], [0], [0], [1], [0, 0, 1, 1], [], []>} : vector<16x32xbf16>, vector<32x64xbf16>, vector<16x64xf32> -> vector<16x64xf32>
    %c0_3 = arith.constant 0 : index
    %c0_4 = arith.constant 0 : index
    %5 = vector.load %arg3[%c0_3, %c0_4] : memref<1x64xf32, #tpu.memory_space<vmem>>, vector<1x64xf32>
    %6 = vector.broadcast %5 : vector<1x64xf32> to vector<16x64xf32>
    %7 = arith.addf %4, %6 : vector<16x64xf32>
    %cst_5 = arith.constant 0.000000e+00 : f32
    %8 = vector.broadcast %cst_5 : f32 to vector<16x64xf32>
    %9 = arith.maximumf %7, %8 : vector<16x64xf32>
    %10 = arith.truncf %9 : vector<16x64xf32> to vector<16x64xbf16>
    %c0_6 = arith.constant 0 : index
    %c0_7 = arith.constant 0 : index
    %11 = vector.load %arg4[%c0_6, %c0_7] : memref<64x32xbf16, #tpu.memory_space<vmem>>, vector<64x32xbf16>
    %cst_8 = arith.constant dense<0.000000e+00> : vector<16x32xf32>
    %12 = tpu.matmul %10, %11, %cst_8 {dimension_numbers = #tpu.dot_dimension_numbers<[1], [0], [0], [1], [0, 0, 1, 1], [], []>} : vector<16x64xbf16>, vector<64x32xbf16>, vector<16x32xf32> -> vector<16x32xf32>
    %c0_9 = arith.constant 0 : index
    %c0_10 = arith.constant 0 : index
    %13 = vector.load %arg5[%c0_9, %c0_10] : memref<1x32xf32, #tpu.memory_space<vmem>>, vector<1x32xf32>
    %14 = vector.broadcast %13 : vector<1x32xf32> to vector<16x32xf32>
    %15 = arith.addf %12, %14 : vector<16x32xf32>
    %16 = arith.addf %15, %1 : vector<16x32xf32>
    %c0_11 = arith.constant 0 : index
    %c0_12 = arith.constant 0 : index
    %17 = vector.load %arg6[%c0_11, %c0_12] : memref<1x32xf32, #tpu.memory_space<vmem>>, vector<1x32xf32>
    %c0_13 = arith.constant 0 : index
    %c0_14 = arith.constant 0 : index
    %18 = vector.load %arg7[%c0_13, %c0_14] : memref<1x32xf32, #tpu.memory_space<vmem>>, vector<1x32xf32>
    %cst_15 = arith.constant dense<0.000000e+00> : vector<16xf32>
    %19 = vector.multi_reduction <add>, %16, %cst_15 [1] : vector<16x32xf32> to vector<16xf32>
    %20 = vector.shape_cast %19 : vector<16xf32> to vector<16x1xf32>
    %cst_16 = arith.constant 3.200000e+01 : f32
    %21 = vector.broadcast %cst_16 : f32 to vector<16x1xf32>
    %22 = arith.divf %20, %21 : vector<16x1xf32>
    %23 = vector.broadcast %22 : vector<16x1xf32> to vector<16x32xf32>
    %24 = arith.subf %16, %23 : vector<16x32xf32>
    %25 = arith.mulf %24, %24 : vector<16x32xf32>
    %cst_17 = arith.constant dense<0.000000e+00> : vector<16xf32>
    %26 = vector.multi_reduction <add>, %25, %cst_17 [1] : vector<16x32xf32> to vector<16xf32>
    %27 = vector.shape_cast %26 : vector<16xf32> to vector<16x1xf32>
    %cst_18 = arith.constant 3.200000e+01 : f32
    %28 = vector.broadcast %cst_18 : f32 to vector<16x1xf32>
    %29 = arith.divf %27, %28 : vector<16x1xf32>
    %30 = vector.broadcast %22 : vector<16x1xf32> to vector<16x32xf32>
    %31 = arith.subf %16, %30 : vector<16x32xf32>
    %cst_19 = arith.constant 9.99999974E-6 : f32
    %32 = vector.broadcast %cst_19 : f32 to vector<16x1xf32>
    %33 = arith.addf %29, %32 : vector<16x1xf32>
    %34 = math.rsqrt %33 : vector<16x1xf32>
    %35 = vector.broadcast %34 : vector<16x1xf32> to vector<16x32xf32>
    %36 = arith.mulf %31, %35 : vector<16x32xf32>
    %37 = vector.broadcast %17 : vector<1x32xf32> to vector<16x32xf32>
    %38 = arith.mulf %36, %37 : vector<16x32xf32>
    %39 = vector.broadcast %18 : vector<1x32xf32> to vector<16x32xf32>
    %40 = arith.addf %38, %39 : vector<16x32xf32>
    %41 = arith.truncf %40 : vector<16x32xf32> to vector<16x32xbf16>
    %c0_20 = arith.constant 0 : index
    %c0_21 = arith.constant 0 : index
    %42 = vector.load %arg8[%c0_20, %c0_21] : memref<16x32xbf16, #tpu.memory_space<vmem>>, vector<16x32xbf16>
    tpu.vector_store %arg8[%c0_20, %c0_21], %41 {strides = array<i32>} : memref<16x32xbf16, #tpu.memory_space<vmem>>, vector<16x32xbf16>,
    return
  }
  func.func @transform_0(%arg0: i32) -> (i32, i32) {
    %c0_i32 = arith.constant 0 : i32
    %c0_i32_0 = arith.constant 0 : i32
    return %arg0, %c0_i32 : i32, i32
  }
  func.func @transform_1(%arg0: i32) -> (i32, i32) {
    %c0_i32 = arith.constant 0 : i32
    %c0_i32_0 = arith.constant 0 : i32
    %c0_i32_1 = arith.constant 0 : i32
    return %c0_i32, %c0_i32_0 : i32, i32
  }
  func.func @transform_2(%arg0: i32) -> (i32, i32) {
    %c0_i32 = arith.constant 0 : i32
    %c0_i32_0 = arith.constant 0 : i32
    %c0_i32_1 = arith.constant 0 : i32
    return %c0_i32, %c0_i32_0 : i32, i32
  }
  func.func @transform_3(%arg0: i32) -> (i32, i32) {
    %c0_i32 = arith.constant 0 : i32
    %c0_i32_0 = arith.constant 0 : i32
    %c0_i32_1 = arith.constant 0 : i32
    return %c0_i32, %c0_i32_0 : i32, i32
  }
  func.func @transform_4(%arg0: i32) -> (i32, i32) {
    %c0_i32 = arith.constant 0 : i32
    %c0_i32_0 = arith.constant 0 : i32
    %c0_i32_1 = arith.constant 0 : i32
    return %c0_i32, %c0_i32_0 : i32, i32
  }
  func.func @transform_5(%arg0: i32) -> (i32, i32) {
    %c0_i32 = arith.constant 0 : i32
    %c0_i32_0 = arith.constant 0 : i32
    %c0_i32_1 = arith.constant 0 : i32
    return %c0_i32, %c0_i32_0 : i32, i32
  }
  func.func @transform_6(%arg0: i32) -> (i32, i32) {
    %c0_i32 = arith.constant 0 : i32
    %c0_i32_0 = arith.constant 0 : i32
    %c0_i32_1 = arith.constant 0 : i32
    return %c0_i32, %c0_i32_0 : i32, i32
  }
  func.func @transform_7(%arg0: i32) -> (i32, i32) {
    %c0_i32 = arith.constant 0 : i32
    %c0_i32_0 = arith.constant 0 : i32
    return %arg0, %c0_i32 : i32, i32
  }
}

module attributes {stable_mosaic.version = 11 : i64} {
  func.func @kernel(%arg0: i32, %arg1: i32, %arg2: memref<1x8x32xbf16, #tpu.memory_space<vmem>>, %arg3: memref<1x16x32xbf16, #tpu.memory_space<vmem>>, %arg4: memref<1x8x32xbf16, #tpu.memory_space<vmem>>, %arg5: memref<1x16x32xbf16, #tpu.memory_space<vmem>>, %arg6: memref<32x32xbf16, #tpu.memory_space<vmem>>, %arg7: memref<32x32xbf16, #tpu.memory_space<vmem>>, %arg8: memref<32x32xbf16, #tpu.memory_space<vmem>>, %arg9: memref<32x32xbf16, #tpu.memory_space<vmem>>, %arg10: memref<1x32xf32, #tpu.memory_space<vmem>>, %arg11: memref<1x32xf32, #tpu.memory_space<vmem>>, %arg12: memref<1x32xf32, #tpu.memory_space<vmem>>, %arg13: memref<1x32xf32, #tpu.memory_space<vmem>>, %arg14: memref<1x32xf32, #tpu.memory_space<vmem>>, %arg15: memref<1x32xf32, #tpu.memory_space<vmem>>, %arg16: memref<1x8x32xbf16, #tpu.memory_space<vmem>>) attributes {dimension_semantics = [#tpu.dimension_semantics<parallel>, #tpu.dimension_semantics<parallel>], iteration_bounds = array<i64: 2, 1>, scalar_prefetch = 0 : i64, scratch_operands = 0 : i64, tpu.core_type = #tpu.core_type<tc>, window_params = [{transform_indices = @transform_0, window_bounds = array<i64: 1, 8, 32>}, {transform_indices = @transform_1, window_bounds = array<i64: 1, 16, 32>}, {transform_indices = @transform_2, window_bounds = array<i64: 1, 8, 32>}, {transform_indices = @transform_3, window_bounds = array<i64: 1, 16, 32>}, {pipeline_mode = #tpu.pipeline_mode<synchronous>, transform_indices = @transform_4, window_bounds = array<i64: 32, 32>}, {pipeline_mode = #tpu.pipeline_mode<synchronous>, transform_indices = @transform_5, window_bounds = array<i64: 32, 32>}, {pipeline_mode = #tpu.pipeline_mode<synchronous>, transform_indices = @transform_6, window_bounds = array<i64: 32, 32>}, {pipeline_mode = #tpu.pipeline_mode<synchronous>, transform_indices = @transform_7, window_bounds = array<i64: 32, 32>}, {pipeline_mode = #tpu.pipeline_mode<synchronous>, transform_indices = @transform_8, window_bounds = array<i64: 1, 32>}, {pipeline_mode = #tpu.pipeline_mode<synchronous>, transform_indices = @transform_9, window_bounds = array<i64: 1, 32>}, {pipeline_mode = #tpu.pipeline_mode<synchronous>, transform_indices = @transform_10, window_bounds = array<i64: 1, 32>}, {pipeline_mode = #tpu.pipeline_mode<synchronous>, transform_indices = @transform_11, window_bounds = array<i64: 1, 32>}, {pipeline_mode = #tpu.pipeline_mode<synchronous>, transform_indices = @transform_12, window_bounds = array<i64: 1, 32>}, {pipeline_mode = #tpu.pipeline_mode<synchronous>, transform_indices = @transform_13, window_bounds = array<i64: 1, 32>}, {transform_indices = @transform_14, window_bounds = array<i64: 1, 8, 32>}]} {
    %c0 = arith.constant 0 : index
    %c0_0 = arith.constant 0 : index
    %c0_1 = arith.constant 0 : index
    %0 = vector.load %arg2[%c0, %c0_0, %c0_1] : memref<1x8x32xbf16, #tpu.memory_space<vmem>>, vector<1x8x32xbf16>
    %1 = vector.shape_cast %0 : vector<1x8x32xbf16> to vector<8x32xbf16>
    %2 = arith.extf %1 : vector<8x32xbf16> to vector<8x32xf32>
    %c0_2 = arith.constant 0 : index
    %c0_3 = arith.constant 0 : index
    %c0_4 = arith.constant 0 : index
    %3 = vector.load %arg4[%c0_2, %c0_3, %c0_4] : memref<1x8x32xbf16, #tpu.memory_space<vmem>>, vector<1x8x32xbf16>
    %4 = vector.shape_cast %3 : vector<1x8x32xbf16> to vector<8x32xbf16>
    %5 = arith.extf %4 : vector<8x32xbf16> to vector<8x32xf32>
    %6 = arith.addf %2, %5 : vector<8x32xf32>
    %c0_5 = arith.constant 0 : index
    %c0_6 = arith.constant 0 : index
    %c0_7 = arith.constant 0 : index
    %7 = vector.load %arg3[%c0_5, %c0_6, %c0_7] : memref<1x16x32xbf16, #tpu.memory_space<vmem>>, vector<1x16x32xbf16>
    %8 = vector.shape_cast %7 : vector<1x16x32xbf16> to vector<16x32xbf16>
    %9 = arith.extf %8 : vector<16x32xbf16> to vector<16x32xf32>
    %c0_8 = arith.constant 0 : index
    %c0_9 = arith.constant 0 : index
    %c0_10 = arith.constant 0 : index
    %10 = vector.load %arg5[%c0_8, %c0_9, %c0_10] : memref<1x16x32xbf16, #tpu.memory_space<vmem>>, vector<1x16x32xbf16>
    %11 = vector.shape_cast %10 : vector<1x16x32xbf16> to vector<16x32xbf16>
    %12 = arith.extf %11 : vector<16x32xbf16> to vector<16x32xf32>
    %13 = arith.addf %9, %12 : vector<16x32xf32>
    %14 = arith.truncf %6 : vector<8x32xf32> to vector<8x32xbf16>
    %c0_11 = arith.constant 0 : index
    %c0_12 = arith.constant 0 : index
    %15 = vector.load %arg6[%c0_11, %c0_12] : memref<32x32xbf16, #tpu.memory_space<vmem>>, vector<32x32xbf16>
    %cst = arith.constant dense<0.000000e+00> : vector<8x32xf32>
    %16 = tpu.matmul %14, %15, %cst {dimension_numbers = #tpu.dot_dimension_numbers<[1], [0], [0], [1], [0, 0, 1, 1], [], []>} : vector<8x32xbf16>, vector<32x32xbf16>, vector<8x32xf32> -> vector<8x32xf32>
    %c0_13 = arith.constant 0 : index
    %c0_14 = arith.constant 0 : index
    %17 = vector.load %arg10[%c0_13, %c0_14] : memref<1x32xf32, #tpu.memory_space<vmem>>, vector<1x32xf32>
    %18 = vector.broadcast %17 : vector<1x32xf32> to vector<8x32xf32>
    %19 = arith.addf %16, %18 : vector<8x32xf32>
    %cst_15 = arith.constant 0.353553385 : f32
    %20 = vector.broadcast %cst_15 : f32 to vector<8x32xf32>
    %21 = arith.mulf %19, %20 : vector<8x32xf32>
    %22 = arith.truncf %13 : vector<16x32xf32> to vector<16x32xbf16>
    %c0_16 = arith.constant 0 : index
    %c0_17 = arith.constant 0 : index
    %23 = vector.load %arg7[%c0_16, %c0_17] : memref<32x32xbf16, #tpu.memory_space<vmem>>, vector<32x32xbf16>
    %cst_18 = arith.constant dense<0.000000e+00> : vector<16x32xf32>
    %24 = tpu.matmul %22, %23, %cst_18 {dimension_numbers = #tpu.dot_dimension_numbers<[1], [0], [0], [1], [0, 0, 1, 1], [], []>} : vector<16x32xbf16>, vector<32x32xbf16>, vector<16x32xf32> -> vector<16x32xf32>
    %c0_19 = arith.constant 0 : index
    %c0_20 = arith.constant 0 : index
    %25 = vector.load %arg11[%c0_19, %c0_20] : memref<1x32xf32, #tpu.memory_space<vmem>>, vector<1x32xf32>
    %26 = vector.broadcast %25 : vector<1x32xf32> to vector<16x32xf32>
    %27 = arith.addf %24, %26 : vector<16x32xf32>
    %28 = arith.truncf %9 : vector<16x32xf32> to vector<16x32xbf16>
    %c0_21 = arith.constant 0 : index
    %c0_22 = arith.constant 0 : index
    %29 = vector.load %arg8[%c0_21, %c0_22] : memref<32x32xbf16, #tpu.memory_space<vmem>>, vector<32x32xbf16>
    %cst_23 = arith.constant dense<0.000000e+00> : vector<16x32xf32>
    %30 = tpu.matmul %28, %29, %cst_23 {dimension_numbers = #tpu.dot_dimension_numbers<[1], [0], [0], [1], [0, 0, 1, 1], [], []>} : vector<16x32xbf16>, vector<32x32xbf16>, vector<16x32xf32> -> vector<16x32xf32>
    %c0_24 = arith.constant 0 : index
    %c0_25 = arith.constant 0 : index
    %31 = vector.load %arg12[%c0_24, %c0_25] : memref<1x32xf32, #tpu.memory_space<vmem>>, vector<1x32xf32>
    %32 = vector.broadcast %31 : vector<1x32xf32> to vector<16x32xf32>
    %33 = arith.addf %30, %32 : vector<16x32xf32>
    %34 = arith.truncf %21 : vector<8x32xf32> to vector<8x32xbf16>
    %35 = arith.truncf %27 : vector<16x32xf32> to vector<16x32xbf16>
    %36 = arith.truncf %33 : vector<16x32xf32> to vector<16x32xbf16>
    %c0_26 = arith.constant 0 : index
    %c0_27 = arith.constant 0 : index
    %37 = vector.load %arg13[%c0_26, %c0_27] : memref<1x32xf32, #tpu.memory_space<vmem>>, vector<1x32xf32>
    %38 = vector.broadcast %37 : vector<1x32xf32> to vector<8x32xf32>
    %39 = arith.addf %2, %38 : vector<8x32xf32>
    %40 = vector.extract_strided_slice %34 {offsets = [0, 0], sizes = [8, 8], strides = [1, 1]} : vector<8x32xbf16> to vector<8x8xbf16>
    %41 = vector.extract_strided_slice %35 {offsets = [0, 0], sizes = [16, 8], strides = [1, 1]} : vector<16x32xbf16> to vector<16x8xbf16>
    %cst_28 = arith.constant dense<0.000000e+00> : vector<8x16xf32>
    %42 = tpu.matmul %40, %41, %cst_28 {dimension_numbers = #tpu.dot_dimension_numbers<[1], [1], [0], [0], [0, 0, 1, 0], [], []>} : vector<8x8xbf16>, vector<16x8xbf16>, vector<8x16xf32> -> vector<8x16xf32>
    %cst_29 = arith.constant dense<0xFF800000> : vector<8xf32>
    %43 = vector.multi_reduction <maximumf>, %42, %cst_29 [1] : vector<8x16xf32> to vector<8xf32>
    %44 = vector.shape_cast %43 : vector<8xf32> to vector<8x1xf32>
    %45 = vector.broadcast %44 : vector<8x1xf32> to vector<8x16xf32>
    %46 = arith.subf %42, %45 : vector<8x16xf32>
    %47 = math.exp %46 : vector<8x16xf32>
    %cst_30 = arith.constant dense<0.000000e+00> : vector<8xf32>
    %48 = vector.multi_reduction <add>, %47, %cst_30 [1] : vector<8x16xf32> to vector<8xf32>
    %49 = vector.shape_cast %48 : vector<8xf32> to vector<8x1xf32>
    %50 = tpu.reciprocal %49 {approx = true} : vector<8x1xf32> -> vector<8x1xf32>
    %51 = vector.broadcast %50 : vector<8x1xf32> to vector<8x16xf32>
    %52 = arith.mulf %47, %51 : vector<8x16xf32>
    %53 = arith.truncf %52 : vector<8x16xf32> to vector<8x16xbf16>
    %54 = vector.extract_strided_slice %36 {offsets = [0, 0], sizes = [16, 8], strides = [1, 1]} : vector<16x32xbf16> to vector<16x8xbf16>
    %cst_31 = arith.constant dense<0.000000e+00> : vector<8x8xf32>
    %55 = tpu.matmul %53, %54, %cst_31 {dimension_numbers = #tpu.dot_dimension_numbers<[1], [0], [0], [1], [0, 0, 1, 1], [], []>} : vector<8x16xbf16>, vector<16x8xbf16>, vector<8x8xf32> -> vector<8x8xf32>
    %56 = arith.truncf %55 : vector<8x8xf32> to vector<8x8xbf16>
    %c0_32 = arith.constant 0 : index
    %c0_33 = arith.constant 0 : index
    %57 = vector.load %arg9[%c0_32, %c0_33] : memref<32x32xbf16, #tpu.memory_space<vmem>>, vector<8x32xbf16>
    %cst_34 = arith.constant dense<0.000000e+00> : vector<8x32xf32>
    %58 = tpu.matmul %56, %57, %cst_34 {dimension_numbers = #tpu.dot_dimension_numbers<[1], [0], [0], [1], [0, 0, 1, 1], [], []>} : vector<8x8xbf16>, vector<8x32xbf16>, vector<8x32xf32> -> vector<8x32xf32>
    %59 = arith.addf %39, %58 : vector<8x32xf32>
    %60 = vector.extract_strided_slice %34 {offsets = [0, 8], sizes = [8, 8], strides = [1, 1]} : vector<8x32xbf16> to vector<8x8xbf16>
    %61 = vector.extract_strided_slice %35 {offsets = [0, 8], sizes = [16, 8], strides = [1, 1]} : vector<16x32xbf16> to vector<16x8xbf16>
    %cst_35 = arith.constant dense<0.000000e+00> : vector<8x16xf32>
    %62 = tpu.matmul %60, %61, %cst_35 {dimension_numbers = #tpu.dot_dimension_numbers<[1], [1], [0], [0], [0, 0, 1, 0], [], []>} : vector<8x8xbf16>, vector<16x8xbf16>, vector<8x16xf32> -> vector<8x16xf32>
    %cst_36 = arith.constant dense<0xFF800000> : vector<8xf32>
    %63 = vector.multi_reduction <maximumf>, %62, %cst_36 [1] : vector<8x16xf32> to vector<8xf32>
    %64 = vector.shape_cast %63 : vector<8xf32> to vector<8x1xf32>
    %65 = vector.broadcast %64 : vector<8x1xf32> to vector<8x16xf32>
    %66 = arith.subf %62, %65 : vector<8x16xf32>
    %67 = math.exp %66 : vector<8x16xf32>
    %cst_37 = arith.constant dense<0.000000e+00> : vector<8xf32>
    %68 = vector.multi_reduction <add>, %67, %cst_37 [1] : vector<8x16xf32> to vector<8xf32>
    %69 = vector.shape_cast %68 : vector<8xf32> to vector<8x1xf32>
    %70 = tpu.reciprocal %69 {approx = true} : vector<8x1xf32> -> vector<8x1xf32>
    %71 = vector.broadcast %70 : vector<8x1xf32> to vector<8x16xf32>
    %72 = arith.mulf %67, %71 : vector<8x16xf32>
    %73 = arith.truncf %72 : vector<8x16xf32> to vector<8x16xbf16>
    %74 = vector.extract_strided_slice %36 {offsets = [0, 8], sizes = [16, 8], strides = [1, 1]} : vector<16x32xbf16> to vector<16x8xbf16>
    %cst_38 = arith.constant dense<0.000000e+00> : vector<8x8xf32>
    %75 = tpu.matmul %73, %74, %cst_38 {dimension_numbers = #tpu.dot_dimension_numbers<[1], [0], [0], [1], [0, 0, 1, 1], [], []>} : vector<8x16xbf16>, vector<16x8xbf16>, vector<8x8xf32> -> vector<8x8xf32>
    %76 = arith.truncf %75 : vector<8x8xf32> to vector<8x8xbf16>
    %c8 = arith.constant 8 : index
    %c0_39 = arith.constant 0 : index
    %77 = vector.load %arg9[%c8, %c0_39] : memref<32x32xbf16, #tpu.memory_space<vmem>>, vector<8x32xbf16>
    %cst_40 = arith.constant dense<0.000000e+00> : vector<8x32xf32>
    %78 = tpu.matmul %76, %77, %cst_40 {dimension_numbers = #tpu.dot_dimension_numbers<[1], [0], [0], [1], [0, 0, 1, 1], [], []>} : vector<8x8xbf16>, vector<8x32xbf16>, vector<8x32xf32> -> vector<8x32xf32>
    %79 = arith.addf %59, %78 : vector<8x32xf32>
    %80 = vector.extract_strided_slice %34 {offsets = [0, 16], sizes = [8, 8], strides = [1, 1]} : vector<8x32xbf16> to vector<8x8xbf16>
    %81 = vector.extract_strided_slice %35 {offsets = [0, 16], sizes = [16, 8], strides = [1, 1]} : vector<16x32xbf16> to vector<16x8xbf16>
    %cst_41 = arith.constant dense<0.000000e+00> : vector<8x16xf32>
    %82 = tpu.matmul %80, %81, %cst_41 {dimension_numbers = #tpu.dot_dimension_numbers<[1], [1], [0], [0], [0, 0, 1, 0], [], []>} : vector<8x8xbf16>, vector<16x8xbf16>, vector<8x16xf32> -> vector<8x16xf32>
    %cst_42 = arith.constant dense<0xFF800000> : vector<8xf32>
    %83 = vector.multi_reduction <maximumf>, %82, %cst_42 [1] : vector<8x16xf32> to vector<8xf32>
    %84 = vector.shape_cast %83 : vector<8xf32> to vector<8x1xf32>
    %85 = vector.broadcast %84 : vector<8x1xf32> to vector<8x16xf32>
    %86 = arith.subf %82, %85 : vector<8x16xf32>
    %87 = math.exp %86 : vector<8x16xf32>
    %cst_43 = arith.constant dense<0.000000e+00> : vector<8xf32>
    %88 = vector.multi_reduction <add>, %87, %cst_43 [1] : vector<8x16xf32> to vector<8xf32>
    %89 = vector.shape_cast %88 : vector<8xf32> to vector<8x1xf32>
    %90 = tpu.reciprocal %89 {approx = true} : vector<8x1xf32> -> vector<8x1xf32>
    %91 = vector.broadcast %90 : vector<8x1xf32> to vector<8x16xf32>
    %92 = arith.mulf %87, %91 : vector<8x16xf32>
    %93 = arith.truncf %92 : vector<8x16xf32> to vector<8x16xbf16>
    %94 = vector.extract_strided_slice %36 {offsets = [0, 16], sizes = [16, 8], strides = [1, 1]} : vector<16x32xbf16> to vector<16x8xbf16>
    %cst_44 = arith.constant dense<0.000000e+00> : vector<8x8xf32>
    %95 = tpu.matmul %93, %94, %cst_44 {dimension_numbers = #tpu.dot_dimension_numbers<[1], [0], [0], [1], [0, 0, 1, 1], [], []>} : vector<8x16xbf16>, vector<16x8xbf16>, vector<8x8xf32> -> vector<8x8xf32>
    %96 = arith.truncf %95 : vector<8x8xf32> to vector<8x8xbf16>
    %c16 = arith.constant 16 : index
    %c0_45 = arith.constant 0 : index
    %97 = vector.load %arg9[%c16, %c0_45] : memref<32x32xbf16, #tpu.memory_space<vmem>>, vector<8x32xbf16>
    %cst_46 = arith.constant dense<0.000000e+00> : vector<8x32xf32>
    %98 = tpu.matmul %96, %97, %cst_46 {dimension_numbers = #tpu.dot_dimension_numbers<[1], [0], [0], [1], [0, 0, 1, 1], [], []>} : vector<8x8xbf16>, vector<8x32xbf16>, vector<8x32xf32> -> vector<8x32xf32>
    %99 = arith.addf %79, %98 : vector<8x32xf32>
    %100 = vector.extract_strided_slice %34 {offsets = [0, 24], sizes = [8, 8], strides = [1, 1]} : vector<8x32xbf16> to vector<8x8xbf16>
    %101 = vector.extract_strided_slice %35 {offsets = [0, 24], sizes = [16, 8], strides = [1, 1]} : vector<16x32xbf16> to vector<16x8xbf16>
    %cst_47 = arith.constant dense<0.000000e+00> : vector<8x16xf32>
    %102 = tpu.matmul %100, %101, %cst_47 {dimension_numbers = #tpu.dot_dimension_numbers<[1], [1], [0], [0], [0, 0, 1, 0], [], []>} : vector<8x8xbf16>, vector<16x8xbf16>, vector<8x16xf32> -> vector<8x16xf32>
    %cst_48 = arith.constant dense<0xFF800000> : vector<8xf32>
    %103 = vector.multi_reduction <maximumf>, %102, %cst_48 [1] : vector<8x16xf32> to vector<8xf32>
    %104 = vector.shape_cast %103 : vector<8xf32> to vector<8x1xf32>
    %105 = vector.broadcast %104 : vector<8x1xf32> to vector<8x16xf32>
    %106 = arith.subf %102, %105 : vector<8x16xf32>
    %107 = math.exp %106 : vector<8x16xf32>
    %cst_49 = arith.constant dense<0.000000e+00> : vector<8xf32>
    %108 = vector.multi_reduction <add>, %107, %cst_49 [1] : vector<8x16xf32> to vector<8xf32>
    %109 = vector.shape_cast %108 : vector<8xf32> to vector<8x1xf32>
    %110 = tpu.reciprocal %109 {approx = true} : vector<8x1xf32> -> vector<8x1xf32>
    %111 = vector.broadcast %110 : vector<8x1xf32> to vector<8x16xf32>
    %112 = arith.mulf %107, %111 : vector<8x16xf32>
    %113 = arith.truncf %112 : vector<8x16xf32> to vector<8x16xbf16>
    %114 = vector.extract_strided_slice %36 {offsets = [0, 24], sizes = [16, 8], strides = [1, 1]} : vector<16x32xbf16> to vector<16x8xbf16>
    %cst_50 = arith.constant dense<0.000000e+00> : vector<8x8xf32>
    %115 = tpu.matmul %113, %114, %cst_50 {dimension_numbers = #tpu.dot_dimension_numbers<[1], [0], [0], [1], [0, 0, 1, 1], [], []>} : vector<8x16xbf16>, vector<16x8xbf16>, vector<8x8xf32> -> vector<8x8xf32>
    %116 = arith.truncf %115 : vector<8x8xf32> to vector<8x8xbf16>
    %c24 = arith.constant 24 : index
    %c0_51 = arith.constant 0 : index
    %117 = vector.load %arg9[%c24, %c0_51] : memref<32x32xbf16, #tpu.memory_space<vmem>>, vector<8x32xbf16>
    %cst_52 = arith.constant dense<0.000000e+00> : vector<8x32xf32>
    %118 = tpu.matmul %116, %117, %cst_52 {dimension_numbers = #tpu.dot_dimension_numbers<[1], [0], [0], [1], [0, 0, 1, 1], [], []>} : vector<8x8xbf16>, vector<8x32xbf16>, vector<8x32xf32> -> vector<8x32xf32>
    %119 = arith.addf %99, %118 : vector<8x32xf32>
    %c0_53 = arith.constant 0 : index
    %c0_54 = arith.constant 0 : index
    %120 = vector.load %arg14[%c0_53, %c0_54] : memref<1x32xf32, #tpu.memory_space<vmem>>, vector<1x32xf32>
    %c0_55 = arith.constant 0 : index
    %c0_56 = arith.constant 0 : index
    %121 = vector.load %arg15[%c0_55, %c0_56] : memref<1x32xf32, #tpu.memory_space<vmem>>, vector<1x32xf32>
    %cst_57 = arith.constant dense<0.000000e+00> : vector<8xf32>
    %122 = vector.multi_reduction <add>, %119, %cst_57 [1] : vector<8x32xf32> to vector<8xf32>
    %123 = vector.shape_cast %122 : vector<8xf32> to vector<8x1xf32>
    %cst_58 = arith.constant 3.200000e+01 : f32
    %124 = vector.broadcast %cst_58 : f32 to vector<8x1xf32>
    %125 = arith.divf %123, %124 : vector<8x1xf32>
    %126 = vector.broadcast %125 : vector<8x1xf32> to vector<8x32xf32>
    %127 = arith.subf %119, %126 : vector<8x32xf32>
    %128 = arith.mulf %127, %127 : vector<8x32xf32>
    %cst_59 = arith.constant dense<0.000000e+00> : vector<8xf32>
    %129 = vector.multi_reduction <add>, %128, %cst_59 [1] : vector<8x32xf32> to vector<8xf32>
    %130 = vector.shape_cast %129 : vector<8xf32> to vector<8x1xf32>
    %cst_60 = arith.constant 3.200000e+01 : f32
    %131 = vector.broadcast %cst_60 : f32 to vector<8x1xf32>
    %132 = arith.divf %130, %131 : vector<8x1xf32>
    %133 = vector.broadcast %125 : vector<8x1xf32> to vector<8x32xf32>
    %134 = arith.subf %119, %133 : vector<8x32xf32>
    %cst_61 = arith.constant 9.99999974E-6 : f32
    %135 = vector.broadcast %cst_61 : f32 to vector<8x1xf32>
    %136 = arith.addf %132, %135 : vector<8x1xf32>
    %137 = math.rsqrt %136 : vector<8x1xf32>
    %138 = vector.broadcast %137 : vector<8x1xf32> to vector<8x32xf32>
    %139 = arith.mulf %134, %138 : vector<8x32xf32>
    %140 = vector.broadcast %120 : vector<1x32xf32> to vector<8x32xf32>
    %141 = arith.mulf %139, %140 : vector<8x32xf32>
    %142 = vector.broadcast %121 : vector<1x32xf32> to vector<8x32xf32>
    %143 = arith.addf %141, %142 : vector<8x32xf32>
    %144 = arith.truncf %143 : vector<8x32xf32> to vector<8x32xbf16>
    %c0_62 = arith.constant 0 : index
    %c0_63 = arith.constant 0 : index
    %c0_64 = arith.constant 0 : index
    %145 = vector.load %arg16[%c0_62, %c0_63, %c0_64] : memref<1x8x32xbf16, #tpu.memory_space<vmem>>, vector<1x8x32xbf16>
    %146 = vector.shape_cast %145 : vector<1x8x32xbf16> to vector<8x32xbf16>
    %147 = vector.shape_cast %144 : vector<8x32xbf16> to vector<1x8x32xbf16>
    tpu.vector_store %arg16[%c0_62, %c0_63, %c0_64], %147 {strides = array<i32>} : memref<1x8x32xbf16, #tpu.memory_space<vmem>>, vector<1x8x32xbf16>,
    return
  }
  func.func @transform_0(%arg0: i32, %arg1: i32) -> (i32, i32, i32) {
    %c0_i32 = arith.constant 0 : i32
    %c0_i32_0 = arith.constant 0 : i32
    return %arg0, %arg1, %c0_i32 : i32, i32, i32
  }
  func.func @transform_1(%arg0: i32, %arg1: i32) -> (i32, i32, i32) {
    %c0_i32 = arith.constant 0 : i32
    %c0_i32_0 = arith.constant 0 : i32
    %c0_i32_1 = arith.constant 0 : i32
    return %arg0, %c0_i32, %c0_i32_0 : i32, i32, i32
  }
  func.func @transform_2(%arg0: i32, %arg1: i32) -> (i32, i32, i32) {
    %c0_i32 = arith.constant 0 : i32
    %c0_i32_0 = arith.constant 0 : i32
    return %arg0, %arg1, %c0_i32 : i32, i32, i32
  }
  func.func @transform_3(%arg0: i32, %arg1: i32) -> (i32, i32, i32) {
    %c0_i32 = arith.constant 0 : i32
    %c0_i32_0 = arith.constant 0 : i32
    %c0_i32_1 = arith.constant 0 : i32
    return %arg0, %c0_i32, %c0_i32_0 : i32, i32, i32
  }
  func.func @transform_4(%arg0: i32, %arg1: i32) -> (i32, i32) {
    %c0_i32 = arith.constant 0 : i32
    %c0_i32_0 = arith.constant 0 : i32
    %c0_i32_1 = arith.constant 0 : i32
    return %c0_i32, %c0_i32_0 : i32, i32
  }
  func.func @transform_5(%arg0: i32, %arg1: i32) -> (i32, i32) {
    %c0_i32 = arith.constant 0 : i32
    %c0_i32_0 = arith.constant 0 : i32
    %c0_i32_1 = arith.constant 0 : i32
    return %c0_i32, %c0_i32_0 : i32, i32
  }
  func.func @transform_6(%arg0: i32, %arg1: i32) -> (i32, i32) {
    %c0_i32 = arith.constant 0 : i32
    %c0_i32_0 = arith.constant 0 : i32
    %c0_i32_1 = arith.constant 0 : i32
    return %c0_i32, %c0_i32_0 : i32, i32
  }
  func.func @transform_7(%arg0: i32, %arg1: i32) -> (i32, i32) {
    %c0_i32 = arith.constant 0 : i32
    %c0_i32_0 = arith.constant 0 : i32
    %c0_i32_1 = arith.constant 0 : i32
    return %c0_i32, %c0_i32_0 : i32, i32
  }
  func.func @transform_8(%arg0: i32, %arg1: i32) -> (i32, i32) {
    %c0_i32 = arith.constant 0 : i32
    %c0_i32_0 = arith.constant 0 : i32
    %c0_i32_1 = arith.constant 0 : i32
    return %c0_i32, %c0_i32_0 : i32, i32
  }
  func.func @transform_9(%arg0: i32, %arg1: i32) -> (i32, i32) {
    %c0_i32 = arith.constant 0 : i32
    %c0_i32_0 = arith.constant 0 : i32
    %c0_i32_1 = arith.constant 0 : i32
    return %c0_i32, %c0_i32_0 : i32, i32
  }
  func.func @transform_10(%arg0: i32, %arg1: i32) -> (i32, i32) {
    %c0_i32 = arith.constant 0 : i32
    %c0_i32_0 = arith.constant 0 : i32
    %c0_i32_1 = arith.constant 0 : i32
    return %c0_i32, %c0_i32_0 : i32, i32
  }
  func.func @transform_11(%arg0: i32, %arg1: i32) -> (i32, i32) {
    %c0_i32 = arith.constant 0 : i32
    %c0_i32_0 = arith.constant 0 : i32
    %c0_i32_1 = arith.constant 0 : i32
    return %c0_i32, %c0_i32_0 : i32, i32
  }
  func.func @transform_12(%arg0: i32, %arg1: i32) -> (i32, i32) {
    %c0_i32 = arith.constant 0 : i32
    %c0_i32_0 = arith.constant 0 : i32
    %c0_i32_1 = arith.constant 0 : i32
    return %c0_i32, %c0_i32_0 : i32, i32
  }
  func.func @transform_13(%arg0: i32, %arg1: i32) -> (i32, i32) {
    %c0_i32 = arith.constant 0 : i32
    %c0_i32_0 = arith.constant 0 : i32
    %c0_i32_1 = arith.constant 0 : i32
    return %c0_i32, %c0_i32_0 : i32, i32
  }
  func.func @transform_14(%arg0: i32, %arg1: i32) -> (i32, i32, i32) {
    %c0_i32 = arith.constant 0 : i32
    %c0_i32_0 = arith.constant 0 : i32
    return %arg0, %arg1, %c0_i32 : i32, i32, i32
  }
}

</mosaic_0001>

<llo_original>
// kernel: _lambda_.5
$region0: #{_lambda_.5}
  #allocation0 [shape = 'u32[]', space=smem, size = 0x4, offset = 0x4, fixed_abs, tag = 'smem constant byte address 0x4 - core index']
  #allocation1 [shape = 'u32[72,128]{1,0:T(1,128)}', space=vmem, size = 0x9000, scoped, tag = 'internal scratch']
  %s0 = inlined_call_operand.vmem [shape: bf16[16,32], index: 0, kind: input, shape index: {}]
  %s1 = inlined_call_operand.vmem [shape: bf16[32,64], index: 1, kind: input, shape index: {}]
  %s2 = inlined_call_operand.vmem [shape: f32[1,64], index: 2, kind: input, shape index: {}]
  %s3 = inlined_call_operand.vmem [shape: bf16[64,32], index: 3, kind: input, shape index: {}]
  %s4 = inlined_call_operand.vmem [shape: f32[1,32], index: 4, kind: input, shape index: {}]
  %s5 = inlined_call_operand.vmem [shape: f32[1,32], index: 5, kind: input, shape index: {}]
  %s6 = inlined_call_operand.vmem [shape: f32[1,32], index: 6, kind: input, shape index: {}]
  %s7 = inlined_call_operand.vmem [shape: bf16[16,32], index: 7, kind: output, shape index: {}]
  %s8 = sld [smem:[#allocation0]]
  $region38: #{_lambda_.5} parent=0
    _
  %s10 = ssub.s32 1, %s8
  %s11 = scalar_select 0, %s10, %s8
  // Predicated region
  $region2: #{_lambda_.5} parent=0 // pred_check
    _
  $region3: #{_lambda_.5} parent=0 // pred_check_branch
    %13 = sbr.rel (0) target = $region5
  $region4: #{_lambda_.5} parent=0 // pred_region
    _
  $region5: #{_lambda_.5} parent=0 // pred_fallthru
    _
  // Predicated region
  $region6: #{_lambda_.5} parent=0 // pred_check
    _
  $region7: #{_lambda_.5} parent=0 // pred_check_branch
    %15 = sbr.rel (0) target = $region9
  $region8: #{_lambda_.5} parent=0 // pred_region
    _
  $region9: #{_lambda_.5} parent=0 // pred_fallthru
    _
  // Predicated region
  $region10: #{_lambda_.5} parent=0 // pred_check
    _
  $region11: #{_lambda_.5} parent=0 // pred_check_branch
    %17 = sbr.rel (0) target = $region13
  $region12: #{_lambda_.5} parent=0 // pred_region
    _
  $region13: #{_lambda_.5} parent=0 // pred_fallthru
    _
  // Predicated region
  $region14: #{_lambda_.5} parent=0 // pred_check
    _
  $region15: #{_lambda_.5} parent=0 // pred_check_branch
    %19 = sbr.rel (0) target = $region17
  $region16: #{_lambda_.5} parent=0 // pred_region
    _
  $region17: #{_lambda_.5} parent=0 // pred_fallthru
    _
  // Predicated region
  $region18: #{_lambda_.5} parent=0 // pred_check
    _
  $region19: #{_lambda_.5} parent=0 // pred_check_branch
    %21 = sbr.rel (0) target = $region21
  $region20: #{_lambda_.5} parent=0 // pred_region
    _
  $region21: #{_lambda_.5} parent=0 // pred_fallthru
    _
  // Predicated region
  $region22: #{_lambda_.5} parent=0 // pred_check
    _
  $region23: #{_lambda_.5} parent=0 // pred_check_branch
    %23 = sbr.rel (0) target = $region25
  $region24: #{_lambda_.5} parent=0 // pred_region
    _
  $region25: #{_lambda_.5} parent=0 // pred_fallthru
    _
  // Predicated region
  $region26: #{_lambda_.5} parent=0 // pred_check
    _
  $region27: #{_lambda_.5} parent=0 // pred_check_branch
    %25 = sbr.rel (0) target = $region29
  $region28: #{_lambda_.5} parent=0 // pred_region
    _
  $region29: #{_lambda_.5} parent=0 // pred_fallthru
    _
  %v27 = vld [vmem:[%s0] sm:$0xf]
  %v28 = vld [vmem:[%s0 + $0x4] sm:$0xf]
  %v29 = vunpack.c.l.bf16 %v27
  %v30 = vunpack.c.l.bf16 %v28
  %v31 = vld [vmem:[%s1] sm:$0xf]
  %v32 = vld [vmem:[%s1 + $0x4] sm:$0xf]
  %v33 = vld [vmem:[%s1 + $0x8] sm:$0xf]
  %v34 = vld [vmem:[%s1 + $0xc] sm:$0xf]
  %v35 = vld [vmem:[%s2] sm:$0x1]
  %v37 = vperm.slane %v35, 0
  %v41 = vunpack.c.l.b16 %v27
  %v42 = vunpack.c.l.b16 %v28
  %v43 = vpack.c.b16 %v42, %v41
  %v48 = vunpack.c.l.b16 %v31
  %v49 = vunpack.c.l.b16 %v32
  %v50 = vunpack.c.l.b16 %v33
  %v51 = vunpack.c.l.b16 %v34
  %v52 = vpack.c.b16 %v49, %v48
  %v53 = vpack.c.b16 %v51, %v50
  %vm56 = vcmask 261120
  %v58 = vsel %vm56, %v43, 0
  %60 = vmatpush.bf16.msra.mxu0 0
  %61 = vmatpush.bf16.msra.mxu0 0
  %62 = vmatpush.bf16.msra.mxu0 0
  %63 = vmatpush.bf16.msra.mxu0 0
  %64 = vmatpush.bf16.msra.mxu0 0
  %65 = vmatpush.bf16.msra.mxu0 0
  %66 = vmatpush.bf16.msra.mxu0 %v53
  %67 = vmatpush.bf16.msra.mxu0 %v52
  %68 = vmatmul.bf16.gmra.mxu0 %v58
  %v69 = vpop.f32.mrf.mxu0
  %v70 = vadd.f32 %v37, %v69
  %v71 = vpop.f32.mrf.mxu0
  %v72 = vadd.f32 %v37, %v71
  %73 = vdwg.mxu0
  %v74 = vmax.f32 %v70, 0.0
  %v75 = vmax.f32 %v72, 0.0
  %v76 = vpack.c.bf16 %v75, %v74
  %v77 = vld [vmem:[%s3] sm:$0xf]
  %v78 = vld [vmem:[%s3 + $0x4] sm:$0xf]
  %v79 = vld [vmem:[%s3 + $0x8] sm:$0xf]
  %v80 = vld [vmem:[%s3 + $0xc] sm:$0xf]
  %v81 = vld [vmem:[%s3 + $0x10] sm:$0xf]
  %v82 = vld [vmem:[%s3 + $0x14] sm:$0xf]
  %v83 = vld [vmem:[%s3 + $0x18] sm:$0xf]
  %v84 = vld [vmem:[%s3 + $0x1c] sm:$0xf]
  %v85 = vld [vmem:[%s4] sm:$0x1]
  %v87 = vperm.slane %v85, 0
  %v97 = vunpack.c.l.b16 %v77
  %v98 = vunpack.c.l.b16 %v78
  %v99 = vunpack.c.l.b16 %v79
  %v100 = vunpack.c.l.b16 %v80
  %v101 = vunpack.c.l.b16 %v81
  %v102 = vunpack.c.l.b16 %v82
  %v103 = vunpack.c.l.b16 %v83
  %v104 = vunpack.c.l.b16 %v84
  %v105 = vpack.c.b16 %v98, %v97
  %v106 = vpack.c.b16 %v100, %v99
  %v107 = vpack.c.b16 %v102, %v101
  %v108 = vpack.c.b16 %v104, %v103
  %vm113 = vcmask 523264
  %v115 = vsel %vm113, %v76, 0
  %117 = vmatpush.bf16.msra.mxu0 0
  %118 = vmatpush.bf16.msra.mxu0 0
  %119 = vmatpush.bf16.msra.mxu0 0
  %120 = vmatpush.bf16.msra.mxu0 0
  %121 = vmatpush.bf16.msra.mxu0 %v108
  %122 = vmatpush.bf16.msra.mxu0 %v107
  %123 = vmatpush.bf16.msra.mxu0 %v106
  %124 = vmatpush.bf16.msra.mxu0 %v105
  %125 = vmatmul.bf16.gmra.mxu0 %v115
  %v126 = vpop.f32.mrf.mxu0
  %v127 = vadd.f32 %v87, %v126
  %v128 = vpop.f32.mrf.mxu0
  %v129 = vadd.f32 %v87, %v128
  %130 = vdwg.mxu0
  %v131 = vadd.f32 %v127, %v29
  %v132 = vadd.f32 %v129, %v30
  %v133 = vld [vmem:[%s5] sm:$0x1]
  %v134 = vld [vmem:[%s6] sm:$0x1]
  %v135 = vsel %vm56, %v131, 0.0
  %136 = vadd.xlane.f32.xlu0 %v135
  %v137 = vpop.xlane.xlu0 %136
  %v138 = vsel %vm56, %v132, 0.0
  %139 = vadd.xlane.f32.xlu0 %v138
  %v140 = vpop.xlane.xlu0 %139
  %v141 = vrcp.pop 32.0
  %v142 = vmul.f32 32.0, %v141
  %v143 = vsub.f32 1.0, %v142
  %v144 = vmul.f32 %v141, %v143
  %v145 = vadd.f32 %v141, %v144
  %vm146 = vweird.f32 %v141
  %v147 = vsel %vm146, %v141, %v145
  %v148 = vmul.f32 %v137, %v147
  %v149 = vmul.f32 %v140, %v147
  %v150 = vsub.f32 %v131, %v148
  %v151 = vsub.f32 %v132, %v149
  %v152 = vmul.f32 %v150, %v150
  %v153 = vmul.f32 %v151, %v151
  %v154 = vsel %vm56, %v152, 0.0
  %155 = vadd.xlane.f32.xlu0 %v154
  %v156 = vpop.xlane.xlu0 %155
  %v157 = vsel %vm56, %v153, 0.0
  %158 = vadd.xlane.f32.xlu0 %v157
  %v159 = vpop.xlane.xlu0 %158
  %v160 = vmul.f32 %v156, %v147
  %v161 = vmul.f32 %v159, %v147
  %v162 = vadd.f32 %v160, 1e-05
  %v163 = vadd.f32 %v161, 1e-05
  %v164 = vrsqrt.pop %v162
  %v165 = vmul.f32 %v164, %v162
  %v166 = vmul.f32 %v165, %v164
  %v167 = vmul.f32 0.5, %v166
  %v168 = vsub.f32 1.5, %v167
  %v169 = vmul.f32 %v164, %v168
  %vm170 = vweird.f32 %v162
  %vm171 = vweird.f32 %v164
  %vm172 = vmor %vm170, %vm171
  %v173 = vsel %vm172, %v164, %v169
  %v174 = vrsqrt.pop %v163
  %v175 = vmul.f32 %v174, %v163
  %v176 = vmul.f32 %v175, %v174
  %v177 = vmul.f32 0.5, %v176
  %v178 = vsub.f32 1.5, %v177
  %v179 = vmul.f32 %v174, %v178
  %vm180 = vweird.f32 %v163
  %vm181 = vweird.f32 %v174
  %vm182 = vmor %vm180, %vm181
  %v183 = vsel %vm182, %v174, %v179
  %v184 = vmul.f32 %v150, %v173
  %v185 = vmul.f32 %v151, %v183
  %v187 = vperm.slane %v133, 0
  %v189 = vmul.f32 %v184, %v187
  %v190 = vmul.f32 %v185, %v187
  %v192 = vperm.slane %v134, 0
  %v194 = vadd.f32 %v189, %v192
  %v195 = vadd.f32 %v190, %v192
  %v196 = vpack.c.bf16 %v194, %v194
  %v197 = vpack.c.bf16 %v195, %v195
  %vm198 = vcmask 257024
  %199 = vst.msk [vmem:[%s7] sm:$0xf] %vm198, %v196
  %200 = vst.msk [vmem:[%s7 + $0x4] sm:$0xf] %vm198, %v197
  // Predicated region
  $region30: #{_lambda_.5} parent=0 // pred_check
    _
  $region31: #{_lambda_.5} parent=0 // pred_check_branch
    %202 = sbr.rel (0) target = $region33
  $region32: #{_lambda_.5} parent=0 // pred_region
    _
  $region33: #{_lambda_.5} parent=0 // pred_fallthru
    _
  // Predicated region
  $region34: #{_lambda_.5} parent=0 // pred_check
    _
  $region35: #{_lambda_.5} parent=0 // pred_check_branch
    %204 = sbr.rel (0) target = $region37
  $region36: #{_lambda_.5} parent=0 // pred_region
    _
  $region37: #{_lambda_.5} parent=0 // pred_fallthru
    _

// kernel: _lambda_.3
$region0: #{_lambda_.3}
  #allocation0 [shape = 'u32[]', space=smem, size = 0x4, offset = 0x4, fixed_abs, tag = 'smem constant byte address 0x4 - core index']
  #allocation1 [shape = 'u32[72,128]{1,0:T(1,128)}', space=vmem, size = 0x9000, scoped, tag = 'internal scratch']
  %s0 = inlined_call_operand.vmem [shape: bf16[2,8,32], index: 0, kind: input, shape index: {}]
  %s1 = inlined_call_operand.vmem [shape: bf16[2,8,32], index: 1, kind: input, shape index: {}]
  %s2 = inlined_call_operand.hbm [shape: bf16[32,32], index: 2, kind: input, shape index: {}]
  %s3 = inlined_call_operand.hbm [shape: bf16[32,32], index: 3, kind: input, shape index: {}]
  %s4 = inlined_call_operand.hbm [shape: bf16[32,32], index: 4, kind: input, shape index: {}]
  %s5 = inlined_call_operand.hbm [shape: bf16[32,32], index: 5, kind: input, shape index: {}]
  %s6 = inlined_call_operand.vmem [shape: f32[1,32], index: 6, kind: input, shape index: {}, may-alias: {6,7,8,9}]
  %s7 = inlined_call_operand.vmem [shape: f32[1,32], index: 7, kind: input, shape index: {}, may-alias: {6,7,8,9}]
  %s8 = inlined_call_operand.vmem [shape: f32[1,32], index: 8, kind: input, shape index: {}, may-alias: {6,7,8,9}]
  %s9 = inlined_call_operand.vmem [shape: f32[1,32], index: 9, kind: input, shape index: {}, may-alias: {6,7,8,9}]
  %s10 = inlined_call_operand.vmem [shape: f32[1,32], index: 10, kind: input, shape index: {}]
  %s11 = inlined_call_operand.vmem [shape: f32[1,32], index: 11, kind: input, shape index: {}]
  %s12 = inlined_call_operand.vmem [shape: bf16[2,8,32], index: 12, kind: output, shape index: {}]
  %s13 = sld [smem:[#allocation0]]
  $region97: #{_lambda_.3} parent=0
    _
  %s15 = ssub.s32 1, %s13
  %s16 = scalar_select 0, %s15, %s13
  $region1: #{_lambda_.3} parent=0
    #allocation2 [shape = 'u8[8192]{0}', space=vmem, size = 0x2000, scoped, tag = 'input window, operand 2, single buffered']
    #allocation3 [shape = 's32[2]{0}', space=sflag, size = 0x8, scoped, tag = 'scoped memory for _lambda_.3']
    #allocation4 [shape = 'u8[8192]{0}', space=vmem, size = 0x2000, scoped, tag = 'input window, operand 3, single buffered']
    #allocation5 [shape = 's32[1]{0}', space=sflag, size = 0x4, scoped, tag = 'scoped memory for _lambda_.3']
    #allocation6 [shape = 'u8[8192]{0}', space=vmem, size = 0x2000, scoped, tag = 'input window, operand 4, single buffered']
    #allocation7 [shape = 'u8[8192]{0}', space=vmem, size = 0x2000, scoped, tag = 'input window, operand 5, single buffered']
    #allocation8 [shape = 's32[1]{0}', space=sflag, size = 0x4, scoped, tag = 'scoped memory for _lambda_.3']
    %17 = vsyncpa [#allocation3], 0
    %18 = vsyncpa [#allocation5], 0
    %19 = vsyncpa [#allocation8], 0
    loop: start=0, step=1, limit=4
    $region2: #{_lambda_.3} parent=1 // loop_pre_header
      _
    $region3: #{_lambda_.3} parent=1 // loop_header
      %s21 = sphi 0, %s25
      %p22 = scmp.ge.s32.totalorder %s21, 4
      %s28 = sphi 0, %s40
      %s29 = sphi 0, %s36
      %s30 = sphi 0, %s28
      %s31 = sphi 0, %s29
      %s32 = sphi 0, %s30
      %s33 = sphi 0, %s31
      %s45 = sphi 0, %s47
      %s48 = sphi 0, %s45
      %s49 = sphi 0, %s48
      %s65 = sphi 0, %s49
      %s73 = sphi 0, %s75
      %s76 = sphi 0, %s73
      %s77 = sphi 0, %s76
      %s93 = sphi 0, %s77
      %s97 = sphi 0, %s97
      %s99 = sphi 0, %s97
      %s100 = sphi 0, %s99
      %s114 = sphi 0, %s100
      %s118 = sphi 0, %s118
      %s120 = sphi 0, %s118
      %s121 = sphi 0, %s120
      %s135 = sphi 0, %s121
      %s139 = sphi 0, %s139
      %s141 = sphi 0, %s139
      %s142 = sphi 0, %s141
      %s156 = sphi 0, %s142
      %s160 = sphi 0, %s160
      %s162 = sphi 0, %s160
      %s163 = sphi 0, %s162
      %s177 = sphi 0, %s163
      %s181 = sphi 0, %s181
      %s183 = sphi 0, %s181
      %s184 = sphi 0, %s183
      %s198 = sphi 0, %s184
      %s202 = sphi 0, %s202
      %s204 = sphi 0, %s202
      %s205 = sphi 0, %s204
      %s219 = sphi 0, %s205
      %s223 = sphi 0, %s223
      %s225 = sphi 0, %s223
      %s226 = sphi 0, %s225
      %s240 = sphi 0, %s226
      %s244 = sphi 0, %s244
      %s246 = sphi 0, %s244
      %s247 = sphi 0, %s246
      %s261 = sphi 0, %s247
      %s265 = sphi 0, %s265
      %s267 = sphi 0, %s265
      %s268 = sphi 0, %s267
      %s282 = sphi 0, %s268
      %s286 = sphi 0, %s286
      %s288 = sphi 0, %s286
      %s289 = sphi 0, %s288
      %s303 = sphi 0, %s289
      %s311 = sphi 0, %s313
      %s314 = sphi 0, %s311
      %s315 = sphi 0, %s314
      %s331 = sphi 0, %s315
    $region4: #{_lambda_.3} parent=1 // loop_header_branch
      %24 = sbr.rel (%p22) target = $region8
    $region5: #{_lambda_.3} parent=1 // loop_body
      %s26 = ssub.s32 %s21, 1
      %s27 = ssub.s32 %s21, 2
      %s34 = sadd.s32 1, %s29
      %p35 = scmp.ge.s32.totalorder %s34, 1
      %s36 = scalar_select %p35, 0, %s34
      %s37 = sadd.s32 1, %s28
      %s38 = scalar_select %p35, %s37, %s28
      %p39 = scmp.ge.s32.totalorder %s38, 2
      %s40 = scalar_select %p39, 0, %s38
      %s41 = ssub.s32 %s28, %s40
      %s42 = ssub.s32 %s29, %s36
      %s43 = sor.u32 %s41, %s42
      %p44 = scmp.eq.s32.totalorder %s43, 0
      %s46 = sadd.s32 %s45, 1
      %s47 = scalar_select %p44, %s45, %s46
      %p50 = pneg %p44
      %p51 = scmp.eq.s32.totalorder %s21, 1
      %p52 = por %p50, %p51
      %p53 = scmp.ne.s32.totalorder %s45, %s48
      %p54 = scmp.eq.s32.totalorder %s21, 0
      %p55 = por %p53, %p54
      %p56 = scmp.ne.s32.totalorder %s45, %s48
      %p57 = scmp.eq.s32.totalorder %s26, 1
      %p58 = por %p56, %p57
      %p59 = scmp.ne.s32.totalorder %s48, %s49
      %p60 = scmp.eq.s32.totalorder %s26, 0
      %p61 = por %p59, %p60
      %p62 = scmp.ne.s32.totalorder %s48, %s49
      %p63 = scmp.eq.s32.totalorder %s27, 1
      %p64 = por %p62, %p63
      %p66 = scmp.ne.s32.totalorder %s49, %s65
      %p67 = scmp.eq.s32.totalorder %s27, 0
      %p68 = por %p66, %p67
      %s69 = ssub.s32 %s28, %s40
      %s70 = ssub.s32 %s29, %s36
      %s71 = sor.u32 %s69, %s70
      %p72 = scmp.eq.s32.totalorder %s71, 0
      %s74 = sadd.s32 %s73, 1
      %s75 = scalar_select %p72, %s73, %s74
      %p78 = pneg %p72
      %p79 = scmp.eq.s32.totalorder %s21, 1
      %p80 = por %p78, %p79
      %p81 = scmp.ne.s32.totalorder %s73, %s76
      %p82 = scmp.eq.s32.totalorder %s21, 0
      %p83 = por %p81, %p82
      %p84 = scmp.ne.s32.totalorder %s73, %s76
      %p85 = scmp.eq.s32.totalorder %s26, 1
      %p86 = por %p84, %p85
      %p87 = scmp.ne.s32.totalorder %s76, %s77
      %p88 = scmp.eq.s32.totalorder %s26, 0
      %p89 = por %p87, %p88
      %p90 = scmp.ne.s32.totalorder %s76, %s77
      %p91 = scmp.eq.s32.totalorder %s27, 1
      %p92 = por %p90, %p91
      %p94 = scmp.ne.s32.totalorder %s77, %s93
      %p95 = scmp.eq.s32.totalorder %s27, 0
      %p96 = por %p94, %p95
      %s98 = sadd.s32 %s97, 1
      %p101 = scmp.eq.s32.totalorder %s21, 1
      %p102 = scmp.ne.s32.totalorder %s97, %s99
      %p103 = scmp.eq.s32.totalorder %s21, 0
      %p104 = por %p102, %p103
      %p105 = scmp.ne.s32.totalorder %s97, %s99
      %p106 = scmp.eq.s32.totalorder %s26, 1
      %p107 = por %p105, %p106
      %p108 = scmp.ne.s32.totalorder %s99, %s100
      %p109 = scmp.eq.s32.totalorder %s26, 0
      %p110 = por %p108, %p109
      %p111 = scmp.ne.s32.totalorder %s99, %s100
      %p112 = scmp.eq.s32.totalorder %s27, 1
      %p113 = por %p111, %p112
      %p115 = scmp.ne.s32.totalorder %s100, %s114
      %p116 = scmp.eq.s32.totalorder %s27, 0
      %p117 = por %p115, %p116
      %s119 = sadd.s32 %s118, 1
      %p122 = scmp.eq.s32.totalorder %s21, 1
      %p123 = scmp.ne.s32.totalorder %s118, %s120
      %p124 = scmp.eq.s32.totalorder %s21, 0
      %p125 = por %p123, %p124
      %p126 = scmp.ne.s32.totalorder %s118, %s120
      %p127 = scmp.eq.s32.totalorder %s26, 1
      %p128 = por %p126, %p127
      %p129 = scmp.ne.s32.totalorder %s120, %s121
      %p130 = scmp.eq.s32.totalorder %s26, 0
      %p131 = por %p129, %p130
      %p132 = scmp.ne.s32.totalorder %s120, %s121
      %p133 = scmp.eq.s32.totalorder %s27, 1
      %p134 = por %p132, %p133
      %p136 = scmp.ne.s32.totalorder %s121, %s135
      %p137 = scmp.eq.s32.totalorder %s27, 0
      %p138 = por %p136, %p137
      %s140 = sadd.s32 %s139, 1
      %p143 = scmp.eq.s32.totalorder %s21, 1
      %p144 = scmp.ne.s32.totalorder %s139, %s141
      %p145 = scmp.eq.s32.totalorder %s21, 0
      %p146 = por %p144, %p145
      %p147 = scmp.ne.s32.totalorder %s139, %s141
      %p148 = scmp.eq.s32.totalorder %s26, 1
      %p149 = por %p147, %p148
      %p150 = scmp.ne.s32.totalorder %s141, %s142
      %p151 = scmp.eq.s32.totalorder %s26, 0
      %p152 = por %p150, %p151
      %p153 = scmp.ne.s32.totalorder %s141, %s142
      %p154 = scmp.eq.s32.totalorder %s27, 1
      %p155 = por %p153, %p154
      %p157 = scmp.ne.s32.totalorder %s142, %s156
      %p158 = scmp.eq.s32.totalorder %s27, 0
      %p159 = por %p157, %p158
      %s161 = sadd.s32 %s160, 1
      %p164 = scmp.eq.s32.totalorder %s21, 1
      %p165 = scmp.ne.s32.totalorder %s160, %s162
      %p166 = scmp.eq.s32.totalorder %s21, 0
      %p167 = por %p165, %p166
      %p168 = scmp.ne.s32.totalorder %s160, %s162
      %p169 = scmp.eq.s32.totalorder %s26, 1
      %p170 = por %p168, %p169
      %p171 = scmp.ne.s32.totalorder %s162, %s163
      %p172 = scmp.eq.s32.totalorder %s26, 0
      %p173 = por %p171, %p172
      %p174 = scmp.ne.s32.totalorder %s162, %s163
      %p175 = scmp.eq.s32.totalorder %s27, 1
      %p176 = por %p174, %p175
      %p178 = scmp.ne.s32.totalorder %s163, %s177
      %p179 = scmp.eq.s32.totalorder %s27, 0
      %p180 = por %p178, %p179
      %s182 = sadd.s32 %s181, 1
      %p185 = scmp.eq.s32.totalorder %s21, 1
      %p186 = scmp.ne.s32.totalorder %s181, %s183
      %p187 = scmp.eq.s32.totalorder %s21, 0
      %p188 = por %p186, %p187
      %p189 = scmp.ne.s32.totalorder %s181, %s183
      %p190 = scmp.eq.s32.totalorder %s26, 1
      %p191 = por %p189, %p190
      %p192 = scmp.ne.s32.totalorder %s183, %s184
      %p193 = scmp.eq.s32.totalorder %s26, 0
      %p194 = por %p192, %p193
      %p195 = scmp.ne.s32.totalorder %s183, %s184
      %p196 = scmp.eq.s32.totalorder %s27, 1
      %p197 = por %p195, %p196
      %p199 = scmp.ne.s32.totalorder %s184, %s198
      %p200 = scmp.eq.s32.totalorder %s27, 0
      %p201 = por %p199, %p200
      %s203 = sadd.s32 %s202, 1
      %p206 = scmp.eq.s32.totalorder %s21, 1
      %p207 = scmp.ne.s32.totalorder %s202, %s204
      %p208 = scmp.eq.s32.totalorder %s21, 0
      %p209 = por %p207, %p208
      %p210 = scmp.ne.s32.totalorder %s202, %s204
      %p211 = scmp.eq.s32.totalorder %s26, 1
      %p212 = por %p210, %p211
      %p213 = scmp.ne.s32.totalorder %s204, %s205
      %p214 = scmp.eq.s32.totalorder %s26, 0
      %p215 = por %p213, %p214
      %p216 = scmp.ne.s32.totalorder %s204, %s205
      %p217 = scmp.eq.s32.totalorder %s27, 1
      %p218 = por %p216, %p217
      %p220 = scmp.ne.s32.totalorder %s205, %s219
      %p221 = scmp.eq.s32.totalorder %s27, 0
      %p222 = por %p220, %p221
      %s224 = sadd.s32 %s223, 1
      %p227 = scmp.eq.s32.totalorder %s21, 1
      %p228 = scmp.ne.s32.totalorder %s223, %s225
      %p229 = scmp.eq.s32.totalorder %s21, 0
      %p230 = por %p228, %p229
      %p231 = scmp.ne.s32.totalorder %s223, %s225
      %p232 = scmp.eq.s32.totalorder %s26, 1
      %p233 = por %p231, %p232
      %p234 = scmp.ne.s32.totalorder %s225, %s226
      %p235 = scmp.eq.s32.totalorder %s26, 0
      %p236 = por %p234, %p235
      %p237 = scmp.ne.s32.totalorder %s225, %s226
      %p238 = scmp.eq.s32.totalorder %s27, 1
      %p239 = por %p237, %p238
      %p241 = scmp.ne.s32.totalorder %s226, %s240
      %p242 = scmp.eq.s32.totalorder %s27, 0
      %p243 = por %p241, %p242
      %s245 = sadd.s32 %s244, 1
      %p248 = scmp.eq.s32.totalorder %s21, 1
      %p249 = scmp.ne.s32.totalorder %s244, %s246
      %p250 = scmp.eq.s32.totalorder %s21, 0
      %p251 = por %p249, %p250
      %p252 = scmp.ne.s32.totalorder %s244, %s246
      %p253 = scmp.eq.s32.totalorder %s26, 1
      %p254 = por %p252, %p253
      %p255 = scmp.ne.s32.totalorder %s246, %s247
      %p256 = scmp.eq.s32.totalorder %s26, 0
      %p257 = por %p255, %p256
      %p258 = scmp.ne.s32.totalorder %s246, %s247
      %p259 = scmp.eq.s32.totalorder %s27, 1
      %p260 = por %p258, %p259
      %p262 = scmp.ne.s32.totalorder %s247, %s261
      %p263 = scmp.eq.s32.totalorder %s27, 0
      %p264 = por %p262, %p263
      %s266 = sadd.s32 %s265, 1
      %p269 = scmp.eq.s32.totalorder %s21, 1
      %p270 = scmp.ne.s32.totalorder %s265, %s267
      %p271 = scmp.eq.s32.totalorder %s21, 0
      %p272 = por %p270, %p271
      %p273 = scmp.ne.s32.totalorder %s265, %s267
      %p274 = scmp.eq.s32.totalorder %s26, 1
      %p275 = por %p273, %p274
      %p276 = scmp.ne.s32.totalorder %s267, %s268
      %p277 = scmp.eq.s32.totalorder %s26, 0
      %p278 = por %p276, %p277
      %p279 = scmp.ne.s32.totalorder %s267, %s268
      %p280 = scmp.eq.s32.totalorder %s27, 1
      %p281 = por %p279, %p280
      %p283 = scmp.ne.s32.totalorder %s268, %s282
      %p284 = scmp.eq.s32.totalorder %s27, 0
      %p285 = por %p283, %p284
      %s287 = sadd.s32 %s286, 1
      %p290 = scmp.eq.s32.totalorder %s21, 1
      %p291 = scmp.ne.s32.totalorder %s286, %s288
      %p292 = scmp.eq.s32.totalorder %s21, 0
      %p293 = por %p291, %p292
      %p294 = scmp.ne.s32.totalorder %s286, %s288
      %p295 = scmp.eq.s32.totalorder %s26, 1
      %p296 = por %p294, %p295
      %p297 = scmp.ne.s32.totalorder %s288, %s289
      %p298 = scmp.eq.s32.totalorder %s26, 0
      %p299 = por %p297, %p298
      %p300 = scmp.ne.s32.totalorder %s288, %s289
      %p301 = scmp.eq.s32.totalorder %s27, 1
      %p302 = por %p300, %p301
      %p304 = scmp.ne.s32.totalorder %s289, %s303
      %p305 = scmp.eq.s32.totalorder %s27, 0
      %p306 = por %p304, %p305
      %s307 = ssub.s32 %s28, %s40
      %s308 = ssub.s32 %s29, %s36
      %s309 = sor.u32 %s307, %s308
      %p310 = scmp.eq.s32.totalorder %s309, 0
      %s312 = sadd.s32 %s311, 1
      %s313 = scalar_select %p310, %s311, %s312
      %p316 = pneg %p310
      %p317 = scmp.eq.s32.totalorder %s21, 1
      %p318 = por %p316, %p317
      %p319 = scmp.ne.s32.totalorder %s311, %s314
      %p320 = scmp.eq.s32.totalorder %s21, 0
      %p321 = por %p319, %p320
      %p322 = scmp.ne.s32.totalorder %s311, %s314
      %p323 = scmp.eq.s32.totalorder %s26, 1
      %p324 = por %p322, %p323
      %p325 = scmp.ne.s32.totalorder %s314, %s315
      %p326 = scmp.eq.s32.totalorder %s26, 0
      %p327 = por %p325, %p326
      %p328 = scmp.ne.s32.totalorder %s314, %s315
      %p329 = scmp.eq.s32.totalorder %s27, 1
      %p330 = por %p328, %p329
      %p332 = scmp.ne.s32.totalorder %s315, %s331
      %p333 = scmp.eq.s32.totalorder %s27, 0
      %p334 = por %p332, %p333
      %p335 = scmp.le.s32.totalorder 1, %s21
      %p336 = scmp.lt.s32.totalorder %s21, 3
      %p337 = pnand %p335, %p336
      %p338 = pneg %p337
      // Predicated region
      $region9: #{_lambda_.3} parent=5 // pred_check
        _
      $region10: #{_lambda_.3} parent=5 // pred_check_branch
        %340 = sbr.rel (%p337) target = $region12
      $region11: #{_lambda_.3} parent=5 // pred_region
        %s341 = ssub.s32 %s21, 1
        // Predicated region
        $region13: #{_lambda_.3} parent=11 // pred_check
          %p342 = pneg %p110
        $region14: #{_lambda_.3} parent=11 // pred_check_branch
          %344 = sbr.rel (%p342) target = $region16
        $region15: #{_lambda_.3} parent=11 // pred_region
          %346 = vsyncadd [#allocation3], 0
          %s347 = sshll.u32 %s2, 4
          %s348 = int_to_ptr.hbm [resolvable:$true] %s347
          %s349 = sshll.u32 [#allocation2], 4
          %s350 = int_to_ptr.vmem [resolvable:$true] %s349
          %355 = dma.hbm_to_vmem [thread:$0]  %s348, 256, %s350, [#allocation3], 64, 64, 4
        $region16: #{_lambda_.3} parent=11 // pred_fallthru
          _
        // Predicated region
        $region17: #{_lambda_.3} parent=11 // pred_check
          %p356 = pneg %p131
        $region18: #{_lambda_.3} parent=11 // pred_check_branch
          %358 = sbr.rel (%p356) target = $region20
        $region19: #{_lambda_.3} parent=11 // pred_region
          %360 = vsyncadd [#allocation5], 0
          %s361 = sshll.u32 %s3, 4
          %s362 = int_to_ptr.hbm [resolvable:$true] %s361
          %s363 = sshll.u32 [#allocation4], 4
          %s364 = int_to_ptr.vmem [resolvable:$true] %s363
          %369 = dma.hbm_to_vmem [thread:$0]  %s362, 256, %s364, [#allocation5], 64, 64, 4
        $region20: #{_lambda_.3} parent=11 // pred_fallthru
          _
        // Predicated region
        $region21: #{_lambda_.3} parent=11 // pred_check
          %p370 = pneg %p152
        $region22: #{_lambda_.3} parent=11 // pred_check_branch
          %372 = sbr.rel (%p370) target = $region24
        $region23: #{_lambda_.3} parent=11 // pred_region
          %374 = vsyncadd [#allocation5], 0
          %s375 = sshll.u32 %s4, 4
          %s376 = int_to_ptr.hbm [resolvable:$true] %s375
          %s377 = sshll.u32 [#allocation6], 4
          %s378 = int_to_ptr.vmem [resolvable:$true] %s377
          %383 = dma.hbm_to_vmem [thread:$0]  %s376, 256, %s378, [#allocation5], 64, 64, 4
        $region24: #{_lambda_.3} parent=11 // pred_fallthru
          _
        // Predicated region
        $region25: #{_lambda_.3} parent=11 // pred_check
          %p384 = pneg %p173
        $region26: #{_lambda_.3} parent=11 // pred_check_branch
          %386 = sbr.rel (%p384) target = $region28
        $region27: #{_lambda_.3} parent=11 // pred_region
          %388 = vsyncadd [#allocation8], 0
          %s389 = sshll.u32 %s5, 4
          %s390 = int_to_ptr.hbm [resolvable:$true] %s389
          %s391 = sshll.u32 [#allocation7], 4
          %s392 = int_to_ptr.vmem [resolvable:$true] %s391
          %397 = dma.hbm_to_vmem [thread:$0]  %s390, 256, %s392, [#allocation8], 64, 64, 4
        $region28: #{_lambda_.3} parent=11 // pred_fallthru
          _
        // Predicated region
        $region29: #{_lambda_.3} parent=11 // pred_check
          %p398 = pneg %p194
        $region30: #{_lambda_.3} parent=11 // pred_check_branch
          %400 = sbr.rel (%p398) target = $region32
        $region31: #{_lambda_.3} parent=11 // pred_region
          _
        $region32: #{_lambda_.3} parent=11 // pred_fallthru
          _
        // Predicated region
        $region33: #{_lambda_.3} parent=11 // pred_check
          %p401 = pneg %p215
        $region34: #{_lambda_.3} parent=11 // pred_check_branch
          %403 = sbr.rel (%p401) target = $region36
        $region35: #{_lambda_.3} parent=11 // pred_region
          _
        $region36: #{_lambda_.3} parent=11 // pred_fallthru
          _
        // Predicated region
        $region37: #{_lambda_.3} parent=11 // pred_check
          %p404 = pneg %p236
        $region38: #{_lambda_.3} parent=11 // pred_check_branch
          %406 = sbr.rel (%p404) target = $region40
        $region39: #{_lambda_.3} parent=11 // pred_region
          _
        $region40: #{_lambda_.3} parent=11 // pred_fallthru
          _
        // Predicated region
        $region41: #{_lambda_.3} parent=11 // pred_check
          %p407 = pneg %p257
        $region42: #{_lambda_.3} parent=11 // pred_check_branch
          %409 = sbr.rel (%p407) target = $region44
        $region43: #{_lambda_.3} parent=11 // pred_region
          _
        $region44: #{_lambda_.3} parent=11 // pred_fallthru
          _
        // Predicated region
        $region45: #{_lambda_.3} parent=11 // pred_check
          %p410 = pneg %p278
        $region46: #{_lambda_.3} parent=11 // pred_check_branch
          %412 = sbr.rel (%p410) target = $region48
        $region47: #{_lambda_.3} parent=11 // pred_region
          _
        $region48: #{_lambda_.3} parent=11 // pred_fallthru
          _
        // Predicated region
        $region49: #{_lambda_.3} parent=11 // pred_check
          %p413 = pneg %p299
        $region50: #{_lambda_.3} parent=11 // pred_check_branch
          %415 = sbr.rel (%p413) target = $region52
        $region51: #{_lambda_.3} parent=11 // pred_region
          _
        $region52: #{_lambda_.3} parent=11 // pred_fallthru
          _
      $region12: #{_lambda_.3} parent=5 // pred_fallthru
        _
      %p416 = scmp.lt.s32.totalorder %s21, 2
      // Predicated region
      $region53: #{_lambda_.3} parent=5 // pred_check
        %p417 = pneg %p416
      $region54: #{_lambda_.3} parent=5 // pred_check_branch
        %419 = sbr.rel (%p417) target = $region56
      $region55: #{_lambda_.3} parent=5 // pred_region
        // Predicated region
        $region57: #{_lambda_.3} parent=55 // pred_check
          %p420 = pneg %p55
        $region58: #{_lambda_.3} parent=55 // pred_check_branch
          %422 = sbr.rel (%p420) target = $region60
        $region59: #{_lambda_.3} parent=55 // pred_region
          %p423 = scmp.lt.s32.totalorder %s28, 1
          %s424 = scalar_select %p423, %s28, 1
          %p425 = scmp.lt.s32.totalorder %s29, 0
          %s426 = scalar_select %p425, %s29, 0
          %s427 = sadd.s32 %s426, %s424
          %s428 = smul.addr %s427, 4
          %s429 = scalar_lea.vmem %s0, %s428
        $region60: #{_lambda_.3} parent=55 // pred_fallthru
          _
        // Predicated region
        $region61: #{_lambda_.3} parent=55 // pred_check
          %p430 = pneg %p83
        $region62: #{_lambda_.3} parent=55 // pred_check_branch
          %432 = sbr.rel (%p430) target = $region64
        $region63: #{_lambda_.3} parent=55 // pred_region
          %p433 = scmp.lt.s32.totalorder %s28, 1
          %s434 = scalar_select %p433, %s28, 1
          %p435 = scmp.lt.s32.totalorder %s29, 0
          %s436 = scalar_select %p435, %s29, 0
          %s437 = sadd.s32 %s436, %s434
          %s438 = smul.addr %s437, 4
          %s439 = scalar_lea.vmem %s1, %s438
        $region64: #{_lambda_.3} parent=55 // pred_fallthru
          _
      $region56: #{_lambda_.3} parent=5 // pred_fallthru
        _
      %p440 = scmp.le.s32.totalorder 1, %s21
      %p441 = scmp.lt.s32.totalorder %s21, 3
      %p442 = pnand %p440, %p441
      %p443 = pneg %p442
      // Predicated region
      $region65: #{_lambda_.3} parent=5 // pred_check
        _
      $region66: #{_lambda_.3} parent=5 // pred_check_branch
        %445 = sbr.rel (%p442) target = $region68
      $region67: #{_lambda_.3} parent=5 // pred_region
        %s446 = ssub.s32 %s21, 1
        // Predicated region
        $region69: #{_lambda_.3} parent=67 // pred_check
          %p447 = pneg %p110
        $region70: #{_lambda_.3} parent=67 // pred_check_branch
          %449 = sbr.rel (%p447) target = $region72
        $region71: #{_lambda_.3} parent=67 // pred_region
          %451 = dma.done [#allocation3], 256
        $region72: #{_lambda_.3} parent=67 // pred_fallthru
          _
        // Predicated region
        $region73: #{_lambda_.3} parent=67 // pred_check
          %p452 = pneg %p131
        $region74: #{_lambda_.3} parent=67 // pred_check_branch
          %454 = sbr.rel (%p452) target = $region76
        $region75: #{_lambda_.3} parent=67 // pred_region
          %456 = dma.done [#allocation5], 256
        $region76: #{_lambda_.3} parent=67 // pred_fallthru
          _
        // Predicated region
        $region77: #{_lambda_.3} parent=67 // pred_check
          %p457 = pneg %p152
        $region78: #{_lambda_.3} parent=67 // pred_check_branch
          %459 = sbr.rel (%p457) target = $region80
        $region79: #{_lambda_.3} parent=67 // pred_region
          %461 = dma.done [#allocation5], 256
        $region80: #{_lambda_.3} parent=67 // pred_fallthru
          _
        // Predicated region
        $region81: #{_lambda_.3} parent=67 // pred_check
          %p462 = pneg %p173
        $region82: #{_lambda_.3} parent=67 // pred_check_branch
          %464 = sbr.rel (%p462) target = $region84
        $region83: #{_lambda_.3} parent=67 // pred_region
          %466 = dma.done [#allocation8], 256
        $region84: #{_lambda_.3} parent=67 // pred_fallthru
          _
        %p467 = scmp.lt.s32.totalorder %s30, 1
        %s468 = scalar_select %p467, %s30, 1
        %p469 = scmp.lt.s32.totalorder %s31, 0
        %s470 = scalar_select %p469, %s31, 0
        %s471 = sadd.s32 %s470, %s468
        %s472 = smul.addr %s471, 4
        %s473 = scalar_lea.vmem %s0, %s472
        %p474 = pneg %p61
        %p475 = pneg %p58
        %p476 = scmp.lt.s32.totalorder %s30, 1
        %s477 = scalar_select %p476, %s30, 1
        %p478 = scmp.lt.s32.totalorder %s31, 0
        %s479 = scalar_select %p478, %s31, 0
        %s480 = sadd.s32 %s479, %s477
        %s481 = smul.addr %s480, 4
        %s482 = scalar_lea.vmem %s1, %s481
        %p483 = pneg %p89
        %p484 = pneg %p86
        %p485 = pneg %p110
        %p486 = pneg %p107
        %p487 = pneg %p131
        %p488 = pneg %p128
        %p489 = pneg %p152
        %p490 = pneg %p149
        %p491 = pneg %p173
        %p492 = pneg %p170
        %p493 = pneg %p194
        %p494 = pneg %p191
        %p495 = pneg %p215
        %p496 = pneg %p212
        %p497 = pneg %p236
        %p498 = pneg %p233
        %p499 = pneg %p257
        %p500 = pneg %p254
        %p501 = pneg %p278
        %p502 = pneg %p275
        %p503 = pneg %p299
        %p504 = pneg %p296
        %p505 = pneg %p327
        %p506 = pneg %p324
        %p507 = scmp.lt.s32.totalorder %s30, 1
        %s508 = scalar_select %p507, %s30, 1
        %p509 = scmp.lt.s32.totalorder %s31, 0
        %s510 = scalar_select %p509, %s31, 0
        %s511 = sadd.s32 %s510, %s508
        %s512 = smul.addr %s511, 4
        %s513 = scalar_lea.vmem %s12, %s512
        %p514 = scmp.lt.s32.totalorder %s30, 1
        %s515 = scalar_select %p514, %s30, 1
        %p516 = scmp.lt.s32.totalorder %s31, 0
        %s517 = scalar_select %p516, %s31, 0
        %s518 = sadd.s32 %s517, %s515
        %s519 = smul.addr %s518, 4
        %s520 = scalar_lea.vmem %s0, %s519
        %p521 = scmp.lt.s32.totalorder %s30, 1
        %s522 = scalar_select %p521, %s30, 1
        %p523 = scmp.lt.s32.totalorder %s31, 0
        %s524 = scalar_select %p523, %s31, 0
        %s525 = sadd.s32 %s524, %s522
        %s526 = smul.addr %s525, 4
        %s527 = scalar_lea.vmem %s1, %s526
        %p528 = scmp.lt.s32.totalorder %s30, 1
        %s529 = scalar_select %p528, %s30, 1
        %p530 = scmp.lt.s32.totalorder %s31, 0
        %s531 = scalar_select %p530, %s31, 0
        %s532 = sadd.s32 %s531, %s529
        %s533 = smul.addr %s532, 4
        %s534 = scalar_lea.vmem %s12, %s533
        %v536 = vld [vmem:[%s520] sm:$0xf]
        %v537 = vunpack.c.l.bf16 %v536
        %v538 = vld [vmem:[%s527] sm:$0xf]
        %v539 = vunpack.c.l.bf16 %v538
        %v540 = vadd.f32 %v537, %v539
        %v541 = vpack.c.bf16 %v540, %v540
        %v542 = vld [vmem:[#allocation2] sm:$0xf]
        %v543 = vld [vmem:[#allocation2 + $0x4] sm:$0xf]
        %v544 = vld [vmem:[#allocation2 + $0x8] sm:$0xf]
        %v545 = vld [vmem:[#allocation2 + $0xc] sm:$0xf]
        %v546 = vld [vmem:[%s6] sm:$0x1]
        %v548 = vperm.slane %v546, 0
        %v554 = vunpack.c.l.b16 %v542
        %v555 = vunpack.c.l.b16 %v543
        %v556 = vunpack.c.l.b16 %v544
        %v557 = vunpack.c.l.b16 %v545
        %v558 = vpack.c.b16 %v555, %v554
        %v559 = vpack.c.b16 %v557, %v556
        %vm562 = vcmask 261120
        %v564 = vsel %vm562, %v541, 0
        %566 = vmatpush.bf16.msra.mxu0 0
        %567 = vmatpush.bf16.msra.mxu0 0
        %568 = vmatpush.bf16.msra.mxu0 0
        %569 = vmatpush.bf16.msra.mxu0 0
        %570 = vmatpush.bf16.msra.mxu0 0
        %571 = vmatpush.bf16.msra.mxu0 0
        %572 = vmatpush.bf16.msra.mxu0 %v559
        %573 = vmatpush.bf16.msra.mxu0 %v558
        %574 = vmatmul.bf16.gmra.mxu0 %v564
        %v575 = vpop.f32.mrf.mxu0
        %v576 = vadd.f32 %v548, %v575
        %v577 = vpop.f32.mrf.mxu0
        %578 = vdwg.mxu0
        %v579 = vmul.f32 %v576, 0.35355338
        %v580 = vld [vmem:[#allocation4] sm:$0xf]
        %v581 = vld [vmem:[#allocation4 + $0x4] sm:$0xf]
        %v582 = vld [vmem:[#allocation4 + $0x8] sm:$0xf]
        %v583 = vld [vmem:[#allocation4 + $0xc] sm:$0xf]
        %v584 = vld [vmem:[%s7] sm:$0x1]
        %v586 = vperm.slane %v584, 0
        %v592 = vunpack.c.l.b16 %v580
        %v593 = vunpack.c.l.b16 %v581
        %v594 = vunpack.c.l.b16 %v582
        %v595 = vunpack.c.l.b16 %v583
        %v596 = vpack.c.b16 %v593, %v592
        %v597 = vpack.c.b16 %v595, %v594
        %600 = vmatpush.bf16.msra.mxu0 0
        %601 = vmatpush.bf16.msra.mxu0 0
        %602 = vmatpush.bf16.msra.mxu0 0
        %603 = vmatpush.bf16.msra.mxu0 0
        %604 = vmatpush.bf16.msra.mxu0 0
        %605 = vmatpush.bf16.msra.mxu0 0
        %606 = vmatpush.bf16.msra.mxu0 %v597
        %607 = vmatpush.bf16.msra.mxu0 %v596
        %608 = vmatmul.bf16.gmra.mxu0 %v564
        %v609 = vpop.f32.mrf.mxu0
        %v610 = vadd.f32 %v586, %v609
        %v611 = vpop.f32.mrf.mxu0
        %612 = vdwg.mxu0
        %v613 = vld [vmem:[#allocation6] sm:$0xf]
        %v614 = vld [vmem:[#allocation6 + $0x4] sm:$0xf]
        %v615 = vld [vmem:[#allocation6 + $0x8] sm:$0xf]
        %v616 = vld [vmem:[#allocation6 + $0xc] sm:$0xf]
        %v617 = vld [vmem:[%s8] sm:$0x1]
        %v619 = vperm.slane %v617, 0
        %v625 = vunpack.c.l.b16 %v613
        %v626 = vunpack.c.l.b16 %v614
        %v627 = vunpack.c.l.b16 %v615
        %v628 = vunpack.c.l.b16 %v616
        %v629 = vpack.c.b16 %v626, %v625
        %v630 = vpack.c.b16 %v628, %v627
        %v634 = vsel %vm562, %v536, 0
        %636 = vmatpush.bf16.msra.mxu0 0
        %637 = vmatpush.bf16.msra.mxu0 0
        %638 = vmatpush.bf16.msra.mxu0 0
        %639 = vmatpush.bf16.msra.mxu0 0
        %640 = vmatpush.bf16.msra.mxu0 0
        %641 = vmatpush.bf16.msra.mxu0 0
        %642 = vmatpush.bf16.msra.mxu0 %v630
        %643 = vmatpush.bf16.msra.mxu0 %v629
        %644 = vmatmul.bf16.gmra.mxu0 %v634
        %v645 = vpop.f32.mrf.mxu0
        %v646 = vadd.f32 %v619, %v645
        %v647 = vpop.f32.mrf.mxu0
        %648 = vdwg.mxu0
        %v649 = vpack.c.bf16 %v579, %v579
        %v650 = vpack.c.bf16 %v610, %v610
        %v651 = vpack.c.bf16 %v646, %v646
        %v652 = vld [vmem:[%s9] sm:$0x1]
        %v654 = vperm.slane %v652, 0
        %v656 = vadd.f32 %v537, %v654
        %vm657 = vcmask 64512
        %v659 = vsel %vm657, %v649, 0
        %v662 = vsel %vm657, %v650, 0
        %664 = vmatpush.bf16.xpose.msra.mxu0 0
        %665 = vmatpush.bf16.xpose.msra.mxu0 0
        %666 = vmatpush.bf16.xpose.msra.mxu0 0
        %667 = vmatpush.bf16.xpose.msra.mxu0 0
        %668 = vmatpush.bf16.xpose.msra.mxu0 0
        %669 = vmatpush.bf16.xpose.msra.mxu0 0
        %670 = vmatpush.bf16.xpose.msra.mxu0 0
        %671 = vmatpush.bf16.xpose.msra.mxu0 %v662
        %672 = vmatmul.bf16.gmra.mxu0 %v659
        %v673 = vpop.f32.mrf.mxu0
        %v674 = vadd.f32 0.0, %v673
        %v675 = vpop.f32.mrf.mxu0
        %676 = vdwg.mxu0
        %v677 = vsel %vm657, %v674, -inf
        %678 = vmax.xlane.f32.xlu0 %v677
        %v679 = vpop.xlane.xlu0 %678
        %v680 = vsub.f32 %v674, %v679
        %v681 = vmul.f32 %v680, 1.442695
        %v682 = vpow.pop %v681
        %v683 = vsel %vm657, %v682, 0.0
        %684 = vadd.xlane.f32.xlu0 %v683
        %v685 = vpop.xlane.xlu0 %684
        %v686 = vrcp.pop %v685
        %v687 = vmul.f32 %v682, %v686
        %v688 = vpack.c.bf16 %v687, %v687
        %v690 = vsel %vm657, %v688, 0
        %vm692 = vcmask 1043456
        %v694 = vsel %vm692, %v651, 0
        %696 = vmatpush.bf16.msra.mxu0 0
        %697 = vmatpush.bf16.msra.mxu0 0
        %698 = vmatpush.bf16.msra.mxu0 0
        %699 = vmatpush.bf16.msra.mxu0 0
        %700 = vmatpush.bf16.msra.mxu0 0
        %701 = vmatpush.bf16.msra.mxu0 0
        %702 = vmatpush.bf16.msra.mxu0 0
        %703 = vmatpush.bf16.msra.mxu0 %v694
        %704 = vmatmul.bf16.gmra.mxu0 %v690
        %v705 = vpop.f32.mrf.mxu0
        %v706 = vadd.f32 0.0, %v705
        %v707 = vpop.f32.mrf.mxu0
        %708 = vdwg.mxu0
        %v709 = vpack.c.bf16 %v706, %v706
        %v710 = vld [vmem:[#allocation7] sm:$0xf]
        %v712 = vsel %vm657, %v709, 0
        %v715 = vsel %vm692, %v710, 0
        %717 = vmatpush.bf16.msra.mxu0 0
        %718 = vmatpush.bf16.msra.mxu0 0
        %719 = vmatpush.bf16.msra.mxu0 0
        %720 = vmatpush.bf16.msra.mxu0 0
        %721 = vmatpush.bf16.msra.mxu0 0
        %722 = vmatpush.bf16.msra.mxu0 0
        %723 = vmatpush.bf16.msra.mxu0 0
        %724 = vmatpush.bf16.msra.mxu0 %v715
        %725 = vmatmul.bf16.gmra.mxu0 %v712
        %v726 = vpop.f32.mrf.mxu0
        %v727 = vadd.f32 0.0, %v726
        %v728 = vpop.f32.mrf.mxu0
        %729 = vdwg.mxu0
        %v730 = vadd.f32 %v656, %v727
        %v732 = vunpack.c.l.b16 %v649
        %v733 = vpack.c.b16 %v732, %v732
        %734 = vrot.lane.b32.xlu0 %v733, 120
        %v735 = vpop.permute.xlu0 %734
        %v737 = vunpack.c.l.b16 %v650
        %v738 = vpack.c.b16 %v737, %v737
        %739 = vrot.lane.b32.xlu0 %v738, 120
        %v740 = vpop.permute.xlu0 %739
        %v742 = vsel %vm657, %v735, 0
        %v745 = vsel %vm657, %v740, 0
        %747 = vmatpush.bf16.xpose.msra.mxu0 0
        %748 = vmatpush.bf16.xpose.msra.mxu0 0
        %749 = vmatpush.bf16.xpose.msra.mxu0 0
        %750 = vmatpush.bf16.xpose.msra.mxu0 0
        %751 = vmatpush.bf16.xpose.msra.mxu0 0
        %752 = vmatpush.bf16.xpose.msra.mxu0 0
        %753 = vmatpush.bf16.xpose.msra.mxu0 0
        %754 = vmatpush.bf16.xpose.msra.mxu0 %v745
        %755 = vmatmul.bf16.gmra.mxu0 %v742
        %v756 = vpop.f32.mrf.mxu0
        %v757 = vadd.f32 0.0, %v756
        %v758 = vpop.f32.mrf.mxu0
        %759 = vdwg.mxu0
        %v760 = vsel %vm657, %v757, -inf
        %761 = vmax.xlane.f32.xlu0 %v760
        %v762 = vpop.xlane.xlu0 %761
        %v763 = vsub.f32 %v757, %v762
        %v764 = vmul.f32 %v763, 1.442695
        %v765 = vpow.pop %v764
        %v766 = vsel %vm657, %v765, 0.0
        %767 = vadd.xlane.f32.xlu0 %v766
        %v768 = vpop.xlane.xlu0 %767
        %v769 = vrcp.pop %v768
        %v770 = vmul.f32 %v765, %v769
        %v771 = vpack.c.bf16 %v770, %v770
        %v773 = vunpack.c.l.b16 %v651
        %v774 = vpack.c.b16 %v773, %v773
        %775 = vrot.lane.b32.xlu0 %v774, 120
        %v776 = vpop.permute.xlu0 %775
        %v778 = vsel %vm657, %v771, 0
        %v781 = vsel %vm692, %v776, 0
        %783 = vmatpush.bf16.msra.mxu0 0
        %784 = vmatpush.bf16.msra.mxu0 0
        %785 = vmatpush.bf16.msra.mxu0 0
        %786 = vmatpush.bf16.msra.mxu0 0
        %787 = vmatpush.bf16.msra.mxu0 0
        %788 = vmatpush.bf16.msra.mxu0 0
        %789 = vmatpush.bf16.msra.mxu0 0
        %790 = vmatpush.bf16.msra.mxu0 %v781
        %791 = vmatmul.bf16.gmra.mxu0 %v778
        %v792 = vpop.f32.mrf.mxu0
        %v793 = vadd.f32 0.0, %v792
        %v794 = vpop.f32.mrf.mxu0
        %795 = vdwg.mxu0
        %v796 = vpack.c.bf16 %v793, %v793
        %v797 = vld [vmem:[#allocation7 + $0x4] sm:$0xf]
        %v799 = vsel %vm657, %v796, 0
        %v802 = vsel %vm692, %v797, 0
        %804 = vmatpush.bf16.msra.mxu0 0
        %805 = vmatpush.bf16.msra.mxu0 0
        %806 = vmatpush.bf16.msra.mxu0 0
        %807 = vmatpush.bf16.msra.mxu0 0
        %808 = vmatpush.bf16.msra.mxu0 0
        %809 = vmatpush.bf16.msra.mxu0 0
        %810 = vmatpush.bf16.msra.mxu0 0
        %811 = vmatpush.bf16.msra.mxu0 %v802
        %812 = vmatmul.bf16.gmra.mxu0 %v799
        %v813 = vpop.f32.mrf.mxu0
        %v814 = vadd.f32 0.0, %v813
        %v815 = vpop.f32.mrf.mxu0
        %816 = vdwg.mxu0
        %v817 = vadd.f32 %v730, %v814
        %818 = vrot.lane.b32.xlu0 %v733, 112
        %v819 = vpop.permute.xlu0 %818
        %820 = vrot.lane.b32.xlu0 %v738, 112
        %v821 = vpop.permute.xlu0 %820
        %v823 = vsel %vm657, %v819, 0
        %v826 = vsel %vm657, %v821, 0
        %828 = vmatpush.bf16.xpose.msra.mxu0 0
        %829 = vmatpush.bf16.xpose.msra.mxu0 0
        %830 = vmatpush.bf16.xpose.msra.mxu0 0
        %831 = vmatpush.bf16.xpose.msra.mxu0 0
        %832 = vmatpush.bf16.xpose.msra.mxu0 0
        %833 = vmatpush.bf16.xpose.msra.mxu0 0
        %834 = vmatpush.bf16.xpose.msra.mxu0 0
        %835 = vmatpush.bf16.xpose.msra.mxu0 %v826
        %836 = vmatmul.bf16.gmra.mxu0 %v823
        %v837 = vpop.f32.mrf.mxu0
        %v838 = vadd.f32 0.0, %v837
        %v839 = vpop.f32.mrf.mxu0
        %840 = vdwg.mxu0
        %v841 = vsel %vm657, %v838, -inf
        %842 = vmax.xlane.f32.xlu0 %v841
        %v843 = vpop.xlane.xlu0 %842
        %v844 = vsub.f32 %v838, %v843
        %v845 = vmul.f32 %v844, 1.442695
        %v846 = vpow.pop %v845
        %v847 = vsel %vm657, %v846, 0.0
        %848 = vadd.xlane.f32.xlu0 %v847
        %v849 = vpop.xlane.xlu0 %848
        %v850 = vrcp.pop %v849
        %v851 = vmul.f32 %v846, %v850
        %v852 = vpack.c.bf16 %v851, %v851
        %853 = vrot.lane.b32.xlu0 %v774, 112
        %v854 = vpop.permute.xlu0 %853
        %v856 = vsel %vm657, %v852, 0
        %v859 = vsel %vm692, %v854, 0
        %861 = vmatpush.bf16.msra.mxu0 0
        %862 = vmatpush.bf16.msra.mxu0 0
        %863 = vmatpush.bf16.msra.mxu0 0
        %864 = vmatpush.bf16.msra.mxu0 0
        %865 = vmatpush.bf16.msra.mxu0 0
        %866 = vmatpush.bf16.msra.mxu0 0
        %867 = vmatpush.bf16.msra.mxu0 0
        %868 = vmatpush.bf16.msra.mxu0 %v859
        %869 = vmatmul.bf16.gmra.mxu0 %v856
        %v870 = vpop.f32.mrf.mxu0
        %v871 = vadd.f32 0.0, %v870
        %v872 = vpop.f32.mrf.mxu0
        %873 = vdwg.mxu0
        %v874 = vpack.c.bf16 %v871, %v871
        %v875 = vld [vmem:[#allocation7 + $0x8] sm:$0xf]
        %v877 = vsel %vm657, %v874, 0
        %v880 = vsel %vm692, %v875, 0
        %882 = vmatpush.bf16.msra.mxu0 0
        %883 = vmatpush.bf16.msra.mxu0 0
        %884 = vmatpush.bf16.msra.mxu0 0
        %885 = vmatpush.bf16.msra.mxu0 0
        %886 = vmatpush.bf16.msra.mxu0 0
        %887 = vmatpush.bf16.msra.mxu0 0
        %888 = vmatpush.bf16.msra.mxu0 0
        %889 = vmatpush.bf16.msra.mxu0 %v880
        %890 = vmatmul.bf16.gmra.mxu0 %v877
        %v891 = vpop.f32.mrf.mxu0
        %v892 = vadd.f32 0.0, %v891
        %v893 = vpop.f32.mrf.mxu0
        %894 = vdwg.mxu0
        %v895 = vadd.f32 %v817, %v892
        %896 = vrot.lane.b32.xlu0 %v733, 104
        %v897 = vpop.permute.xlu0 %896
        %898 = vrot.lane.b32.xlu0 %v738, 104
        %v899 = vpop.permute.xlu0 %898
        %v901 = vsel %vm657, %v897, 0
        %v904 = vsel %vm657, %v899, 0
        %906 = vmatpush.bf16.xpose.msra.mxu0 0
        %907 = vmatpush.bf16.xpose.msra.mxu0 0
        %908 = vmatpush.bf16.xpose.msra.mxu0 0
        %909 = vmatpush.bf16.xpose.msra.mxu0 0
        %910 = vmatpush.bf16.xpose.msra.mxu0 0
        %911 = vmatpush.bf16.xpose.msra.mxu0 0
        %912 = vmatpush.bf16.xpose.msra.mxu0 0
        %913 = vmatpush.bf16.xpose.msra.mxu0 %v904
        %914 = vmatmul.bf16.gmra.mxu0 %v901
        %v915 = vpop.f32.mrf.mxu0
        %v916 = vadd.f32 0.0, %v915
        %v917 = vpop.f32.mrf.mxu0
        %918 = vdwg.mxu0
        %v919 = vsel %vm657, %v916, -inf
        %920 = vmax.xlane.f32.xlu0 %v919
        %v921 = vpop.xlane.xlu0 %920
        %v922 = vsub.f32 %v916, %v921
        %v923 = vmul.f32 %v922, 1.442695
        %v924 = vpow.pop %v923
        %v925 = vsel %vm657, %v924, 0.0
        %926 = vadd.xlane.f32.xlu0 %v925
        %v927 = vpop.xlane.xlu0 %926
        %v928 = vrcp.pop %v927
        %v929 = vmul.f32 %v924, %v928
        %v930 = vpack.c.bf16 %v929, %v929
        %931 = vrot.lane.b32.xlu0 %v774, 104
        %v932 = vpop.permute.xlu0 %931
        %v934 = vsel %vm657, %v930, 0
        %v937 = vsel %vm692, %v932, 0
        %939 = vmatpush.bf16.msra.mxu0 0
        %940 = vmatpush.bf16.msra.mxu0 0
        %941 = vmatpush.bf16.msra.mxu0 0
        %942 = vmatpush.bf16.msra.mxu0 0
        %943 = vmatpush.bf16.msra.mxu0 0
        %944 = vmatpush.bf16.msra.mxu0 0
        %945 = vmatpush.bf16.msra.mxu0 0
        %946 = vmatpush.bf16.msra.mxu0 %v937
        %947 = vmatmul.bf16.gmra.mxu0 %v934
        %v948 = vpop.f32.mrf.mxu0
        %v949 = vadd.f32 0.0, %v948
        %v950 = vpop.f32.mrf.mxu0
        %951 = vdwg.mxu0
        %v952 = vpack.c.bf16 %v949, %v949
        %v953 = vld [vmem:[#allocation7 + $0xc] sm:$0xf]
        %v955 = vsel %vm657, %v952, 0
        %v958 = vsel %vm692, %v953, 0
        %960 = vmatpush.bf16.msra.mxu0 0
        %961 = vmatpush.bf16.msra.mxu0 0
        %962 = vmatpush.bf16.msra.mxu0 0
        %963 = vmatpush.bf16.msra.mxu0 0
        %964 = vmatpush.bf16.msra.mxu0 0
        %965 = vmatpush.bf16.msra.mxu0 0
        %966 = vmatpush.bf16.msra.mxu0 0
        %967 = vmatpush.bf16.msra.mxu0 %v958
        %968 = vmatmul.bf16.gmra.mxu0 %v955
        %v969 = vpop.f32.mrf.mxu0
        %v970 = vadd.f32 0.0, %v969
        %v971 = vpop.f32.mrf.mxu0
        %972 = vdwg.mxu0
        %v973 = vadd.f32 %v895, %v970
        %v974 = vld [vmem:[%s10] sm:$0x1]
        %v975 = vld [vmem:[%s11] sm:$0x1]
        %v976 = vsel %vm562, %v973, 0.0
        %977 = vadd.xlane.f32.xlu0 %v976
        %v978 = vpop.xlane.xlu0 %977
        %v979 = vrcp.pop 32.0
        %v980 = vmul.f32 32.0, %v979
        %v981 = vsub.f32 1.0, %v980
        %v982 = vmul.f32 %v979, %v981
        %v983 = vadd.f32 %v979, %v982
        %vm984 = vweird.f32 %v979
        %v985 = vsel %vm984, %v979, %v983
        %v986 = vmul.f32 %v978, %v985
        %v987 = vsub.f32 %v973, %v986
        %v988 = vmul.f32 %v987, %v987
        %v989 = vsel %vm562, %v988, 0.0
        %990 = vadd.xlane.f32.xlu0 %v989
        %v991 = vpop.xlane.xlu0 %990
        %v992 = vmul.f32 %v991, %v985
        %v993 = vadd.f32 %v992, 1e-05
        %v994 = vrsqrt.pop %v993
        %v995 = vmul.f32 %v994, %v993
        %v996 = vmul.f32 %v995, %v994
        %v997 = vmul.f32 0.5, %v996
        %v998 = vsub.f32 1.5, %v997
        %v999 = vmul.f32 %v994, %v998
        %vm1000 = vweird.f32 %v993
        %vm1001 = vweird.f32 %v994
        %vm1002 = vmor %vm1000, %vm1001
        %v1003 = vsel %vm1002, %v994, %v999
        %v1004 = vmul.f32 %v987, %v1003
        %v1006 = vperm.slane %v974, 0
        %v1008 = vmul.f32 %v1004, %v1006
        %v1010 = vperm.slane %v975, 0
        %v1012 = vadd.f32 %v1008, %v1010
        %v1013 = vpack.c.bf16 %v1012, %v1012
        %vm1014 = vcmask 257024
        %1015 = vst.msk [vmem:[%s534] sm:$0xf] %vm1014, %v1013
        %p1016 = scmp.lt.s32.totalorder %s30, 1
        %s1017 = scalar_select %p1016, %s30, 1
        %p1018 = scmp.lt.s32.totalorder %s31, 0
        %s1019 = scalar_select %p1018, %s31, 0
        %s1020 = sadd.s32 %s1019, %s1017
        %s1021 = smul.addr %s1020, 4
        %s1022 = scalar_lea.vmem %s12, %s1021
        // Predicated region
        $region85: #{_lambda_.3} parent=67 // pred_check
          %p1023 = pneg %p324
        $region86: #{_lambda_.3} parent=67 // pred_check_branch
          %1025 = sbr.rel (%p1023) target = $region88
        $region87: #{_lambda_.3} parent=67 // pred_region
          _
        $region88: #{_lambda_.3} parent=67 // pred_fallthru
          _
      $region68: #{_lambda_.3} parent=5 // pred_fallthru
        _
      %p1026 = scmp.le.s32.totalorder 2, %s21
      // Predicated region
      $region89: #{_lambda_.3} parent=5 // pred_check
        %p1027 = pneg %p1026
      $region90: #{_lambda_.3} parent=5 // pred_check_branch
        %1029 = sbr.rel (%p1027) target = $region92
      $region91: #{_lambda_.3} parent=5 // pred_region
        %s1030 = ssub.s32 %s21, 2
        // Predicated region
        $region93: #{_lambda_.3} parent=91 // pred_check
          %p1031 = pneg %p330
        $region94: #{_lambda_.3} parent=91 // pred_check_branch
          %1033 = sbr.rel (%p1031) target = $region96
        $region95: #{_lambda_.3} parent=91 // pred_region
          %p1034 = scmp.lt.s32.totalorder %s32, 1
          %s1035 = scalar_select %p1034, %s32, 1
          %p1036 = scmp.lt.s32.totalorder %s33, 0
          %s1037 = scalar_select %p1036, %s33, 0
          %s1038 = sadd.s32 %s1037, %s1035
          %s1039 = smul.addr %s1038, 4
          %s1040 = scalar_lea.vmem %s12, %s1039
        $region96: #{_lambda_.3} parent=91 // pred_fallthru
          _
      $region92: #{_lambda_.3} parent=5 // pred_fallthru
        _
    $region6: #{_lambda_.3} parent=1 // loop_footer
      %s25 = sadd.s32 1, %s21
    $region7: #{_lambda_.3} parent=1 // loop_footer_branch
      %20 = sbr.rel target = $region3
    $region8: #{_lambda_.3} parent=1 // loop_exit
      _
    %1041 = vsyncpa [#allocation3], 1
    %s1042 = scalar_lea.sflag [#allocation3], 1
    %1043 = vsyncpa %s1042, 1
    %1044 = vsyncpa [#allocation5], 1
    %1045 = vsyncpa [#allocation8], 1

// kernel: _lambda_.4
$region0: #{_lambda_.4}
  #allocation0 [shape = 'u32[]', space=smem, size = 0x4, offset = 0x4, fixed_abs, tag = 'smem constant byte address 0x4 - core index']
  #allocation1 [shape = 'u32[72,128]{1,0:T(1,128)}', space=vmem, size = 0x9000, scoped, tag = 'internal scratch']
  %s0 = inlined_call_operand.vmem [shape: bf16[2,8,32], index: 0, kind: input, shape index: {}]
  %s1 = inlined_call_operand.vmem [shape: bf16[2,16,32], index: 1, kind: input, shape index: {}]
  %s2 = inlined_call_operand.vmem [shape: bf16[2,8,32], index: 2, kind: input, shape index: {}]
  %s3 = inlined_call_operand.vmem [shape: bf16[2,16,32], index: 3, kind: input, shape index: {}]
  %s4 = inlined_call_operand.vmem [shape: bf16[32,32], index: 4, kind: input, shape index: {}]
  %s5 = inlined_call_operand.vmem [shape: bf16[32,32], index: 5, kind: input, shape index: {}]
  %s6 = inlined_call_operand.vmem [shape: bf16[32,32], index: 6, kind: input, shape index: {}]
  %s7 = inlined_call_operand.vmem [shape: bf16[32,32], index: 7, kind: input, shape index: {}]
  %s8 = inlined_call_operand.vmem [shape: f32[1,32], index: 8, kind: input, shape index: {}, may-alias: {8,9,10,11}]
  %s9 = inlined_call_operand.vmem [shape: f32[1,32], index: 9, kind: input, shape index: {}, may-alias: {8,9,10,11}]
  %s10 = inlined_call_operand.vmem [shape: f32[1,32], index: 10, kind: input, shape index: {}, may-alias: {8,9,10,11}]
  %s11 = inlined_call_operand.vmem [shape: f32[1,32], index: 11, kind: input, shape index: {}, may-alias: {8,9,10,11}]
  %s12 = inlined_call_operand.hbm [shape: f32[1,32], index: 12, kind: input, shape index: {}]
  %s13 = inlined_call_operand.hbm [shape: f32[1,32], index: 13, kind: input, shape index: {}]
  %s14 = inlined_call_operand.vmem [shape: bf16[2,8,32], index: 14, kind: output, shape index: {}]
  %s15 = sld [smem:[#allocation0]]
  $region97: #{_lambda_.4} parent=0
    _
  %s17 = ssub.s32 1, %s15
  %s18 = scalar_select 0, %s17, %s15
  $region1: #{_lambda_.4} parent=0
    #allocation2 [shape = 'u8[512]{0}', space=vmem, size = 0x400, scoped, tag = 'input window, operand 12, single buffered']
    #allocation3 [shape = 's32[2]{0}', space=sflag, size = 0x8, scoped, tag = 'scoped memory for _lambda_.4']
    #allocation4 [shape = 'u8[512]{0}', space=vmem, size = 0x400, scoped, tag = 'input window, operand 13, single buffered']
    #allocation5 [shape = 's32[1]{0}', space=sflag, size = 0x4, scoped, tag = 'scoped memory for _lambda_.4']
    %19 = vsyncpa [#allocation3], 0
    %20 = vsyncpa [#allocation5], 0
    loop: start=0, step=1, limit=4
    $region2: #{_lambda_.4} parent=1 // loop_pre_header
      _
    $region3: #{_lambda_.4} parent=1 // loop_header
      %s22 = sphi 0, %s26
      %p23 = scmp.ge.s32.totalorder %s22, 4
      %s29 = sphi 0, %s41
      %s30 = sphi 0, %s37
      %s31 = sphi 0, %s29
      %s32 = sphi 0, %s30
      %s33 = sphi 0, %s31
      %s34 = sphi 0, %s32
      %s46 = sphi 0, %s48
      %s49 = sphi 0, %s46
      %s50 = sphi 0, %s49
      %s66 = sphi 0, %s50
      %s72 = sphi 0, %s74
      %s75 = sphi 0, %s72
      %s76 = sphi 0, %s75
      %s92 = sphi 0, %s76
      %s100 = sphi 0, %s102
      %s103 = sphi 0, %s100
      %s104 = sphi 0, %s103
      %s120 = sphi 0, %s104
      %s126 = sphi 0, %s128
      %s129 = sphi 0, %s126
      %s130 = sphi 0, %s129
      %s146 = sphi 0, %s130
      %s150 = sphi 0, %s150
      %s152 = sphi 0, %s150
      %s153 = sphi 0, %s152
      %s167 = sphi 0, %s153
      %s171 = sphi 0, %s171
      %s173 = sphi 0, %s171
      %s174 = sphi 0, %s173
      %s188 = sphi 0, %s174
      %s192 = sphi 0, %s192
      %s194 = sphi 0, %s192
      %s195 = sphi 0, %s194
      %s209 = sphi 0, %s195
      %s213 = sphi 0, %s213
      %s215 = sphi 0, %s213
      %s216 = sphi 0, %s215
      %s230 = sphi 0, %s216
      %s234 = sphi 0, %s234
      %s236 = sphi 0, %s234
      %s237 = sphi 0, %s236
      %s251 = sphi 0, %s237
      %s255 = sphi 0, %s255
      %s257 = sphi 0, %s255
      %s258 = sphi 0, %s257
      %s272 = sphi 0, %s258
      %s276 = sphi 0, %s276
      %s278 = sphi 0, %s276
      %s279 = sphi 0, %s278
      %s293 = sphi 0, %s279
      %s297 = sphi 0, %s297
      %s299 = sphi 0, %s297
      %s300 = sphi 0, %s299
      %s314 = sphi 0, %s300
      %s318 = sphi 0, %s318
      %s320 = sphi 0, %s318
      %s321 = sphi 0, %s320
      %s335 = sphi 0, %s321
      %s339 = sphi 0, %s339
      %s341 = sphi 0, %s339
      %s342 = sphi 0, %s341
      %s356 = sphi 0, %s342
      %s364 = sphi 0, %s366
      %s367 = sphi 0, %s364
      %s368 = sphi 0, %s367
      %s384 = sphi 0, %s368
    $region4: #{_lambda_.4} parent=1 // loop_header_branch
      %25 = sbr.rel (%p23) target = $region8
    $region5: #{_lambda_.4} parent=1 // loop_body
      %s27 = ssub.s32 %s22, 1
      %s28 = ssub.s32 %s22, 2
      %s35 = sadd.s32 1, %s30
      %p36 = scmp.ge.s32.totalorder %s35, 1
      %s37 = scalar_select %p36, 0, %s35
      %s38 = sadd.s32 1, %s29
      %s39 = scalar_select %p36, %s38, %s29
      %p40 = scmp.ge.s32.totalorder %s39, 2
      %s41 = scalar_select %p40, 0, %s39
      %s42 = ssub.s32 %s29, %s41
      %s43 = ssub.s32 %s30, %s37
      %s44 = sor.u32 %s42, %s43
      %p45 = scmp.eq.s32.totalorder %s44, 0
      %s47 = sadd.s32 %s46, 1
      %s48 = scalar_select %p45, %s46, %s47
      %p51 = pneg %p45
      %p52 = scmp.eq.s32.totalorder %s22, 1
      %p53 = por %p51, %p52
      %p54 = scmp.ne.s32.totalorder %s46, %s49
      %p55 = scmp.eq.s32.totalorder %s22, 0
      %p56 = por %p54, %p55
      %p57 = scmp.ne.s32.totalorder %s46, %s49
      %p58 = scmp.eq.s32.totalorder %s27, 1
      %p59 = por %p57, %p58
      %p60 = scmp.ne.s32.totalorder %s49, %s50
      %p61 = scmp.eq.s32.totalorder %s27, 0
      %p62 = por %p60, %p61
      %p63 = scmp.ne.s32.totalorder %s49, %s50
      %p64 = scmp.eq.s32.totalorder %s28, 1
      %p65 = por %p63, %p64
      %p67 = scmp.ne.s32.totalorder %s50, %s66
      %p68 = scmp.eq.s32.totalorder %s28, 0
      %p69 = por %p67, %p68
      %s70 = ssub.s32 %s29, %s41
      %p71 = scmp.eq.s32.totalorder %s70, 0
      %s73 = sadd.s32 %s72, 1
      %s74 = scalar_select %p71, %s72, %s73
      %p77 = pneg %p71
      %p78 = scmp.eq.s32.totalorder %s22, 1
      %p79 = por %p77, %p78
      %p80 = scmp.ne.s32.totalorder %s72, %s75
      %p81 = scmp.eq.s32.totalorder %s22, 0
      %p82 = por %p80, %p81
      %p83 = scmp.ne.s32.totalorder %s72, %s75
      %p84 = scmp.eq.s32.totalorder %s27, 1
      %p85 = por %p83, %p84
      %p86 = scmp.ne.s32.totalorder %s75, %s76
      %p87 = scmp.eq.s32.totalorder %s27, 0
      %p88 = por %p86, %p87
      %p89 = scmp.ne.s32.totalorder %s75, %s76
      %p90 = scmp.eq.s32.totalorder %s28, 1
      %p91 = por %p89, %p90
      %p93 = scmp.ne.s32.totalorder %s76, %s92
      %p94 = scmp.eq.s32.totalorder %s28, 0
      %p95 = por %p93, %p94
      %s96 = ssub.s32 %s29, %s41
      %s97 = ssub.s32 %s30, %s37
      %s98 = sor.u32 %s96, %s97
      %p99 = scmp.eq.s32.totalorder %s98, 0
      %s101 = sadd.s32 %s100, 1
      %s102 = scalar_select %p99, %s100, %s101
      %p105 = pneg %p99
      %p106 = scmp.eq.s32.totalorder %s22, 1
      %p107 = por %p105, %p106
      %p108 = scmp.ne.s32.totalorder %s100, %s103
      %p109 = scmp.eq.s32.totalorder %s22, 0
      %p110 = por %p108, %p109
      %p111 = scmp.ne.s32.totalorder %s100, %s103
      %p112 = scmp.eq.s32.totalorder %s27, 1
      %p113 = por %p111, %p112
      %p114 = scmp.ne.s32.totalorder %s103, %s104
      %p115 = scmp.eq.s32.totalorder %s27, 0
      %p116 = por %p114, %p115
      %p117 = scmp.ne.s32.totalorder %s103, %s104
      %p118 = scmp.eq.s32.totalorder %s28, 1
      %p119 = por %p117, %p118
      %p121 = scmp.ne.s32.totalorder %s104, %s120
      %p122 = scmp.eq.s32.totalorder %s28, 0
      %p123 = por %p121, %p122
      %s124 = ssub.s32 %s29, %s41
      %p125 = scmp.eq.s32.totalorder %s124, 0
      %s127 = sadd.s32 %s126, 1
      %s128 = scalar_select %p125, %s126, %s127
      %p131 = pneg %p125
      %p132 = scmp.eq.s32.totalorder %s22, 1
      %p133 = por %p131, %p132
      %p134 = scmp.ne.s32.totalorder %s126, %s129
      %p135 = scmp.eq.s32.totalorder %s22, 0
      %p136 = por %p134, %p135
      %p137 = scmp.ne.s32.totalorder %s126, %s129
      %p138 = scmp.eq.s32.totalorder %s27, 1
      %p139 = por %p137, %p138
      %p140 = scmp.ne.s32.totalorder %s129, %s130
      %p141 = scmp.eq.s32.totalorder %s27, 0
      %p142 = por %p140, %p141
      %p143 = scmp.ne.s32.totalorder %s129, %s130
      %p144 = scmp.eq.s32.totalorder %s28, 1
      %p145 = por %p143, %p144
      %p147 = scmp.ne.s32.totalorder %s130, %s146
      %p148 = scmp.eq.s32.totalorder %s28, 0
      %p149 = por %p147, %p148
      %s151 = sadd.s32 %s150, 1
      %p154 = scmp.eq.s32.totalorder %s22, 1
      %p155 = scmp.ne.s32.totalorder %s150, %s152
      %p156 = scmp.eq.s32.totalorder %s22, 0
      %p157 = por %p155, %p156
      %p158 = scmp.ne.s32.totalorder %s150, %s152
      %p159 = scmp.eq.s32.totalorder %s27, 1
      %p160 = por %p158, %p159
      %p161 = scmp.ne.s32.totalorder %s152, %s153
      %p162 = scmp.eq.s32.totalorder %s27, 0
      %p163 = por %p161, %p162
      %p164 = scmp.ne.s32.totalorder %s152, %s153
      %p165 = scmp.eq.s32.totalorder %s28, 1
      %p166 = por %p164, %p165
      %p168 = scmp.ne.s32.totalorder %s153, %s167
      %p169 = scmp.eq.s32.totalorder %s28, 0
      %p170 = por %p168, %p169
      %s172 = sadd.s32 %s171, 1
      %p175 = scmp.eq.s32.totalorder %s22, 1
      %p176 = scmp.ne.s32.totalorder %s171, %s173
      %p177 = scmp.eq.s32.totalorder %s22, 0
      %p178 = por %p176, %p177
      %p179 = scmp.ne.s32.totalorder %s171, %s173
      %p180 = scmp.eq.s32.totalorder %s27, 1
      %p181 = por %p179, %p180
      %p182 = scmp.ne.s32.totalorder %s173, %s174
      %p183 = scmp.eq.s32.totalorder %s27, 0
      %p184 = por %p182, %p183
      %p185 = scmp.ne.s32.totalorder %s173, %s174
      %p186 = scmp.eq.s32.totalorder %s28, 1
      %p187 = por %p185, %p186
      %p189 = scmp.ne.s32.totalorder %s174, %s188
      %p190 = scmp.eq.s32.totalorder %s28, 0
      %p191 = por %p189, %p190
      %s193 = sadd.s32 %s192, 1
      %p196 = scmp.eq.s32.totalorder %s22, 1
      %p197 = scmp.ne.s32.totalorder %s192, %s194
      %p198 = scmp.eq.s32.totalorder %s22, 0
      %p199 = por %p197, %p198
      %p200 = scmp.ne.s32.totalorder %s192, %s194
      %p201 = scmp.eq.s32.totalorder %s27, 1
      %p202 = por %p200, %p201
      %p203 = scmp.ne.s32.totalorder %s194, %s195
      %p204 = scmp.eq.s32.totalorder %s27, 0
      %p205 = por %p203, %p204
      %p206 = scmp.ne.s32.totalorder %s194, %s195
      %p207 = scmp.eq.s32.totalorder %s28, 1
      %p208 = por %p206, %p207
      %p210 = scmp.ne.s32.totalorder %s195, %s209
      %p211 = scmp.eq.s32.totalorder %s28, 0
      %p212 = por %p210, %p211
      %s214 = sadd.s32 %s213, 1
      %p217 = scmp.eq.s32.totalorder %s22, 1
      %p218 = scmp.ne.s32.totalorder %s213, %s215
      %p219 = scmp.eq.s32.totalorder %s22, 0
      %p220 = por %p218, %p219
      %p221 = scmp.ne.s32.totalorder %s213, %s215
      %p222 = scmp.eq.s32.totalorder %s27, 1
      %p223 = por %p221, %p222
      %p224 = scmp.ne.s32.totalorder %s215, %s216
      %p225 = scmp.eq.s32.totalorder %s27, 0
      %p226 = por %p224, %p225
      %p227 = scmp.ne.s32.totalorder %s215, %s216
      %p228 = scmp.eq.s32.totalorder %s28, 1
      %p229 = por %p227, %p228
      %p231 = scmp.ne.s32.totalorder %s216, %s230
      %p232 = scmp.eq.s32.totalorder %s28, 0
      %p233 = por %p231, %p232
      %s235 = sadd.s32 %s234, 1
      %p238 = scmp.eq.s32.totalorder %s22, 1
      %p239 = scmp.ne.s32.totalorder %s234, %s236
      %p240 = scmp.eq.s32.totalorder %s22, 0
      %p241 = por %p239, %p240
      %p242 = scmp.ne.s32.totalorder %s234, %s236
      %p243 = scmp.eq.s32.totalorder %s27, 1
      %p244 = por %p242, %p243
      %p245 = scmp.ne.s32.totalorder %s236, %s237
      %p246 = scmp.eq.s32.totalorder %s27, 0
      %p247 = por %p245, %p246
      %p248 = scmp.ne.s32.totalorder %s236, %s237
      %p249 = scmp.eq.s32.totalorder %s28, 1
      %p250 = por %p248, %p249
      %p252 = scmp.ne.s32.totalorder %s237, %s251
      %p253 = scmp.eq.s32.totalorder %s28, 0
      %p254 = por %p252, %p253
      %s256 = sadd.s32 %s255, 1
      %p259 = scmp.eq.s32.totalorder %s22, 1
      %p260 = scmp.ne.s32.totalorder %s255, %s257
      %p261 = scmp.eq.s32.totalorder %s22, 0
      %p262 = por %p260, %p261
      %p263 = scmp.ne.s32.totalorder %s255, %s257
      %p264 = scmp.eq.s32.totalorder %s27, 1
      %p265 = por %p263, %p264
      %p266 = scmp.ne.s32.totalorder %s257, %s258
      %p267 = scmp.eq.s32.totalorder %s27, 0
      %p268 = por %p266, %p267
      %p269 = scmp.ne.s32.totalorder %s257, %s258
      %p270 = scmp.eq.s32.totalorder %s28, 1
      %p271 = por %p269, %p270
      %p273 = scmp.ne.s32.totalorder %s258, %s272
      %p274 = scmp.eq.s32.totalorder %s28, 0
      %p275 = por %p273, %p274
      %s277 = sadd.s32 %s276, 1
      %p280 = scmp.eq.s32.totalorder %s22, 1
      %p281 = scmp.ne.s32.totalorder %s276, %s278
      %p282 = scmp.eq.s32.totalorder %s22, 0
      %p283 = por %p281, %p282
      %p284 = scmp.ne.s32.totalorder %s276, %s278
      %p285 = scmp.eq.s32.totalorder %s27, 1
      %p286 = por %p284, %p285
      %p287 = scmp.ne.s32.totalorder %s278, %s279
      %p288 = scmp.eq.s32.totalorder %s27, 0
      %p289 = por %p287, %p288
      %p290 = scmp.ne.s32.totalorder %s278, %s279
      %p291 = scmp.eq.s32.totalorder %s28, 1
      %p292 = por %p290, %p291
      %p294 = scmp.ne.s32.totalorder %s279, %s293
      %p295 = scmp.eq.s32.totalorder %s28, 0
      %p296 = por %p294, %p295
      %s298 = sadd.s32 %s297, 1
      %p301 = scmp.eq.s32.totalorder %s22, 1
      %p302 = scmp.ne.s32.totalorder %s297, %s299
      %p303 = scmp.eq.s32.totalorder %s22, 0
      %p304 = por %p302, %p303
      %p305 = scmp.ne.s32.totalorder %s297, %s299
      %p306 = scmp.eq.s32.totalorder %s27, 1
      %p307 = por %p305, %p306
      %p308 = scmp.ne.s32.totalorder %s299, %s300
      %p309 = scmp.eq.s32.totalorder %s27, 0
      %p310 = por %p308, %p309
      %p311 = scmp.ne.s32.totalorder %s299, %s300
      %p312 = scmp.eq.s32.totalorder %s28, 1
      %p313 = por %p311, %p312
      %p315 = scmp.ne.s32.totalorder %s300, %s314
      %p316 = scmp.eq.s32.totalorder %s28, 0
      %p317 = por %p315, %p316
      %s319 = sadd.s32 %s318, 1
      %p322 = scmp.eq.s32.totalorder %s22, 1
      %p323 = scmp.ne.s32.totalorder %s318, %s320
      %p324 = scmp.eq.s32.totalorder %s22, 0
      %p325 = por %p323, %p324
      %p326 = scmp.ne.s32.totalorder %s318, %s320
      %p327 = scmp.eq.s32.totalorder %s27, 1
      %p328 = por %p326, %p327
      %p329 = scmp.ne.s32.totalorder %s320, %s321
      %p330 = scmp.eq.s32.totalorder %s27, 0
      %p331 = por %p329, %p330
      %p332 = scmp.ne.s32.totalorder %s320, %s321
      %p333 = scmp.eq.s32.totalorder %s28, 1
      %p334 = por %p332, %p333
      %p336 = scmp.ne.s32.totalorder %s321, %s335
      %p337 = scmp.eq.s32.totalorder %s28, 0
      %p338 = por %p336, %p337
      %s340 = sadd.s32 %s339, 1
      %p343 = scmp.eq.s32.totalorder %s22, 1
      %p344 = scmp.ne.s32.totalorder %s339, %s341
      %p345 = scmp.eq.s32.totalorder %s22, 0
      %p346 = por %p344, %p345
      %p347 = scmp.ne.s32.totalorder %s339, %s341
      %p348 = scmp.eq.s32.totalorder %s27, 1
      %p349 = por %p347, %p348
      %p350 = scmp.ne.s32.totalorder %s341, %s342
      %p351 = scmp.eq.s32.totalorder %s27, 0
      %p352 = por %p350, %p351
      %p353 = scmp.ne.s32.totalorder %s341, %s342
      %p354 = scmp.eq.s32.totalorder %s28, 1
      %p355 = por %p353, %p354
      %p357 = scmp.ne.s32.totalorder %s342, %s356
      %p358 = scmp.eq.s32.totalorder %s28, 0
      %p359 = por %p357, %p358
      %s360 = ssub.s32 %s29, %s41
      %s361 = ssub.s32 %s30, %s37
      %s362 = sor.u32 %s360, %s361
      %p363 = scmp.eq.s32.totalorder %s362, 0
      %s365 = sadd.s32 %s364, 1
      %s366 = scalar_select %p363, %s364, %s365
      %p369 = pneg %p363
      %p370 = scmp.eq.s32.totalorder %s22, 1
      %p371 = por %p369, %p370
      %p372 = scmp.ne.s32.totalorder %s364, %s367
      %p373 = scmp.eq.s32.totalorder %s22, 0
      %p374 = por %p372, %p373
      %p375 = scmp.ne.s32.totalorder %s364, %s367
      %p376 = scmp.eq.s32.totalorder %s27, 1
      %p377 = por %p375, %p376
      %p378 = scmp.ne.s32.totalorder %s367, %s368
      %p379 = scmp.eq.s32.totalorder %s27, 0
      %p380 = por %p378, %p379
      %p381 = scmp.ne.s32.totalorder %s367, %s368
      %p382 = scmp.eq.s32.totalorder %s28, 1
      %p383 = por %p381, %p382
      %p385 = scmp.ne.s32.totalorder %s368, %s384
      %p386 = scmp.eq.s32.totalorder %s28, 0
      %p387 = por %p385, %p386
      %p388 = scmp.le.s32.totalorder 1, %s22
      %p389 = scmp.lt.s32.totalorder %s22, 3
      %p390 = pnand %p388, %p389
      %p391 = pneg %p390
      // Predicated region
      $region9: #{_lambda_.4} parent=5 // pred_check
        _
      $region10: #{_lambda_.4} parent=5 // pred_check_branch
        %393 = sbr.rel (%p390) target = $region12
      $region11: #{_lambda_.4} parent=5 // pred_region
        %s394 = ssub.s32 %s22, 1
        // Predicated region
        $region13: #{_lambda_.4} parent=11 // pred_check
          %p395 = pneg %p163
        $region14: #{_lambda_.4} parent=11 // pred_check_branch
          %397 = sbr.rel (%p395) target = $region16
        $region15: #{_lambda_.4} parent=11 // pred_region
          _
        $region16: #{_lambda_.4} parent=11 // pred_fallthru
          _
        // Predicated region
        $region17: #{_lambda_.4} parent=11 // pred_check
          %p398 = pneg %p184
        $region18: #{_lambda_.4} parent=11 // pred_check_branch
          %400 = sbr.rel (%p398) target = $region20
        $region19: #{_lambda_.4} parent=11 // pred_region
          _
        $region20: #{_lambda_.4} parent=11 // pred_fallthru
          _
        // Predicated region
        $region21: #{_lambda_.4} parent=11 // pred_check
          %p401 = pneg %p205
        $region22: #{_lambda_.4} parent=11 // pred_check_branch
          %403 = sbr.rel (%p401) target = $region24
        $region23: #{_lambda_.4} parent=11 // pred_region
          _
        $region24: #{_lambda_.4} parent=11 // pred_fallthru
          _
        // Predicated region
        $region25: #{_lambda_.4} parent=11 // pred_check
          %p404 = pneg %p226
        $region26: #{_lambda_.4} parent=11 // pred_check_branch
          %406 = sbr.rel (%p404) target = $region28
        $region27: #{_lambda_.4} parent=11 // pred_region
          _
        $region28: #{_lambda_.4} parent=11 // pred_fallthru
          _
        // Predicated region
        $region29: #{_lambda_.4} parent=11 // pred_check
          %p407 = pneg %p247
        $region30: #{_lambda_.4} parent=11 // pred_check_branch
          %409 = sbr.rel (%p407) target = $region32
        $region31: #{_lambda_.4} parent=11 // pred_region
          _
        $region32: #{_lambda_.4} parent=11 // pred_fallthru
          _
        // Predicated region
        $region33: #{_lambda_.4} parent=11 // pred_check
          %p410 = pneg %p268
        $region34: #{_lambda_.4} parent=11 // pred_check_branch
          %412 = sbr.rel (%p410) target = $region36
        $region35: #{_lambda_.4} parent=11 // pred_region
          _
        $region36: #{_lambda_.4} parent=11 // pred_fallthru
          _
        // Predicated region
        $region37: #{_lambda_.4} parent=11 // pred_check
          %p413 = pneg %p289
        $region38: #{_lambda_.4} parent=11 // pred_check_branch
          %415 = sbr.rel (%p413) target = $region40
        $region39: #{_lambda_.4} parent=11 // pred_region
          _
        $region40: #{_lambda_.4} parent=11 // pred_fallthru
          _
        // Predicated region
        $region41: #{_lambda_.4} parent=11 // pred_check
          %p416 = pneg %p310
        $region42: #{_lambda_.4} parent=11 // pred_check_branch
          %418 = sbr.rel (%p416) target = $region44
        $region43: #{_lambda_.4} parent=11 // pred_region
          _
        $region44: #{_lambda_.4} parent=11 // pred_fallthru
          _
        // Predicated region
        $region45: #{_lambda_.4} parent=11 // pred_check
          %p419 = pneg %p331
        $region46: #{_lambda_.4} parent=11 // pred_check_branch
          %421 = sbr.rel (%p419) target = $region48
        $region47: #{_lambda_.4} parent=11 // pred_region
          %423 = vsyncadd [#allocation3], 0
          %s425 = sshll.u32 %s12, 4
          %s426 = int_to_ptr.hbm [resolvable:$true] %s425
          %s427 = sshll.u32 [#allocation2], 4
          %s428 = int_to_ptr.vmem [resolvable:$true] %s427
          %430 = dma.hbm_to_vmem [thread:$0]  %s426, 16, %s428, [#allocation3]
        $region48: #{_lambda_.4} parent=11 // pred_fallthru
          _
        // Predicated region
        $region49: #{_lambda_.4} parent=11 // pred_check
          %p431 = pneg %p352
        $region50: #{_lambda_.4} parent=11 // pred_check_branch
          %433 = sbr.rel (%p431) target = $region52
        $region51: #{_lambda_.4} parent=11 // pred_region
          %435 = vsyncadd [#allocation5], 0
          %s437 = sshll.u32 %s13, 4
          %s438 = int_to_ptr.hbm [resolvable:$true] %s437
          %s439 = sshll.u32 [#allocation4], 4
          %s440 = int_to_ptr.vmem [resolvable:$true] %s439
          %442 = dma.hbm_to_vmem [thread:$0]  %s438, 16, %s440, [#allocation5]
        $region52: #{_lambda_.4} parent=11 // pred_fallthru
          _
      $region12: #{_lambda_.4} parent=5 // pred_fallthru
        _
      %p443 = scmp.lt.s32.totalorder %s22, 2
      // Predicated region
      $region53: #{_lambda_.4} parent=5 // pred_check
        %p444 = pneg %p443
      $region54: #{_lambda_.4} parent=5 // pred_check_branch
        %446 = sbr.rel (%p444) target = $region56
      $region55: #{_lambda_.4} parent=5 // pred_region
        // Predicated region
        $region57: #{_lambda_.4} parent=55 // pred_check
          %p447 = pneg %p56
        $region58: #{_lambda_.4} parent=55 // pred_check_branch
          %449 = sbr.rel (%p447) target = $region60
        $region59: #{_lambda_.4} parent=55 // pred_region
          %p450 = scmp.lt.s32.totalorder %s29, 1
          %s451 = scalar_select %p450, %s29, 1
          %p452 = scmp.lt.s32.totalorder %s30, 0
          %s453 = scalar_select %p452, %s30, 0
          %s454 = sadd.s32 %s453, %s451
          %s455 = smul.addr %s454, 4
          %s456 = scalar_lea.vmem %s0, %s455
        $region60: #{_lambda_.4} parent=55 // pred_fallthru
          _
        // Predicated region
        $region61: #{_lambda_.4} parent=55 // pred_check
          %p457 = pneg %p82
        $region62: #{_lambda_.4} parent=55 // pred_check_branch
          %459 = sbr.rel (%p457) target = $region64
        $region63: #{_lambda_.4} parent=55 // pred_region
          %p460 = scmp.lt.s32.totalorder %s29, 1
          %s461 = scalar_select %p460, %s29, 1
          %s462 = smul.addr %s461, 2
          %s463 = smul.addr %s462, 4
          %s464 = scalar_lea.vmem %s1, %s463
        $region64: #{_lambda_.4} parent=55 // pred_fallthru
          _
        // Predicated region
        $region65: #{_lambda_.4} parent=55 // pred_check
          %p465 = pneg %p110
        $region66: #{_lambda_.4} parent=55 // pred_check_branch
          %467 = sbr.rel (%p465) target = $region68
        $region67: #{_lambda_.4} parent=55 // pred_region
          %p468 = scmp.lt.s32.totalorder %s29, 1
          %s469 = scalar_select %p468, %s29, 1
          %p470 = scmp.lt.s32.totalorder %s30, 0
          %s471 = scalar_select %p470, %s30, 0
          %s472 = sadd.s32 %s471, %s469
          %s473 = smul.addr %s472, 4
          %s474 = scalar_lea.vmem %s2, %s473
        $region68: #{_lambda_.4} parent=55 // pred_fallthru
          _
        // Predicated region
        $region69: #{_lambda_.4} parent=55 // pred_check
          %p475 = pneg %p136
        $region70: #{_lambda_.4} parent=55 // pred_check_branch
          %477 = sbr.rel (%p475) target = $region72
        $region71: #{_lambda_.4} parent=55 // pred_region
          %p478 = scmp.lt.s32.totalorder %s29, 1
          %s479 = scalar_select %p478, %s29, 1
          %s480 = smul.addr %s479, 2
          %s481 = smul.addr %s480, 4
          %s482 = scalar_lea.vmem %s3, %s481
        $region72: #{_lambda_.4} parent=55 // pred_fallthru
          _
      $region56: #{_lambda_.4} parent=5 // pred_fallthru
        _
      %p483 = scmp.le.s32.totalorder 1, %s22
      %p484 = scmp.lt.s32.totalorder %s22, 3
      %p485 = pnand %p483, %p484
      %p486 = pneg %p485
      // Predicated region
      $region73: #{_lambda_.4} parent=5 // pred_check
        _
      $region74: #{_lambda_.4} parent=5 // pred_check_branch
        %488 = sbr.rel (%p485) target = $region76
      $region75: #{_lambda_.4} parent=5 // pred_region
        %s489 = ssub.s32 %s22, 1
        // Predicated region
        $region77: #{_lambda_.4} parent=75 // pred_check
          %p490 = pneg %p331
        $region78: #{_lambda_.4} parent=75 // pred_check_branch
          %492 = sbr.rel (%p490) target = $region80
        $region79: #{_lambda_.4} parent=75 // pred_region
          %494 = dma.done [#allocation3], 16
        $region80: #{_lambda_.4} parent=75 // pred_fallthru
          _
        // Predicated region
        $region81: #{_lambda_.4} parent=75 // pred_check
          %p495 = pneg %p352
        $region82: #{_lambda_.4} parent=75 // pred_check_branch
          %497 = sbr.rel (%p495) target = $region84
        $region83: #{_lambda_.4} parent=75 // pred_region
          %499 = dma.done [#allocation5], 16
        $region84: #{_lambda_.4} parent=75 // pred_fallthru
          _
        %p500 = scmp.lt.s32.totalorder %s31, 1
        %s501 = scalar_select %p500, %s31, 1
        %p502 = scmp.lt.s32.totalorder %s32, 0
        %s503 = scalar_select %p502, %s32, 0
        %s504 = sadd.s32 %s503, %s501
        %s505 = smul.addr %s504, 4
        %s506 = scalar_lea.vmem %s0, %s505
        %p507 = pneg %p62
        %p508 = pneg %p59
        %p509 = scmp.lt.s32.totalorder %s31, 1
        %s510 = scalar_select %p509, %s31, 1
        %s511 = smul.addr %s510, 2
        %s512 = smul.addr %s511, 4
        %s513 = scalar_lea.vmem %s1, %s512
        %p514 = pneg %p88
        %p515 = pneg %p85
        %p516 = scmp.lt.s32.totalorder %s31, 1
        %s517 = scalar_select %p516, %s31, 1
        %p518 = scmp.lt.s32.totalorder %s32, 0
        %s519 = scalar_select %p518, %s32, 0
        %s520 = sadd.s32 %s519, %s517
        %s521 = smul.addr %s520, 4
        %s522 = scalar_lea.vmem %s2, %s521
        %p523 = pneg %p116
        %p524 = pneg %p113
        %p525 = scmp.lt.s32.totalorder %s31, 1
        %s526 = scalar_select %p525, %s31, 1
        %s527 = smul.addr %s526, 2
        %s528 = smul.addr %s527, 4
        %s529 = scalar_lea.vmem %s3, %s528
        %p530 = pneg %p142
        %p531 = pneg %p139
        %p532 = pneg %p163
        %p533 = pneg %p160
        %p534 = pneg %p184
        %p535 = pneg %p181
        %p536 = pneg %p205
        %p537 = pneg %p202
        %p538 = pneg %p226
        %p539 = pneg %p223
        %p540 = pneg %p247
        %p541 = pneg %p244
        %p542 = pneg %p268
        %p543 = pneg %p265
        %p544 = pneg %p289
        %p545 = pneg %p286
        %p546 = pneg %p310
        %p547 = pneg %p307
        %p548 = pneg %p331
        %p549 = pneg %p328
        %p550 = pneg %p352
        %p551 = pneg %p349
        %p552 = pneg %p380
        %p553 = pneg %p377
        %p554 = scmp.lt.s32.totalorder %s31, 1
        %s555 = scalar_select %p554, %s31, 1
        %p556 = scmp.lt.s32.totalorder %s32, 0
        %s557 = scalar_select %p556, %s32, 0
        %s558 = sadd.s32 %s557, %s555
        %s559 = smul.addr %s558, 4
        %s560 = scalar_lea.vmem %s14, %s559
        %p561 = scmp.lt.s32.totalorder %s31, 1
        %s562 = scalar_select %p561, %s31, 1
        %p563 = scmp.lt.s32.totalorder %s32, 0
        %s564 = scalar_select %p563, %s32, 0
        %s565 = sadd.s32 %s564, %s562
        %s566 = smul.addr %s565, 4
        %s567 = scalar_lea.vmem %s0, %s566
        %p568 = scmp.lt.s32.totalorder %s31, 1
        %s569 = scalar_select %p568, %s31, 1
        %s570 = smul.addr %s569, 2
        %s571 = smul.addr %s570, 4
        %s572 = scalar_lea.vmem %s1, %s571
        %p573 = scmp.lt.s32.totalorder %s31, 1
        %s574 = scalar_select %p573, %s31, 1
        %p575 = scmp.lt.s32.totalorder %s32, 0
        %s576 = scalar_select %p575, %s32, 0
        %s577 = sadd.s32 %s576, %s574
        %s578 = smul.addr %s577, 4
        %s579 = scalar_lea.vmem %s2, %s578
        %p580 = scmp.lt.s32.totalorder %s31, 1
        %s581 = scalar_select %p580, %s31, 1
        %s582 = smul.addr %s581, 2
        %s583 = smul.addr %s582, 4
        %s584 = scalar_lea.vmem %s3, %s583
        %p585 = scmp.lt.s32.totalorder %s31, 1
        %s586 = scalar_select %p585, %s31, 1
        %p587 = scmp.lt.s32.totalorder %s32, 0
        %s588 = scalar_select %p587, %s32, 0
        %s589 = sadd.s32 %s588, %s586
        %s590 = smul.addr %s589, 4
        %s591 = scalar_lea.vmem %s14, %s590
        %v593 = vld [vmem:[%s567] sm:$0xf]
        %v594 = vunpack.c.l.bf16 %v593
        %v595 = vld [vmem:[%s579] sm:$0xf]
        %v596 = vunpack.c.l.bf16 %v595
        %v597 = vadd.f32 %v594, %v596
        %v598 = vld [vmem:[%s572] sm:$0xf]
        %v599 = vld [vmem:[%s572 + $0x4] sm:$0xf]
        %v600 = vunpack.c.l.bf16 %v598
        %v601 = vunpack.c.l.bf16 %v599
        %v602 = vld [vmem:[%s584] sm:$0xf]
        %v603 = vld [vmem:[%s584 + $0x4] sm:$0xf]
        %v604 = vunpack.c.l.bf16 %v602
        %v605 = vunpack.c.l.bf16 %v603
        %v606 = vadd.f32 %v600, %v604
        %v607 = vadd.f32 %v601, %v605
        %v608 = vpack.c.bf16 %v597, %v597
        %v609 = vld [vmem:[%s4] sm:$0xf]
        %v610 = vld [vmem:[%s4 + $0x4] sm:$0xf]
        %v611 = vld [vmem:[%s4 + $0x8] sm:$0xf]
        %v612 = vld [vmem:[%s4 + $0xc] sm:$0xf]
        %v613 = vld [vmem:[%s8] sm:$0x1]
        %v615 = vperm.slane %v613, 0
        %v621 = vunpack.c.l.b16 %v609
        %v622 = vunpack.c.l.b16 %v610
        %v623 = vunpack.c.l.b16 %v611
        %v624 = vunpack.c.l.b16 %v612
        %v625 = vpack.c.b16 %v622, %v621
        %v626 = vpack.c.b16 %v624, %v623
        %vm629 = vcmask 261120
        %v631 = vsel %vm629, %v608, 0
        %633 = vmatpush.bf16.msra.mxu0 0
        %634 = vmatpush.bf16.msra.mxu0 0
        %635 = vmatpush.bf16.msra.mxu0 0
        %636 = vmatpush.bf16.msra.mxu0 0
        %637 = vmatpush.bf16.msra.mxu0 0
        %638 = vmatpush.bf16.msra.mxu0 0
        %639 = vmatpush.bf16.msra.mxu0 %v626
        %640 = vmatpush.bf16.msra.mxu0 %v625
        %641 = vmatmul.bf16.gmra.mxu0 %v631
        %v642 = vpop.f32.mrf.mxu0
        %v643 = vadd.f32 %v615, %v642
        %v644 = vpop.f32.mrf.mxu0
        %645 = vdwg.mxu0
        %v646 = vmul.f32 %v643, 0.35355338
        %v647 = vpack.c.bf16 %v607, %v606
        %v648 = vld [vmem:[%s5] sm:$0xf]
        %v649 = vld [vmem:[%s5 + $0x4] sm:$0xf]
        %v650 = vld [vmem:[%s5 + $0x8] sm:$0xf]
        %v651 = vld [vmem:[%s5 + $0xc] sm:$0xf]
        %v652 = vld [vmem:[%s9] sm:$0x1]
        %v654 = vperm.slane %v652, 0
        %v660 = vunpack.c.l.b16 %v648
        %v661 = vunpack.c.l.b16 %v649
        %v662 = vunpack.c.l.b16 %v650
        %v663 = vunpack.c.l.b16 %v651
        %v664 = vpack.c.b16 %v661, %v660
        %v665 = vpack.c.b16 %v663, %v662
        %v669 = vsel %vm629, %v647, 0
        %671 = vmatpush.bf16.msra.mxu0 0
        %672 = vmatpush.bf16.msra.mxu0 0
        %673 = vmatpush.bf16.msra.mxu0 0
        %674 = vmatpush.bf16.msra.mxu0 0
        %675 = vmatpush.bf16.msra.mxu0 0
        %676 = vmatpush.bf16.msra.mxu0 0
        %677 = vmatpush.bf16.msra.mxu0 %v665
        %678 = vmatpush.bf16.msra.mxu0 %v664
        %679 = vmatmul.bf16.gmra.mxu0 %v669
        %v680 = vpop.f32.mrf.mxu0
        %v681 = vadd.f32 %v654, %v680
        %v682 = vpop.f32.mrf.mxu0
        %v683 = vadd.f32 %v654, %v682
        %684 = vdwg.mxu0
        %v685 = vld [vmem:[%s6] sm:$0xf]
        %v686 = vld [vmem:[%s6 + $0x4] sm:$0xf]
        %v687 = vld [vmem:[%s6 + $0x8] sm:$0xf]
        %v688 = vld [vmem:[%s6 + $0xc] sm:$0xf]
        %v689 = vld [vmem:[%s10] sm:$0x1]
        %v691 = vperm.slane %v689, 0
        %v695 = vunpack.c.l.b16 %v598
        %v696 = vunpack.c.l.b16 %v599
        %v697 = vpack.c.b16 %v696, %v695
        %v702 = vunpack.c.l.b16 %v685
        %v703 = vunpack.c.l.b16 %v686
        %v704 = vunpack.c.l.b16 %v687
        %v705 = vunpack.c.l.b16 %v688
        %v706 = vpack.c.b16 %v703, %v702
        %v707 = vpack.c.b16 %v705, %v704
        %v711 = vsel %vm629, %v697, 0
        %713 = vmatpush.bf16.msra.mxu0 0
        %714 = vmatpush.bf16.msra.mxu0 0
        %715 = vmatpush.bf16.msra.mxu0 0
        %716 = vmatpush.bf16.msra.mxu0 0
        %717 = vmatpush.bf16.msra.mxu0 0
        %718 = vmatpush.bf16.msra.mxu0 0
        %719 = vmatpush.bf16.msra.mxu0 %v707
        %720 = vmatpush.bf16.msra.mxu0 %v706
        %721 = vmatmul.bf16.gmra.mxu0 %v711
        %v722 = vpop.f32.mrf.mxu0
        %v723 = vadd.f32 %v691, %v722
        %v724 = vpop.f32.mrf.mxu0
        %v725 = vadd.f32 %v691, %v724
        %726 = vdwg.mxu0
        %v727 = vpack.c.bf16 %v646, %v646
        %v728 = vpack.c.bf16 %v681, %v681
        %v729 = vpack.c.bf16 %v683, %v683
        %v730 = vpack.c.bf16 %v723, %v723
        %v731 = vpack.c.bf16 %v725, %v725
        %v732 = vld [vmem:[%s11] sm:$0x1]
        %v734 = vperm.slane %v732, 0
        %v736 = vadd.f32 %v594, %v734
        %v739 = vunpack.c.l.b16 %v728
        %v740 = vunpack.c.l.b16 %v729
        %v741 = vpack.c.b16 %v740, %v739
        %vm742 = vcmask 64512
        %v744 = vsel %vm742, %v727, 0
        %v747 = vsel %vm742, %v741, 0
        %749 = vmatpush.bf16.xpose.msra.mxu0 0
        %750 = vmatpush.bf16.xpose.msra.mxu0 0
        %751 = vmatpush.bf16.xpose.msra.mxu0 0
        %752 = vmatpush.bf16.xpose.msra.mxu0 0
        %753 = vmatpush.bf16.xpose.msra.mxu0 0
        %754 = vmatpush.bf16.xpose.msra.mxu0 0
        %755 = vmatpush.bf16.xpose.msra.mxu0 0
        %756 = vmatpush.bf16.xpose.msra.mxu0 %v747
        %757 = vmatmul.bf16.gmra.mxu0 %v744
        %v758 = vpop.f32.mrf.mxu0
        %v759 = vadd.f32 0.0, %v758
        %v760 = vpop.f32.mrf.mxu0
        %761 = vdwg.mxu0
        %vm762 = vcmask 130048
        %v763 = vsel %vm762, %v759, -inf
        %764 = vmax.xlane.f32.xlu0 %v763
        %v765 = vpop.xlane.xlu0 %764
        %v766 = vsub.f32 %v759, %v765
        %v767 = vmul.f32 %v766, 1.442695
        %v768 = vpow.pop %v767
        %v769 = vsel %vm762, %v768, 0.0
        %770 = vadd.xlane.f32.xlu0 %v769
        %v771 = vpop.xlane.xlu0 %770
        %v772 = vrcp.pop %v771
        %v773 = vmul.f32 %v768, %v772
        %v774 = vpack.c.bf16 %v773, %v773
        %v777 = vunpack.c.l.b16 %v730
        %v778 = vunpack.c.l.b16 %v731
        %v779 = vpack.c.b16 %v778, %v777
        %v782 = vsel %vm762, %v774, 0
        %784 = vmatpush.bf16.msra.mxu0 0
        %785 = vmatpush.bf16.msra.mxu0 0
        %786 = vmatpush.bf16.msra.mxu0 0
        %787 = vmatpush.bf16.msra.mxu0 0
        %788 = vmatpush.bf16.msra.mxu0 0
        %789 = vmatpush.bf16.msra.mxu0 0
        %790 = vmatpush.bf16.msra.mxu0 0
        %791 = vmatpush.bf16.msra.mxu0 %v779
        %792 = vmatmul.bf16.gmra.mxu0 %v782
        %v793 = vpop.f32.mrf.mxu0
        %v794 = vadd.f32 0.0, %v793
        %v795 = vpop.f32.mrf.mxu0
        %796 = vdwg.mxu0
        %v797 = vpack.c.bf16 %v794, %v794
        %v798 = vld [vmem:[%s7] sm:$0xf]
        %v800 = vsel %vm742, %v797, 0
        %vm802 = vcmask 1043456
        %v804 = vsel %vm802, %v798, 0
        %806 = vmatpush.bf16.msra.mxu0 0
        %807 = vmatpush.bf16.msra.mxu0 0
        %808 = vmatpush.bf16.msra.mxu0 0
        %809 = vmatpush.bf16.msra.mxu0 0
        %810 = vmatpush.bf16.msra.mxu0 0
        %811 = vmatpush.bf16.msra.mxu0 0
        %812 = vmatpush.bf16.msra.mxu0 0
        %813 = vmatpush.bf16.msra.mxu0 %v804
        %814 = vmatmul.bf16.gmra.mxu0 %v800
        %v815 = vpop.f32.mrf.mxu0
        %v816 = vadd.f32 0.0, %v815
        %v817 = vpop.f32.mrf.mxu0
        %818 = vdwg.mxu0
        %v819 = vadd.f32 %v736, %v816
        %v821 = vunpack.c.l.b16 %v727
        %v822 = vpack.c.b16 %v821, %v821
        %823 = vrot.lane.b32.xlu0 %v822, 120
        %v824 = vpop.permute.xlu0 %823
        %825 = vrot.lane.b32.xlu0 %v741, 120
        %v826 = vpop.permute.xlu0 %825
        %v828 = vsel %vm742, %v824, 0
        %v831 = vsel %vm742, %v826, 0
        %833 = vmatpush.bf16.xpose.msra.mxu0 0
        %834 = vmatpush.bf16.xpose.msra.mxu0 0
        %835 = vmatpush.bf16.xpose.msra.mxu0 0
        %836 = vmatpush.bf16.xpose.msra.mxu0 0
        %837 = vmatpush.bf16.xpose.msra.mxu0 0
        %838 = vmatpush.bf16.xpose.msra.mxu0 0
        %839 = vmatpush.bf16.xpose.msra.mxu0 0
        %840 = vmatpush.bf16.xpose.msra.mxu0 %v831
        %841 = vmatmul.bf16.gmra.mxu0 %v828
        %v842 = vpop.f32.mrf.mxu0
        %v843 = vadd.f32 0.0, %v842
        %v844 = vpop.f32.mrf.mxu0
        %845 = vdwg.mxu0
        %v846 = vsel %vm762, %v843, -inf
        %847 = vmax.xlane.f32.xlu0 %v846
        %v848 = vpop.xlane.xlu0 %847
        %v849 = vsub.f32 %v843, %v848
        %v850 = vmul.f32 %v849, 1.442695
        %v851 = vpow.pop %v850
        %v852 = vsel %vm762, %v851, 0.0
        %853 = vadd.xlane.f32.xlu0 %v852
        %v854 = vpop.xlane.xlu0 %853
        %v855 = vrcp.pop %v854
        %v856 = vmul.f32 %v851, %v855
        %v857 = vpack.c.bf16 %v856, %v856
        %858 = vrot.lane.b32.xlu0 %v779, 120
        %v859 = vpop.permute.xlu0 %858
        %v862 = vsel %vm762, %v857, 0
        %864 = vmatpush.bf16.msra.mxu0 0
        %865 = vmatpush.bf16.msra.mxu0 0
        %866 = vmatpush.bf16.msra.mxu0 0
        %867 = vmatpush.bf16.msra.mxu0 0
        %868 = vmatpush.bf16.msra.mxu0 0
        %869 = vmatpush.bf16.msra.mxu0 0
        %870 = vmatpush.bf16.msra.mxu0 0
        %871 = vmatpush.bf16.msra.mxu0 %v859
        %872 = vmatmul.bf16.gmra.mxu0 %v862
        %v873 = vpop.f32.mrf.mxu0
        %v874 = vadd.f32 0.0, %v873
        %v875 = vpop.f32.mrf.mxu0
        %876 = vdwg.mxu0
        %v877 = vpack.c.bf16 %v874, %v874
        %v878 = vld [vmem:[%s7 + $0x4] sm:$0xf]
        %v880 = vsel %vm742, %v877, 0
        %v883 = vsel %vm802, %v878, 0
        %885 = vmatpush.bf16.msra.mxu0 0
        %886 = vmatpush.bf16.msra.mxu0 0
        %887 = vmatpush.bf16.msra.mxu0 0
        %888 = vmatpush.bf16.msra.mxu0 0
        %889 = vmatpush.bf16.msra.mxu0 0
        %890 = vmatpush.bf16.msra.mxu0 0
        %891 = vmatpush.bf16.msra.mxu0 0
        %892 = vmatpush.bf16.msra.mxu0 %v883
        %893 = vmatmul.bf16.gmra.mxu0 %v880
        %v894 = vpop.f32.mrf.mxu0
        %v895 = vadd.f32 0.0, %v894
        %v896 = vpop.f32.mrf.mxu0
        %897 = vdwg.mxu0
        %v898 = vadd.f32 %v819, %v895
        %899 = vrot.lane.b32.xlu0 %v822, 112
        %v900 = vpop.permute.xlu0 %899
        %901 = vrot.lane.b32.xlu0 %v741, 112
        %v902 = vpop.permute.xlu0 %901
        %v904 = vsel %vm742, %v900, 0
        %v907 = vsel %vm742, %v902, 0
        %909 = vmatpush.bf16.xpose.msra.mxu0 0
        %910 = vmatpush.bf16.xpose.msra.mxu0 0
        %911 = vmatpush.bf16.xpose.msra.mxu0 0
        %912 = vmatpush.bf16.xpose.msra.mxu0 0
        %913 = vmatpush.bf16.xpose.msra.mxu0 0
        %914 = vmatpush.bf16.xpose.msra.mxu0 0
        %915 = vmatpush.bf16.xpose.msra.mxu0 0
        %916 = vmatpush.bf16.xpose.msra.mxu0 %v907
        %917 = vmatmul.bf16.gmra.mxu0 %v904
        %v918 = vpop.f32.mrf.mxu0
        %v919 = vadd.f32 0.0, %v918
        %v920 = vpop.f32.mrf.mxu0
        %921 = vdwg.mxu0
        %v922 = vsel %vm762, %v919, -inf
        %923 = vmax.xlane.f32.xlu0 %v922
        %v924 = vpop.xlane.xlu0 %923
        %v925 = vsub.f32 %v919, %v924
        %v926 = vmul.f32 %v925, 1.442695
        %v927 = vpow.pop %v926
        %v928 = vsel %vm762, %v927, 0.0
        %929 = vadd.xlane.f32.xlu0 %v928
        %v930 = vpop.xlane.xlu0 %929
        %v931 = vrcp.pop %v930
        %v932 = vmul.f32 %v927, %v931
        %v933 = vpack.c.bf16 %v932, %v932
        %934 = vrot.lane.b32.xlu0 %v779, 112
        %v935 = vpop.permute.xlu0 %934
        %v938 = vsel %vm762, %v933, 0
        %940 = vmatpush.bf16.msra.mxu0 0
        %941 = vmatpush.bf16.msra.mxu0 0
        %942 = vmatpush.bf16.msra.mxu0 0
        %943 = vmatpush.bf16.msra.mxu0 0
        %944 = vmatpush.bf16.msra.mxu0 0
        %945 = vmatpush.bf16.msra.mxu0 0
        %946 = vmatpush.bf16.msra.mxu0 0
        %947 = vmatpush.bf16.msra.mxu0 %v935
        %948 = vmatmul.bf16.gmra.mxu0 %v938
        %v949 = vpop.f32.mrf.mxu0
        %v950 = vadd.f32 0.0, %v949
        %v951 = vpop.f32.mrf.mxu0
        %952 = vdwg.mxu0
        %v953 = vpack.c.bf16 %v950, %v950
        %v954 = vld [vmem:[%s7 + $0x8] sm:$0xf]
        %v956 = vsel %vm742, %v953, 0
        %v959 = vsel %vm802, %v954, 0
        %961 = vmatpush.bf16.msra.mxu0 0
        %962 = vmatpush.bf16.msra.mxu0 0
        %963 = vmatpush.bf16.msra.mxu0 0
        %964 = vmatpush.bf16.msra.mxu0 0
        %965 = vmatpush.bf16.msra.mxu0 0
        %966 = vmatpush.bf16.msra.mxu0 0
        %967 = vmatpush.bf16.msra.mxu0 0
        %968 = vmatpush.bf16.msra.mxu0 %v959
        %969 = vmatmul.bf16.gmra.mxu0 %v956
        %v970 = vpop.f32.mrf.mxu0
        %v971 = vadd.f32 0.0, %v970
        %v972 = vpop.f32.mrf.mxu0
        %973 = vdwg.mxu0
        %v974 = vadd.f32 %v898, %v971
        %975 = vrot.lane.b32.xlu0 %v822, 104
        %v976 = vpop.permute.xlu0 %975
        %977 = vrot.lane.b32.xlu0 %v741, 104
        %v978 = vpop.permute.xlu0 %977
        %v980 = vsel %vm742, %v976, 0
        %v983 = vsel %vm742, %v978, 0
        %985 = vmatpush.bf16.xpose.msra.mxu0 0
        %986 = vmatpush.bf16.xpose.msra.mxu0 0
        %987 = vmatpush.bf16.xpose.msra.mxu0 0
        %988 = vmatpush.bf16.xpose.msra.mxu0 0
        %989 = vmatpush.bf16.xpose.msra.mxu0 0
        %990 = vmatpush.bf16.xpose.msra.mxu0 0
        %991 = vmatpush.bf16.xpose.msra.mxu0 0
        %992 = vmatpush.bf16.xpose.msra.mxu0 %v983
        %993 = vmatmul.bf16.gmra.mxu0 %v980
        %v994 = vpop.f32.mrf.mxu0
        %v995 = vadd.f32 0.0, %v994
        %v996 = vpop.f32.mrf.mxu0
        %997 = vdwg.mxu0
        %v998 = vsel %vm762, %v995, -inf
        %999 = vmax.xlane.f32.xlu0 %v998
        %v1000 = vpop.xlane.xlu0 %999
        %v1001 = vsub.f32 %v995, %v1000
        %v1002 = vmul.f32 %v1001, 1.442695
        %v1003 = vpow.pop %v1002
        %v1004 = vsel %vm762, %v1003, 0.0
        %1005 = vadd.xlane.f32.xlu0 %v1004
        %v1006 = vpop.xlane.xlu0 %1005
        %v1007 = vrcp.pop %v1006
        %v1008 = vmul.f32 %v1003, %v1007
        %v1009 = vpack.c.bf16 %v1008, %v1008
        %1010 = vrot.lane.b32.xlu0 %v779, 104
        %v1011 = vpop.permute.xlu0 %1010
        %v1014 = vsel %vm762, %v1009, 0
        %1016 = vmatpush.bf16.msra.mxu0 0
        %1017 = vmatpush.bf16.msra.mxu0 0
        %1018 = vmatpush.bf16.msra.mxu0 0
        %1019 = vmatpush.bf16.msra.mxu0 0
        %1020 = vmatpush.bf16.msra.mxu0 0
        %1021 = vmatpush.bf16.msra.mxu0 0
        %1022 = vmatpush.bf16.msra.mxu0 0
        %1023 = vmatpush.bf16.msra.mxu0 %v1011
        %1024 = vmatmul.bf16.gmra.mxu0 %v1014
        %v1025 = vpop.f32.mrf.mxu0
        %v1026 = vadd.f32 0.0, %v1025
        %v1027 = vpop.f32.mrf.mxu0
        %1028 = vdwg.mxu0
        %v1029 = vpack.c.bf16 %v1026, %v1026
        %v1030 = vld [vmem:[%s7 + $0xc] sm:$0xf]
        %v1032 = vsel %vm742, %v1029, 0
        %v1035 = vsel %vm802, %v1030, 0
        %1037 = vmatpush.bf16.msra.mxu0 0
        %1038 = vmatpush.bf16.msra.mxu0 0
        %1039 = vmatpush.bf16.msra.mxu0 0
        %1040 = vmatpush.bf16.msra.mxu0 0
        %1041 = vmatpush.bf16.msra.mxu0 0
        %1042 = vmatpush.bf16.msra.mxu0 0
        %1043 = vmatpush.bf16.msra.mxu0 0
        %1044 = vmatpush.bf16.msra.mxu0 %v1035
        %1045 = vmatmul.bf16.gmra.mxu0 %v1032
        %v1046 = vpop.f32.mrf.mxu0
        %v1047 = vadd.f32 0.0, %v1046
        %v1048 = vpop.f32.mrf.mxu0
        %1049 = vdwg.mxu0
        %v1050 = vadd.f32 %v974, %v1047
        %v1051 = vld [vmem:[#allocation2] sm:$0x1]
        %v1052 = vld [vmem:[#allocation4] sm:$0x1]
        %v1053 = vsel %vm629, %v1050, 0.0
        %1054 = vadd.xlane.f32.xlu0 %v1053
        %v1055 = vpop.xlane.xlu0 %1054
        %v1056 = vrcp.pop 32.0
        %v1057 = vmul.f32 32.0, %v1056
        %v1058 = vsub.f32 1.0, %v1057
        %v1059 = vmul.f32 %v1056, %v1058
        %v1060 = vadd.f32 %v1056, %v1059
        %vm1061 = vweird.f32 %v1056
        %v1062 = vsel %vm1061, %v1056, %v1060
        %v1063 = vmul.f32 %v1055, %v1062
        %v1064 = vsub.f32 %v1050, %v1063
        %v1065 = vmul.f32 %v1064, %v1064
        %v1066 = vsel %vm629, %v1065, 0.0
        %1067 = vadd.xlane.f32.xlu0 %v1066
        %v1068 = vpop.xlane.xlu0 %1067
        %v1069 = vmul.f32 %v1068, %v1062
        %v1070 = vadd.f32 %v1069, 1e-05
        %v1071 = vrsqrt.pop %v1070
        %v1072 = vmul.f32 %v1071, %v1070
        %v1073 = vmul.f32 %v1072, %v1071
        %v1074 = vmul.f32 0.5, %v1073
        %v1075 = vsub.f32 1.5, %v1074
        %v1076 = vmul.f32 %v1071, %v1075
        %vm1077 = vweird.f32 %v1070
        %vm1078 = vweird.f32 %v1071
        %vm1079 = vmor %vm1077, %vm1078
        %v1080 = vsel %vm1079, %v1071, %v1076
        %v1081 = vmul.f32 %v1064, %v1080
        %v1083 = vperm.slane %v1051, 0
        %v1085 = vmul.f32 %v1081, %v1083
        %v1087 = vperm.slane %v1052, 0
        %v1089 = vadd.f32 %v1085, %v1087
        %v1090 = vpack.c.bf16 %v1089, %v1089
        %vm1091 = vcmask 257024
        %1092 = vst.msk [vmem:[%s591] sm:$0xf] %vm1091, %v1090
        %p1093 = scmp.lt.s32.totalorder %s31, 1
        %s1094 = scalar_select %p1093, %s31, 1
        %p1095 = scmp.lt.s32.totalorder %s32, 0
        %s1096 = scalar_select %p1095, %s32, 0
        %s1097 = sadd.s32 %s1096, %s1094
        %s1098 = smul.addr %s1097, 4
        %s1099 = scalar_lea.vmem %s14, %s1098
        // Predicated region
        $region85: #{_lambda_.4} parent=75 // pred_check
          %p1100 = pneg %p377
        $region86: #{_lambda_.4} parent=75 // pred_check_branch
          %1102 = sbr.rel (%p1100) target = $region88
        $region87: #{_lambda_.4} parent=75 // pred_region
          _
        $region88: #{_lambda_.4} parent=75 // pred_fallthru
          _
      $region76: #{_lambda_.4} parent=5 // pred_fallthru
        _
      %p1103 = scmp.le.s32.totalorder 2, %s22
      // Predicated region
      $region89: #{_lambda_.4} parent=5 // pred_check
        %p1104 = pneg %p1103
      $region90: #{_lambda_.4} parent=5 // pred_check_branch
        %1106 = sbr.rel (%p1104) target = $region92
      $region91: #{_lambda_.4} parent=5 // pred_region
        %s1107 = ssub.s32 %s22, 2
        // Predicated region
        $region93: #{_lambda_.4} parent=91 // pred_check
          %p1108 = pneg %p383
        $region94: #{_lambda_.4} parent=91 // pred_check_branch
          %1110 = sbr.rel (%p1108) target = $region96
        $region95: #{_lambda_.4} parent=91 // pred_region
          %p1111 = scmp.lt.s32.totalorder %s33, 1
          %s1112 = scalar_select %p1111, %s33, 1
          %p1113 = scmp.lt.s32.totalorder %s34, 0
          %s1114 = scalar_select %p1113, %s34, 0
          %s1115 = sadd.s32 %s1114, %s1112
          %s1116 = smul.addr %s1115, 4
          %s1117 = scalar_lea.vmem %s14, %s1116
        $region96: #{_lambda_.4} parent=91 // pred_fallthru
          _
      $region92: #{_lambda_.4} parent=5 // pred_fallthru
        _
    $region6: #{_lambda_.4} parent=1 // loop_footer
      %s26 = sadd.s32 1, %s22
    $region7: #{_lambda_.4} parent=1 // loop_footer_branch
      %21 = sbr.rel target = $region3
    $region8: #{_lambda_.4} parent=1 // loop_exit
      _
    %1118 = vsyncpa [#allocation3], 1
    %s1119 = scalar_lea.sflag [#allocation3], 1
    %1120 = vsyncpa %s1119, 1
    %1121 = vsyncpa [#allocation5], 1

</llo_original>
